<compile_context>
chip_gen: v6e
topology: v6e:2x2x1
jax: 0.10.0
libtpu: 0.0.40
codegen_flags: <defaults>
</compile_context>

<pallas_src>
import functools

import jax
import jax.numpy as jnp
from jax.experimental import pallas as pl
from jax.experimental.pallas import tpu as pltpu

EPS = 1e-5  # nn.InstanceNorm3d default


def _instance_norm(y):
    # y: (C, S) f32 -- normalize each channel (row) over the flattened spatial lanes.
    mean = jnp.mean(y, axis=1, keepdims=True)
    var = jnp.mean(jnp.square(y - mean), axis=1, keepdims=True)
    return (y - mean) * jax.lax.rsqrt(var + EPS)


def _spatial_coords(S, D, H, W):
    """(d, h, w) coordinate of every lane position s in [0, S)."""
    s = jax.lax.broadcasted_iota(jnp.int32, (1, S), 1)
    if (W & (W - 1)) == 0 and (H & (H - 1)) == 0:
        # power-of-two fast path: shifts / ands only (pure VPU bit ops)
        lw = W.bit_length() - 1
        lhw = (H * W).bit_length() - 1
        d = s >> lhw
        h = (s >> lw) & (H - 1)
        w = s & (W - 1)
    else:
        # TODO(synk): non-pow2 H/W relies on vector int32 div/mod lowering.
        d = s // (H * W)
        h = (s // W) % H
        w = s % W
    return d, h, w


def _build_im2col(x, col_ref, d_idx, h_idx, w_idx, D, H, W):
    """Write the 27-tap im2col of x (C, S) into col_ref (27*C, S) as bf16.

    Tap t = (kd*3 + kh)*3 + kw occupies rows [t*C, (t+1)*C).  Shifts are XLU lane
    rolls of the flattened volume; the conv's zero padding is re-created by masking
    out the positions whose (d,h,w)+offset falls outside the volume (which also
    covers the roll wrap-around), so no padded buffer is needed.
    """
    C, S = x.shape
    t = 0
    for od in (-1, 0, 1):
        for oh in (-1, 0, 1):
            for ow in (-1, 0, 1):
                off = od * (H * W) + oh * W + ow
                shift = (-off) % S
                rolled = x if shift == 0 else pltpu.roll(x, shift, axis=1)
                conds = []
                if od < 0:
                    conds.append(d_idx >= -od)
                if od > 0:
                    conds.append(d_idx < D - od)
                if oh < 0:
                    conds.append(h_idx >= -oh)
                if oh > 0:
                    conds.append(h_idx < H - oh)
                if ow < 0:
                    conds.append(w_idx >= -ow)
                if ow > 0:
                    conds.append(w_idx < W - ow)
                if conds:
                    ok = conds[0]
                    for c in conds[1:]:
                        ok = ok & c
                    tap = jnp.where(ok, rolled, 0.0)
                else:
                    tap = rolled
                col_ref[t * C:(t + 1) * C, :] = tap.astype(col_ref.dtype)
                t += 1


def _res_block_kernel(D, H, W, x_ref, w1_ref, w2_ref, w3_ref, out_ref,
                      col1_ref, col2_ref):
    # One grid step handles one batch sample entirely (instance-norm stays local).
    S = D * H * W
    x = x_ref[...]                                            # (Cin, S) f32

    d_idx, h_idx, w_idx = _spatial_coords(S, D, H, W)

    # residual layer 1: Conv3d(3x3x3, pad=1) -> InstanceNorm -> Dropout(identity, eval) -> ReLU
    _build_im2col(x, col1_ref, d_idx, h_idx, w_idx, D, H, W)
    y1 = jnp.dot(w1_ref[...], col1_ref[...],
                 preferred_element_type=jnp.float32)          # (Cmid, S), bf16 x bf16 -> f32
    y1 = jnp.maximum(_instance_norm(y1), 0.0)

    # residual layer 2: Conv3d(3x3x3, pad=1) -> InstanceNorm
    _build_im2col(y1, col2_ref, d_idx, h_idx, w_idx, D, H, W)
    y2 = _instance_norm(jnp.dot(w2_ref[...], col2_ref[...],
                                preferred_element_type=jnp.float32))  # (Cout, S)

    # shortcut: Conv3d(1x1x1) -> InstanceNorm   (1x1x1 conv == channel matmul)
    sc = _instance_norm(jnp.dot(w3_ref[...], x.astype(jnp.bfloat16),
                                preferred_element_type=jnp.float32))  # (Cout, S)

    out_ref[...] = jnp.maximum(y2 + sc, 0.0).astype(out_ref.dtype)


def res_two_layer_conv_block(x_ncdhw, w1, w2, w3):
    """Forward pass of ResTwoLayerConvBlock (stride=1, the module default).

    x_ncdhw: (N, Cin, D, H, W) float32
    w1: (3, 3, 3, Cin, Cmid)   first residual conv (DHWIO)
    w2: (3, 3, 3, Cmid, Cout)  second residual conv (DHWIO)
    w3: (Cin, Cout)            1x1x1 shortcut conv
    """
    # TODO(synk): only stride=1 (the module default) is implemented.
    # TODO(synk): for large volumes (e.g. 64^3, C>=32) add D-slab tiling with a 1-voxel
    #             halo (and/or multiple samples per grid step for tiny volumes) so the
    #             per-step VMEM footprint stays within v7x's 64 MiB.
    n, cin, d, h, w = x_ncdhw.shape
    cm = w1.shape[-1]
    cout = w2.shape[-1]
    s = d * h * w

    # NCDHW flattened over (D,H,W) is already the (C, S) channels-on-sublanes /
    # spatial-on-lanes layout the kernel wants: free reshape, no transpose, no pad pass.
    x = x_ncdhw.reshape(n, cin, s).astype(jnp.float32)

    # weights as (Cout, 27*Cin) matmul matrices, bf16 for native-rate MXU, f32 accumulation
    w1_k = w1.reshape(27 * cin, cm).T.astype(jnp.bfloat16)    # (Cmid, 27*Cin)
    w2_k = w2.reshape(27 * cm, cout).T.astype(jnp.bfloat16)   # (Cout, 27*Cmid)
    w3_k = w3.T.astype(jnp.bfloat16)                          # (Cout, Cin)

    kernel = functools.partial(_res_block_kernel, d, h, w)

    out = pl.pallas_call(
        kernel,
        out_shape=jax.ShapeDtypeStruct((n, cout, s), jnp.float32),
        grid=(n,),
        in_specs=[
            pl.BlockSpec((None, cin, s), lambda i: (i, 0, 0)),
            pl.BlockSpec((cm, 27 * cin), lambda i: (0, 0)),
            pl.BlockSpec((cout, 27 * cm), lambda i: (0, 0)),
            pl.BlockSpec((cout, cin), lambda i: (0, 0)),
        ],
        out_specs=pl.BlockSpec((None, cout, s), lambda i: (i, 0, 0)),
        scratch_shapes=[
            pltpu.VMEM((27 * cin, s), jnp.bfloat16),   # im2col of x   (conv1)
            pltpu.VMEM((27 * cm, s), jnp.bfloat16),    # im2col of y1  (conv2)
        ],
        compiler_params=pltpu.CompilerParams(
            # samples are independent (own output block, scratch fully rewritten
            # each step) -> shard the batch loop across v7x's two TensorCores.
            dimension_semantics=("parallel",)),
    )(x, w1_k, w2_k, w3_k)

    # (N, Cout, D*H*W) is flattened NCDHW already -> free reshape, no transpose.
    return out.reshape(n, cout, d, h, w)


def _ref_forward(x_ncdhw, w1, w2, w3):
    """Pure-JAX reference (lax conv, full f32) mirroring the PyTorch forward, eval mode."""
    x = jnp.transpose(x_ncdhw, (0, 2, 3, 4, 1))

    def conv(v, wk, pad):
        return jax.lax.conv_general_dilated(
            v, wk, window_strides=(1, 1, 1), padding=[(pad, pad)] * 3,
            dimension_numbers=("NDHWC", "DHWIO", "NDHWC"),
            precision=jax.lax.Precision.HIGHEST)

    def inorm(v):
        m = jnp.mean(v, axis=(1, 2, 3), keepdims=True)
        s = jnp.mean(jnp.square(v - m), axis=(1, 2, 3), keepdims=True)
        return (v - m) * jax.lax.rsqrt(s + EPS)

    y1 = jnp.maximum(inorm(conv(x, w1, 1)), 0.0)
    y2 = inorm(conv(y1, w2, 1))
    sc = inorm(conv(x, w3[None, None, None], 0))
    out = jnp.maximum(y2 + sc, 0.0)
    return jnp.transpose(out, (0, 4, 1, 2, 3))


if __name__ == "__main__":
    N, Cin, Cmid, Cout, D, H, W = 2, 4, 8, 8, 8, 8, 8

    key = jax.random.PRNGKey(0)
    kx, k1, k2, k3 = jax.random.split(key, 4)
    x = jax.random.normal(kx, (N, Cin, D, H, W), jnp.float32)
    w1 = 0.1 * jax.random.normal(k1, (3, 3, 3, Cin, Cmid), jnp.float32)
    w2 = 0.1 * jax.random.normal(k2, (3, 3, 3, Cmid, Cout), jnp.float32)
    w3 = 0.1 * jax.random.normal(k3, (Cin, Cout), jnp.float32)

    out = jax.block_until_ready(res_two_layer_conv_block(x, w1, w2, w3))
    ref = jax.block_until_ready(_ref_forward(x, w1, w2, w3))

    assert out.shape == (N, Cout, D, H, W), out.shape
    # bf16 MXU inputs (f32 accumulation) vs a full-f32 reference -> looser tolerance.
    err = float(jnp.max(jnp.abs(out - ref)))
    assert err < 6e-2, f"mismatch vs JAX reference: max abs err = {err}"
    print("KERNEL_OK")
</pallas_src>

<mosaic_0001>
module attributes {stable_mosaic.version = 11 : i64} {
  func.func @_res_block_kernel(%arg0: i32, %arg1: memref<1x4x512xf32, #tpu.memory_space<vmem>>, %arg2: memref<8x108xbf16, #tpu.memory_space<vmem>>, %arg3: memref<8x216xbf16, #tpu.memory_space<vmem>>, %arg4: memref<8x4xbf16, #tpu.memory_space<vmem>>, %arg5: memref<1x8x512xf32, #tpu.memory_space<vmem>>, %arg6: memref<108x512xbf16, #tpu.memory_space<vmem>>, %arg7: memref<216x512xbf16, #tpu.memory_space<vmem>>) attributes {dimension_semantics = [#tpu.dimension_semantics<parallel>], iteration_bounds = array<i64: 2>, scalar_prefetch = 0 : i64, scratch_operands = 2 : i64, tpu.core_type = #tpu.core_type<tc>, window_params = [{transform_indices = @transform_0, window_bounds = array<i64: 1, 4, 512>}, {pipeline_mode = #tpu.pipeline_mode<synchronous>, transform_indices = @transform_1, window_bounds = array<i64: 8, 108>}, {pipeline_mode = #tpu.pipeline_mode<synchronous>, transform_indices = @transform_2, window_bounds = array<i64: 8, 216>}, {pipeline_mode = #tpu.pipeline_mode<synchronous>, transform_indices = @transform_3, window_bounds = array<i64: 8, 4>}, {transform_indices = @transform_4, window_bounds = array<i64: 1, 8, 512>}]} {
    %c0 = arith.constant 0 : index
    %c0_0 = arith.constant 0 : index
    %c0_1 = arith.constant 0 : index
    %0 = vector.load %arg1[%c0, %c0_0, %c0_1] : memref<1x4x512xf32, #tpu.memory_space<vmem>>, vector<1x4x512xf32>
    %1 = vector.shape_cast %0 : vector<1x4x512xf32> to vector<4x512xf32>
    %2 = tpu.iota {dimensions = array<i32: 1>} : vector<1x512xi32>
    %c6_i32 = arith.constant 6 : i32
    %3 = vector.broadcast %c6_i32 : i32 to vector<1x512xi32>
    %4 = arith.shrsi %2, %3 : vector<1x512xi32>
    %c3_i32 = arith.constant 3 : i32
    %5 = vector.broadcast %c3_i32 : i32 to vector<1x512xi32>
    %6 = arith.shrsi %2, %5 : vector<1x512xi32>
    %c7_i32 = arith.constant 7 : i32
    %7 = vector.broadcast %c7_i32 : i32 to vector<1x512xi32>
    %8 = arith.andi %6, %7 : vector<1x512xi32>
    %c7_i32_2 = arith.constant 7 : i32
    %9 = vector.broadcast %c7_i32_2 : i32 to vector<1x512xi32>
    %10 = arith.andi %2, %9 : vector<1x512xi32>
    %c73_i32 = arith.constant 73 : i32
    %11 = tpu.dynamic_rotate %1 by %c73_i32 dim 1 : vector<4x512xf32>, i32 -> vector<4x512xf32>
    %c1_i32 = arith.constant 1 : i32
    %12 = vector.broadcast %c1_i32 : i32 to vector<1x512xi32>
    %13 = arith.cmpi sge, %4, %12 : vector<1x512xi32>
    %c1_i32_3 = arith.constant 1 : i32
    %14 = vector.broadcast %c1_i32_3 : i32 to vector<1x512xi32>
    %15 = arith.cmpi sge, %8, %14 : vector<1x512xi32>
    %c1_i32_4 = arith.constant 1 : i32
    %16 = vector.broadcast %c1_i32_4 : i32 to vector<1x512xi32>
    %17 = arith.cmpi sge, %10, %16 : vector<1x512xi32>
    %18 = arith.andi %13, %15 : vector<1x512xi1>
    %19 = arith.andi %18, %17 : vector<1x512xi1>
    %cst = arith.constant 0.000000e+00 : f32
    %20 = vector.shape_cast %19 : vector<1x512xi1> to vector<1x512xi1>
    %21 = vector.broadcast %20 : vector<1x512xi1> to vector<4x512xi1>
    %22 = vector.broadcast %cst : f32 to vector<4x512xf32>
    %23 = arith.select %21, %11, %22 : vector<4x512xi1>, vector<4x512xf32>
    %24 = arith.truncf %23 : vector<4x512xf32> to vector<4x512xbf16>
    %c0_5 = arith.constant 0 : index
    %c0_6 = arith.constant 0 : index
    %25 = vector.load %arg6[%c0_5, %c0_6] : memref<108x512xbf16, #tpu.memory_space<vmem>>, vector<4x512xbf16>
    tpu.vector_store %arg6[%c0_5, %c0_6], %24 {strides = array<i32>} : memref<108x512xbf16, #tpu.memory_space<vmem>>, vector<4x512xbf16>,
    %c72_i32 = arith.constant 72 : i32
    %26 = tpu.dynamic_rotate %1 by %c72_i32 dim 1 : vector<4x512xf32>, i32 -> vector<4x512xf32>
    %c1_i32_7 = arith.constant 1 : i32
    %27 = vector.broadcast %c1_i32_7 : i32 to vector<1x512xi32>
    %28 = arith.cmpi sge, %4, %27 : vector<1x512xi32>
    %c1_i32_8 = arith.constant 1 : i32
    %29 = vector.broadcast %c1_i32_8 : i32 to vector<1x512xi32>
    %30 = arith.cmpi sge, %8, %29 : vector<1x512xi32>
    %31 = arith.andi %28, %30 : vector<1x512xi1>
    %cst_9 = arith.constant 0.000000e+00 : f32
    %32 = vector.shape_cast %31 : vector<1x512xi1> to vector<1x512xi1>
    %33 = vector.broadcast %32 : vector<1x512xi1> to vector<4x512xi1>
    %34 = vector.broadcast %cst_9 : f32 to vector<4x512xf32>
    %35 = arith.select %33, %26, %34 : vector<4x512xi1>, vector<4x512xf32>
    %36 = arith.truncf %35 : vector<4x512xf32> to vector<4x512xbf16>
    %c4 = arith.constant 4 : index
    %c0_10 = arith.constant 0 : index
    %37 = vector.load %arg6[%c4, %c0_10] : memref<108x512xbf16, #tpu.memory_space<vmem>>, vector<4x512xbf16>
    tpu.vector_store %arg6[%c4, %c0_10], %36 {strides = array<i32>} : memref<108x512xbf16, #tpu.memory_space<vmem>>, vector<4x512xbf16>,
    %c71_i32 = arith.constant 71 : i32
    %38 = tpu.dynamic_rotate %1 by %c71_i32 dim 1 : vector<4x512xf32>, i32 -> vector<4x512xf32>
    %c1_i32_11 = arith.constant 1 : i32
    %39 = vector.broadcast %c1_i32_11 : i32 to vector<1x512xi32>
    %40 = arith.cmpi sge, %4, %39 : vector<1x512xi32>
    %c1_i32_12 = arith.constant 1 : i32
    %41 = vector.broadcast %c1_i32_12 : i32 to vector<1x512xi32>
    %42 = arith.cmpi sge, %8, %41 : vector<1x512xi32>
    %c7_i32_13 = arith.constant 7 : i32
    %43 = vector.broadcast %c7_i32_13 : i32 to vector<1x512xi32>
    %44 = arith.cmpi slt, %10, %43 : vector<1x512xi32>
    %45 = arith.andi %40, %42 : vector<1x512xi1>
    %46 = arith.andi %45, %44 : vector<1x512xi1>
    %cst_14 = arith.constant 0.000000e+00 : f32
    %47 = vector.shape_cast %46 : vector<1x512xi1> to vector<1x512xi1>
    %48 = vector.broadcast %47 : vector<1x512xi1> to vector<4x512xi1>
    %49 = vector.broadcast %cst_14 : f32 to vector<4x512xf32>
    %50 = arith.select %48, %38, %49 : vector<4x512xi1>, vector<4x512xf32>
    %51 = arith.truncf %50 : vector<4x512xf32> to vector<4x512xbf16>
    %c8 = arith.constant 8 : index
    %c0_15 = arith.constant 0 : index
    %52 = vector.load %arg6[%c8, %c0_15] : memref<108x512xbf16, #tpu.memory_space<vmem>>, vector<4x512xbf16>
    tpu.vector_store %arg6[%c8, %c0_15], %51 {strides = array<i32>} : memref<108x512xbf16, #tpu.memory_space<vmem>>, vector<4x512xbf16>,
    %c65_i32 = arith.constant 65 : i32
    %53 = tpu.dynamic_rotate %1 by %c65_i32 dim 1 : vector<4x512xf32>, i32 -> vector<4x512xf32>
    %c1_i32_16 = arith.constant 1 : i32
    %54 = vector.broadcast %c1_i32_16 : i32 to vector<1x512xi32>
    %55 = arith.cmpi sge, %4, %54 : vector<1x512xi32>
    %c1_i32_17 = arith.constant 1 : i32
    %56 = vector.broadcast %c1_i32_17 : i32 to vector<1x512xi32>
    %57 = arith.cmpi sge, %10, %56 : vector<1x512xi32>
    %58 = arith.andi %55, %57 : vector<1x512xi1>
    %cst_18 = arith.constant 0.000000e+00 : f32
    %59 = vector.shape_cast %58 : vector<1x512xi1> to vector<1x512xi1>
    %60 = vector.broadcast %59 : vector<1x512xi1> to vector<4x512xi1>
    %61 = vector.broadcast %cst_18 : f32 to vector<4x512xf32>
    %62 = arith.select %60, %53, %61 : vector<4x512xi1>, vector<4x512xf32>
    %63 = arith.truncf %62 : vector<4x512xf32> to vector<4x512xbf16>
    %c12 = arith.constant 12 : index
    %c0_19 = arith.constant 0 : index
    %64 = vector.load %arg6[%c12, %c0_19] : memref<108x512xbf16, #tpu.memory_space<vmem>>, vector<4x512xbf16>
    tpu.vector_store %arg6[%c12, %c0_19], %63 {strides = array<i32>} : memref<108x512xbf16, #tpu.memory_space<vmem>>, vector<4x512xbf16>,
    %c64_i32 = arith.constant 64 : i32
    %65 = tpu.dynamic_rotate %1 by %c64_i32 dim 1 : vector<4x512xf32>, i32 -> vector<4x512xf32>
    %c1_i32_20 = arith.constant 1 : i32
    %66 = vector.broadcast %c1_i32_20 : i32 to vector<1x512xi32>
    %67 = arith.cmpi sge, %4, %66 : vector<1x512xi32>
    %cst_21 = arith.constant 0.000000e+00 : f32
    %68 = vector.shape_cast %67 : vector<1x512xi1> to vector<1x512xi1>
    %69 = vector.broadcast %68 : vector<1x512xi1> to vector<4x512xi1>
    %70 = vector.broadcast %cst_21 : f32 to vector<4x512xf32>
    %71 = arith.select %69, %65, %70 : vector<4x512xi1>, vector<4x512xf32>
    %72 = arith.truncf %71 : vector<4x512xf32> to vector<4x512xbf16>
    %c16 = arith.constant 16 : index
    %c0_22 = arith.constant 0 : index
    %73 = vector.load %arg6[%c16, %c0_22] : memref<108x512xbf16, #tpu.memory_space<vmem>>, vector<4x512xbf16>
    tpu.vector_store %arg6[%c16, %c0_22], %72 {strides = array<i32>} : memref<108x512xbf16, #tpu.memory_space<vmem>>, vector<4x512xbf16>,
    %c63_i32 = arith.constant 63 : i32
    %74 = tpu.dynamic_rotate %1 by %c63_i32 dim 1 : vector<4x512xf32>, i32 -> vector<4x512xf32>
    %c1_i32_23 = arith.constant 1 : i32
    %75 = vector.broadcast %c1_i32_23 : i32 to vector<1x512xi32>
    %76 = arith.cmpi sge, %4, %75 : vector<1x512xi32>
    %c7_i32_24 = arith.constant 7 : i32
    %77 = vector.broadcast %c7_i32_24 : i32 to vector<1x512xi32>
    %78 = arith.cmpi slt, %10, %77 : vector<1x512xi32>
    %79 = arith.andi %76, %78 : vector<1x512xi1>
    %cst_25 = arith.constant 0.000000e+00 : f32
    %80 = vector.shape_cast %79 : vector<1x512xi1> to vector<1x512xi1>
    %81 = vector.broadcast %80 : vector<1x512xi1> to vector<4x512xi1>
    %82 = vector.broadcast %cst_25 : f32 to vector<4x512xf32>
    %83 = arith.select %81, %74, %82 : vector<4x512xi1>, vector<4x512xf32>
    %84 = arith.truncf %83 : vector<4x512xf32> to vector<4x512xbf16>
    %c20 = arith.constant 20 : index
    %c0_26 = arith.constant 0 : index
    %85 = vector.load %arg6[%c20, %c0_26] : memref<108x512xbf16, #tpu.memory_space<vmem>>, vector<4x512xbf16>
    tpu.vector_store %arg6[%c20, %c0_26], %84 {strides = array<i32>} : memref<108x512xbf16, #tpu.memory_space<vmem>>, vector<4x512xbf16>,
    %c57_i32 = arith.constant 57 : i32
    %86 = tpu.dynamic_rotate %1 by %c57_i32 dim 1 : vector<4x512xf32>, i32 -> vector<4x512xf32>
    %c1_i32_27 = arith.constant 1 : i32
    %87 = vector.broadcast %c1_i32_27 : i32 to vector<1x512xi32>
    %88 = arith.cmpi sge, %4, %87 : vector<1x512xi32>
    %c7_i32_28 = arith.constant 7 : i32
    %89 = vector.broadcast %c7_i32_28 : i32 to vector<1x512xi32>
    %90 = arith.cmpi slt, %8, %89 : vector<1x512xi32>
    %c1_i32_29 = arith.constant 1 : i32
    %91 = vector.broadcast %c1_i32_29 : i32 to vector<1x512xi32>
    %92 = arith.cmpi sge, %10, %91 : vector<1x512xi32>
    %93 = arith.andi %88, %90 : vector<1x512xi1>
    %94 = arith.andi %93, %92 : vector<1x512xi1>
    %cst_30 = arith.constant 0.000000e+00 : f32
    %95 = vector.shape_cast %94 : vector<1x512xi1> to vector<1x512xi1>
    %96 = vector.broadcast %95 : vector<1x512xi1> to vector<4x512xi1>
    %97 = vector.broadcast %cst_30 : f32 to vector<4x512xf32>
    %98 = arith.select %96, %86, %97 : vector<4x512xi1>, vector<4x512xf32>
    %99 = arith.truncf %98 : vector<4x512xf32> to vector<4x512xbf16>
    %c24 = arith.constant 24 : index
    %c0_31 = arith.constant 0 : index
    %100 = vector.load %arg6[%c24, %c0_31] : memref<108x512xbf16, #tpu.memory_space<vmem>>, vector<4x512xbf16>
    tpu.vector_store %arg6[%c24, %c0_31], %99 {strides = array<i32>} : memref<108x512xbf16, #tpu.memory_space<vmem>>, vector<4x512xbf16>,
    %c56_i32 = arith.constant 56 : i32
    %101 = tpu.dynamic_rotate %1 by %c56_i32 dim 1 : vector<4x512xf32>, i32 -> vector<4x512xf32>
    %c1_i32_32 = arith.constant 1 : i32
    %102 = vector.broadcast %c1_i32_32 : i32 to vector<1x512xi32>
    %103 = arith.cmpi sge, %4, %102 : vector<1x512xi32>
    %c7_i32_33 = arith.constant 7 : i32
    %104 = vector.broadcast %c7_i32_33 : i32 to vector<1x512xi32>
    %105 = arith.cmpi slt, %8, %104 : vector<1x512xi32>
    %106 = arith.andi %103, %105 : vector<1x512xi1>
    %cst_34 = arith.constant 0.000000e+00 : f32
    %107 = vector.shape_cast %106 : vector<1x512xi1> to vector<1x512xi1>
    %108 = vector.broadcast %107 : vector<1x512xi1> to vector<4x512xi1>
    %109 = vector.broadcast %cst_34 : f32 to vector<4x512xf32>
    %110 = arith.select %108, %101, %109 : vector<4x512xi1>, vector<4x512xf32>
    %111 = arith.truncf %110 : vector<4x512xf32> to vector<4x512xbf16>
    %c28 = arith.constant 28 : index
    %c0_35 = arith.constant 0 : index
    %112 = vector.load %arg6[%c28, %c0_35] : memref<108x512xbf16, #tpu.memory_space<vmem>>, vector<4x512xbf16>
    tpu.vector_store %arg6[%c28, %c0_35], %111 {strides = array<i32>} : memref<108x512xbf16, #tpu.memory_space<vmem>>, vector<4x512xbf16>,
    %c55_i32 = arith.constant 55 : i32
    %113 = tpu.dynamic_rotate %1 by %c55_i32 dim 1 : vector<4x512xf32>, i32 -> vector<4x512xf32>
    %c1_i32_36 = arith.constant 1 : i32
    %114 = vector.broadcast %c1_i32_36 : i32 to vector<1x512xi32>
    %115 = arith.cmpi sge, %4, %114 : vector<1x512xi32>
    %c7_i32_37 = arith.constant 7 : i32
    %116 = vector.broadcast %c7_i32_37 : i32 to vector<1x512xi32>
    %117 = arith.cmpi slt, %8, %116 : vector<1x512xi32>
    %c7_i32_38 = arith.constant 7 : i32
    %118 = vector.broadcast %c7_i32_38 : i32 to vector<1x512xi32>
    %119 = arith.cmpi slt, %10, %118 : vector<1x512xi32>
    %120 = arith.andi %115, %117 : vector<1x512xi1>
    %121 = arith.andi %120, %119 : vector<1x512xi1>
    %cst_39 = arith.constant 0.000000e+00 : f32
    %122 = vector.shape_cast %121 : vector<1x512xi1> to vector<1x512xi1>
    %123 = vector.broadcast %122 : vector<1x512xi1> to vector<4x512xi1>
    %124 = vector.broadcast %cst_39 : f32 to vector<4x512xf32>
    %125 = arith.select %123, %113, %124 : vector<4x512xi1>, vector<4x512xf32>
    %126 = arith.truncf %125 : vector<4x512xf32> to vector<4x512xbf16>
    %c32 = arith.constant 32 : index
    %c0_40 = arith.constant 0 : index
    %127 = vector.load %arg6[%c32, %c0_40] : memref<108x512xbf16, #tpu.memory_space<vmem>>, vector<4x512xbf16>
    tpu.vector_store %arg6[%c32, %c0_40], %126 {strides = array<i32>} : memref<108x512xbf16, #tpu.memory_space<vmem>>, vector<4x512xbf16>,
    %c9_i32 = arith.constant 9 : i32
    %128 = tpu.dynamic_rotate %1 by %c9_i32 dim 1 : vector<4x512xf32>, i32 -> vector<4x512xf32>
    %c1_i32_41 = arith.constant 1 : i32
    %129 = vector.broadcast %c1_i32_41 : i32 to vector<1x512xi32>
    %130 = arith.cmpi sge, %8, %129 : vector<1x512xi32>
    %c1_i32_42 = arith.constant 1 : i32
    %131 = vector.broadcast %c1_i32_42 : i32 to vector<1x512xi32>
    %132 = arith.cmpi sge, %10, %131 : vector<1x512xi32>
    %133 = arith.andi %130, %132 : vector<1x512xi1>
    %cst_43 = arith.constant 0.000000e+00 : f32
    %134 = vector.shape_cast %133 : vector<1x512xi1> to vector<1x512xi1>
    %135 = vector.broadcast %134 : vector<1x512xi1> to vector<4x512xi1>
    %136 = vector.broadcast %cst_43 : f32 to vector<4x512xf32>
    %137 = arith.select %135, %128, %136 : vector<4x512xi1>, vector<4x512xf32>
    %138 = arith.truncf %137 : vector<4x512xf32> to vector<4x512xbf16>
    %c36 = arith.constant 36 : index
    %c0_44 = arith.constant 0 : index
    %139 = vector.load %arg6[%c36, %c0_44] : memref<108x512xbf16, #tpu.memory_space<vmem>>, vector<4x512xbf16>
    tpu.vector_store %arg6[%c36, %c0_44], %138 {strides = array<i32>} : memref<108x512xbf16, #tpu.memory_space<vmem>>, vector<4x512xbf16>,
    %c8_i32 = arith.constant 8 : i32
    %140 = tpu.dynamic_rotate %1 by %c8_i32 dim 1 : vector<4x512xf32>, i32 -> vector<4x512xf32>
    %c1_i32_45 = arith.constant 1 : i32
    %141 = vector.broadcast %c1_i32_45 : i32 to vector<1x512xi32>
    %142 = arith.cmpi sge, %8, %141 : vector<1x512xi32>
    %cst_46 = arith.constant 0.000000e+00 : f32
    %143 = vector.shape_cast %142 : vector<1x512xi1> to vector<1x512xi1>
    %144 = vector.broadcast %143 : vector<1x512xi1> to vector<4x512xi1>
    %145 = vector.broadcast %cst_46 : f32 to vector<4x512xf32>
    %146 = arith.select %144, %140, %145 : vector<4x512xi1>, vector<4x512xf32>
    %147 = arith.truncf %146 : vector<4x512xf32> to vector<4x512xbf16>
    %c40 = arith.constant 40 : index
    %c0_47 = arith.constant 0 : index
    %148 = vector.load %arg6[%c40, %c0_47] : memref<108x512xbf16, #tpu.memory_space<vmem>>, vector<4x512xbf16>
    tpu.vector_store %arg6[%c40, %c0_47], %147 {strides = array<i32>} : memref<108x512xbf16, #tpu.memory_space<vmem>>, vector<4x512xbf16>,
    %c7_i32_48 = arith.constant 7 : i32
    %149 = tpu.dynamic_rotate %1 by %c7_i32_48 dim 1 : vector<4x512xf32>, i32 -> vector<4x512xf32>
    %c1_i32_49 = arith.constant 1 : i32
    %150 = vector.broadcast %c1_i32_49 : i32 to vector<1x512xi32>
    %151 = arith.cmpi sge, %8, %150 : vector<1x512xi32>
    %c7_i32_50 = arith.constant 7 : i32
    %152 = vector.broadcast %c7_i32_50 : i32 to vector<1x512xi32>
    %153 = arith.cmpi slt, %10, %152 : vector<1x512xi32>
    %154 = arith.andi %151, %153 : vector<1x512xi1>
    %cst_51 = arith.constant 0.000000e+00 : f32
    %155 = vector.shape_cast %154 : vector<1x512xi1> to vector<1x512xi1>
    %156 = vector.broadcast %155 : vector<1x512xi1> to vector<4x512xi1>
    %157 = vector.broadcast %cst_51 : f32 to vector<4x512xf32>
    %158 = arith.select %156, %149, %157 : vector<4x512xi1>, vector<4x512xf32>
    %159 = arith.truncf %158 : vector<4x512xf32> to vector<4x512xbf16>
    %c44 = arith.constant 44 : index
    %c0_52 = arith.constant 0 : index
    %160 = vector.load %arg6[%c44, %c0_52] : memref<108x512xbf16, #tpu.memory_space<vmem>>, vector<4x512xbf16>
    tpu.vector_store %arg6[%c44, %c0_52], %159 {strides = array<i32>} : memref<108x512xbf16, #tpu.memory_space<vmem>>, vector<4x512xbf16>,
    %c1_i32_53 = arith.constant 1 : i32
    %161 = tpu.dynamic_rotate %1 by %c1_i32_53 dim 1 : vector<4x512xf32>, i32 -> vector<4x512xf32>
    %c1_i32_54 = arith.constant 1 : i32
    %162 = vector.broadcast %c1_i32_54 : i32 to vector<1x512xi32>
    %163 = arith.cmpi sge, %10, %162 : vector<1x512xi32>
    %cst_55 = arith.constant 0.000000e+00 : f32
    %164 = vector.shape_cast %163 : vector<1x512xi1> to vector<1x512xi1>
    %165 = vector.broadcast %164 : vector<1x512xi1> to vector<4x512xi1>
    %166 = vector.broadcast %cst_55 : f32 to vector<4x512xf32>
    %167 = arith.select %165, %161, %166 : vector<4x512xi1>, vector<4x512xf32>
    %168 = arith.truncf %167 : vector<4x512xf32> to vector<4x512xbf16>
    %c48 = arith.constant 48 : index
    %c0_56 = arith.constant 0 : index
    %169 = vector.load %arg6[%c48, %c0_56] : memref<108x512xbf16, #tpu.memory_space<vmem>>, vector<4x512xbf16>
    tpu.vector_store %arg6[%c48, %c0_56], %168 {strides = array<i32>} : memref<108x512xbf16, #tpu.memory_space<vmem>>, vector<4x512xbf16>,
    %170 = arith.truncf %1 : vector<4x512xf32> to vector<4x512xbf16>
    %c52 = arith.constant 52 : index
    %c0_57 = arith.constant 0 : index
    %171 = vector.load %arg6[%c52, %c0_57] : memref<108x512xbf16, #tpu.memory_space<vmem>>, vector<4x512xbf16>
    tpu.vector_store %arg6[%c52, %c0_57], %170 {strides = array<i32>} : memref<108x512xbf16, #tpu.memory_space<vmem>>, vector<4x512xbf16>,
    %c511_i32 = arith.constant 511 : i32
    %172 = tpu.dynamic_rotate %1 by %c511_i32 dim 1 : vector<4x512xf32>, i32 -> vector<4x512xf32>
    %c7_i32_58 = arith.constant 7 : i32
    %173 = vector.broadcast %c7_i32_58 : i32 to vector<1x512xi32>
    %174 = arith.cmpi slt, %10, %173 : vector<1x512xi32>
    %cst_59 = arith.constant 0.000000e+00 : f32
    %175 = vector.shape_cast %174 : vector<1x512xi1> to vector<1x512xi1>
    %176 = vector.broadcast %175 : vector<1x512xi1> to vector<4x512xi1>
    %177 = vector.broadcast %cst_59 : f32 to vector<4x512xf32>
    %178 = arith.select %176, %172, %177 : vector<4x512xi1>, vector<4x512xf32>
    %179 = arith.truncf %178 : vector<4x512xf32> to vector<4x512xbf16>
    %c56 = arith.constant 56 : index
    %c0_60 = arith.constant 0 : index
    %180 = vector.load %arg6[%c56, %c0_60] : memref<108x512xbf16, #tpu.memory_space<vmem>>, vector<4x512xbf16>
    tpu.vector_store %arg6[%c56, %c0_60], %179 {strides = array<i32>} : memref<108x512xbf16, #tpu.memory_space<vmem>>, vector<4x512xbf16>,
    %c505_i32 = arith.constant 505 : i32
    %181 = tpu.dynamic_rotate %1 by %c505_i32 dim 1 : vector<4x512xf32>, i32 -> vector<4x512xf32>
    %c7_i32_61 = arith.constant 7 : i32
    %182 = vector.broadcast %c7_i32_61 : i32 to vector<1x512xi32>
    %183 = arith.cmpi slt, %8, %182 : vector<1x512xi32>
    %c1_i32_62 = arith.constant 1 : i32
    %184 = vector.broadcast %c1_i32_62 : i32 to vector<1x512xi32>
    %185 = arith.cmpi sge, %10, %184 : vector<1x512xi32>
    %186 = arith.andi %183, %185 : vector<1x512xi1>
    %cst_63 = arith.constant 0.000000e+00 : f32
    %187 = vector.shape_cast %186 : vector<1x512xi1> to vector<1x512xi1>
    %188 = vector.broadcast %187 : vector<1x512xi1> to vector<4x512xi1>
    %189 = vector.broadcast %cst_63 : f32 to vector<4x512xf32>
    %190 = arith.select %188, %181, %189 : vector<4x512xi1>, vector<4x512xf32>
    %191 = arith.truncf %190 : vector<4x512xf32> to vector<4x512xbf16>
    %c60 = arith.constant 60 : index
    %c0_64 = arith.constant 0 : index
    %192 = vector.load %arg6[%c60, %c0_64] : memref<108x512xbf16, #tpu.memory_space<vmem>>, vector<4x512xbf16>
    tpu.vector_store %arg6[%c60, %c0_64], %191 {strides = array<i32>} : memref<108x512xbf16, #tpu.memory_space<vmem>>, vector<4x512xbf16>,
    %c504_i32 = arith.constant 504 : i32
    %193 = tpu.dynamic_rotate %1 by %c504_i32 dim 1 : vector<4x512xf32>, i32 -> vector<4x512xf32>
    %c7_i32_65 = arith.constant 7 : i32
    %194 = vector.broadcast %c7_i32_65 : i32 to vector<1x512xi32>
    %195 = arith.cmpi slt, %8, %194 : vector<1x512xi32>
    %cst_66 = arith.constant 0.000000e+00 : f32
    %196 = vector.shape_cast %195 : vector<1x512xi1> to vector<1x512xi1>
    %197 = vector.broadcast %196 : vector<1x512xi1> to vector<4x512xi1>
    %198 = vector.broadcast %cst_66 : f32 to vector<4x512xf32>
    %199 = arith.select %197, %193, %198 : vector<4x512xi1>, vector<4x512xf32>
    %200 = arith.truncf %199 : vector<4x512xf32> to vector<4x512xbf16>
    %c64 = arith.constant 64 : index
    %c0_67 = arith.constant 0 : index
    %201 = vector.load %arg6[%c64, %c0_67] : memref<108x512xbf16, #tpu.memory_space<vmem>>, vector<4x512xbf16>
    tpu.vector_store %arg6[%c64, %c0_67], %200 {strides = array<i32>} : memref<108x512xbf16, #tpu.memory_space<vmem>>, vector<4x512xbf16>,
    %c503_i32 = arith.constant 503 : i32
    %202 = tpu.dynamic_rotate %1 by %c503_i32 dim 1 : vector<4x512xf32>, i32 -> vector<4x512xf32>
    %c7_i32_68 = arith.constant 7 : i32
    %203 = vector.broadcast %c7_i32_68 : i32 to vector<1x512xi32>
    %204 = arith.cmpi slt, %8, %203 : vector<1x512xi32>
    %c7_i32_69 = arith.constant 7 : i32
    %205 = vector.broadcast %c7_i32_69 : i32 to vector<1x512xi32>
    %206 = arith.cmpi slt, %10, %205 : vector<1x512xi32>
    %207 = arith.andi %204, %206 : vector<1x512xi1>
    %cst_70 = arith.constant 0.000000e+00 : f32
    %208 = vector.shape_cast %207 : vector<1x512xi1> to vector<1x512xi1>
    %209 = vector.broadcast %208 : vector<1x512xi1> to vector<4x512xi1>
    %210 = vector.broadcast %cst_70 : f32 to vector<4x512xf32>
    %211 = arith.select %209, %202, %210 : vector<4x512xi1>, vector<4x512xf32>
    %212 = arith.truncf %211 : vector<4x512xf32> to vector<4x512xbf16>
    %c68 = arith.constant 68 : index
    %c0_71 = arith.constant 0 : index
    %213 = vector.load %arg6[%c68, %c0_71] : memref<108x512xbf16, #tpu.memory_space<vmem>>, vector<4x512xbf16>
    tpu.vector_store %arg6[%c68, %c0_71], %212 {strides = array<i32>} : memref<108x512xbf16, #tpu.memory_space<vmem>>, vector<4x512xbf16>,
    %c457_i32 = arith.constant 457 : i32
    %214 = tpu.dynamic_rotate %1 by %c457_i32 dim 1 : vector<4x512xf32>, i32 -> vector<4x512xf32>
    %c7_i32_72 = arith.constant 7 : i32
    %215 = vector.broadcast %c7_i32_72 : i32 to vector<1x512xi32>
    %216 = arith.cmpi slt, %4, %215 : vector<1x512xi32>
    %c1_i32_73 = arith.constant 1 : i32
    %217 = vector.broadcast %c1_i32_73 : i32 to vector<1x512xi32>
    %218 = arith.cmpi sge, %8, %217 : vector<1x512xi32>
    %c1_i32_74 = arith.constant 1 : i32
    %219 = vector.broadcast %c1_i32_74 : i32 to vector<1x512xi32>
    %220 = arith.cmpi sge, %10, %219 : vector<1x512xi32>
    %221 = arith.andi %216, %218 : vector<1x512xi1>
    %222 = arith.andi %221, %220 : vector<1x512xi1>
    %cst_75 = arith.constant 0.000000e+00 : f32
    %223 = vector.shape_cast %222 : vector<1x512xi1> to vector<1x512xi1>
    %224 = vector.broadcast %223 : vector<1x512xi1> to vector<4x512xi1>
    %225 = vector.broadcast %cst_75 : f32 to vector<4x512xf32>
    %226 = arith.select %224, %214, %225 : vector<4x512xi1>, vector<4x512xf32>
    %227 = arith.truncf %226 : vector<4x512xf32> to vector<4x512xbf16>
    %c72 = arith.constant 72 : index
    %c0_76 = arith.constant 0 : index
    %228 = vector.load %arg6[%c72, %c0_76] : memref<108x512xbf16, #tpu.memory_space<vmem>>, vector<4x512xbf16>
    tpu.vector_store %arg6[%c72, %c0_76], %227 {strides = array<i32>} : memref<108x512xbf16, #tpu.memory_space<vmem>>, vector<4x512xbf16>,
    %c456_i32 = arith.constant 456 : i32
    %229 = tpu.dynamic_rotate %1 by %c456_i32 dim 1 : vector<4x512xf32>, i32 -> vector<4x512xf32>
    %c7_i32_77 = arith.constant 7 : i32
    %230 = vector.broadcast %c7_i32_77 : i32 to vector<1x512xi32>
    %231 = arith.cmpi slt, %4, %230 : vector<1x512xi32>
    %c1_i32_78 = arith.constant 1 : i32
    %232 = vector.broadcast %c1_i32_78 : i32 to vector<1x512xi32>
    %233 = arith.cmpi sge, %8, %232 : vector<1x512xi32>
    %234 = arith.andi %231, %233 : vector<1x512xi1>
    %cst_79 = arith.constant 0.000000e+00 : f32
    %235 = vector.shape_cast %234 : vector<1x512xi1> to vector<1x512xi1>
    %236 = vector.broadcast %235 : vector<1x512xi1> to vector<4x512xi1>
    %237 = vector.broadcast %cst_79 : f32 to vector<4x512xf32>
    %238 = arith.select %236, %229, %237 : vector<4x512xi1>, vector<4x512xf32>
    %239 = arith.truncf %238 : vector<4x512xf32> to vector<4x512xbf16>
    %c76 = arith.constant 76 : index
    %c0_80 = arith.constant 0 : index
    %240 = vector.load %arg6[%c76, %c0_80] : memref<108x512xbf16, #tpu.memory_space<vmem>>, vector<4x512xbf16>
    tpu.vector_store %arg6[%c76, %c0_80], %239 {strides = array<i32>} : memref<108x512xbf16, #tpu.memory_space<vmem>>, vector<4x512xbf16>,
    %c455_i32 = arith.constant 455 : i32
    %241 = tpu.dynamic_rotate %1 by %c455_i32 dim 1 : vector<4x512xf32>, i32 -> vector<4x512xf32>
    %c7_i32_81 = arith.constant 7 : i32
    %242 = vector.broadcast %c7_i32_81 : i32 to vector<1x512xi32>
    %243 = arith.cmpi slt, %4, %242 : vector<1x512xi32>
    %c1_i32_82 = arith.constant 1 : i32
    %244 = vector.broadcast %c1_i32_82 : i32 to vector<1x512xi32>
    %245 = arith.cmpi sge, %8, %244 : vector<1x512xi32>
    %c7_i32_83 = arith.constant 7 : i32
    %246 = vector.broadcast %c7_i32_83 : i32 to vector<1x512xi32>
    %247 = arith.cmpi slt, %10, %246 : vector<1x512xi32>
    %248 = arith.andi %243, %245 : vector<1x512xi1>
    %249 = arith.andi %248, %247 : vector<1x512xi1>
    %cst_84 = arith.constant 0.000000e+00 : f32
    %250 = vector.shape_cast %249 : vector<1x512xi1> to vector<1x512xi1>
    %251 = vector.broadcast %250 : vector<1x512xi1> to vector<4x512xi1>
    %252 = vector.broadcast %cst_84 : f32 to vector<4x512xf32>
    %253 = arith.select %251, %241, %252 : vector<4x512xi1>, vector<4x512xf32>
    %254 = arith.truncf %253 : vector<4x512xf32> to vector<4x512xbf16>
    %c80 = arith.constant 80 : index
    %c0_85 = arith.constant 0 : index
    %255 = vector.load %arg6[%c80, %c0_85] : memref<108x512xbf16, #tpu.memory_space<vmem>>, vector<4x512xbf16>
    tpu.vector_store %arg6[%c80, %c0_85], %254 {strides = array<i32>} : memref<108x512xbf16, #tpu.memory_space<vmem>>, vector<4x512xbf16>,
    %c449_i32 = arith.constant 449 : i32
    %256 = tpu.dynamic_rotate %1 by %c449_i32 dim 1 : vector<4x512xf32>, i32 -> vector<4x512xf32>
    %c7_i32_86 = arith.constant 7 : i32
    %257 = vector.broadcast %c7_i32_86 : i32 to vector<1x512xi32>
    %258 = arith.cmpi slt, %4, %257 : vector<1x512xi32>
    %c1_i32_87 = arith.constant 1 : i32
    %259 = vector.broadcast %c1_i32_87 : i32 to vector<1x512xi32>
    %260 = arith.cmpi sge, %10, %259 : vector<1x512xi32>
    %261 = arith.andi %258, %260 : vector<1x512xi1>
    %cst_88 = arith.constant 0.000000e+00 : f32
    %262 = vector.shape_cast %261 : vector<1x512xi1> to vector<1x512xi1>
    %263 = vector.broadcast %262 : vector<1x512xi1> to vector<4x512xi1>
    %264 = vector.broadcast %cst_88 : f32 to vector<4x512xf32>
    %265 = arith.select %263, %256, %264 : vector<4x512xi1>, vector<4x512xf32>
    %266 = arith.truncf %265 : vector<4x512xf32> to vector<4x512xbf16>
    %c84 = arith.constant 84 : index
    %c0_89 = arith.constant 0 : index
    %267 = vector.load %arg6[%c84, %c0_89] : memref<108x512xbf16, #tpu.memory_space<vmem>>, vector<4x512xbf16>
    tpu.vector_store %arg6[%c84, %c0_89], %266 {strides = array<i32>} : memref<108x512xbf16, #tpu.memory_space<vmem>>, vector<4x512xbf16>,
    %c448_i32 = arith.constant 448 : i32
    %268 = tpu.dynamic_rotate %1 by %c448_i32 dim 1 : vector<4x512xf32>, i32 -> vector<4x512xf32>
    %c7_i32_90 = arith.constant 7 : i32
    %269 = vector.broadcast %c7_i32_90 : i32 to vector<1x512xi32>
    %270 = arith.cmpi slt, %4, %269 : vector<1x512xi32>
    %cst_91 = arith.constant 0.000000e+00 : f32
    %271 = vector.shape_cast %270 : vector<1x512xi1> to vector<1x512xi1>
    %272 = vector.broadcast %271 : vector<1x512xi1> to vector<4x512xi1>
    %273 = vector.broadcast %cst_91 : f32 to vector<4x512xf32>
    %274 = arith.select %272, %268, %273 : vector<4x512xi1>, vector<4x512xf32>
    %275 = arith.truncf %274 : vector<4x512xf32> to vector<4x512xbf16>
    %c88 = arith.constant 88 : index
    %c0_92 = arith.constant 0 : index
    %276 = vector.load %arg6[%c88, %c0_92] : memref<108x512xbf16, #tpu.memory_space<vmem>>, vector<4x512xbf16>
    tpu.vector_store %arg6[%c88, %c0_92], %275 {strides = array<i32>} : memref<108x512xbf16, #tpu.memory_space<vmem>>, vector<4x512xbf16>,
    %c447_i32 = arith.constant 447 : i32
    %277 = tpu.dynamic_rotate %1 by %c447_i32 dim 1 : vector<4x512xf32>, i32 -> vector<4x512xf32>
    %c7_i32_93 = arith.constant 7 : i32
    %278 = vector.broadcast %c7_i32_93 : i32 to vector<1x512xi32>
    %279 = arith.cmpi slt, %4, %278 : vector<1x512xi32>
    %c7_i32_94 = arith.constant 7 : i32
    %280 = vector.broadcast %c7_i32_94 : i32 to vector<1x512xi32>
    %281 = arith.cmpi slt, %10, %280 : vector<1x512xi32>
    %282 = arith.andi %279, %281 : vector<1x512xi1>
    %cst_95 = arith.constant 0.000000e+00 : f32
    %283 = vector.shape_cast %282 : vector<1x512xi1> to vector<1x512xi1>
    %284 = vector.broadcast %283 : vector<1x512xi1> to vector<4x512xi1>
    %285 = vector.broadcast %cst_95 : f32 to vector<4x512xf32>
    %286 = arith.select %284, %277, %285 : vector<4x512xi1>, vector<4x512xf32>
    %287 = arith.truncf %286 : vector<4x512xf32> to vector<4x512xbf16>
    %c92 = arith.constant 92 : index
    %c0_96 = arith.constant 0 : index
    %288 = vector.load %arg6[%c92, %c0_96] : memref<108x512xbf16, #tpu.memory_space<vmem>>, vector<4x512xbf16>
    tpu.vector_store %arg6[%c92, %c0_96], %287 {strides = array<i32>} : memref<108x512xbf16, #tpu.memory_space<vmem>>, vector<4x512xbf16>,
    %c441_i32 = arith.constant 441 : i32
    %289 = tpu.dynamic_rotate %1 by %c441_i32 dim 1 : vector<4x512xf32>, i32 -> vector<4x512xf32>
    %c7_i32_97 = arith.constant 7 : i32
    %290 = vector.broadcast %c7_i32_97 : i32 to vector<1x512xi32>
    %291 = arith.cmpi slt, %4, %290 : vector<1x512xi32>
    %c7_i32_98 = arith.constant 7 : i32
    %292 = vector.broadcast %c7_i32_98 : i32 to vector<1x512xi32>
    %293 = arith.cmpi slt, %8, %292 : vector<1x512xi32>
    %c1_i32_99 = arith.constant 1 : i32
    %294 = vector.broadcast %c1_i32_99 : i32 to vector<1x512xi32>
    %295 = arith.cmpi sge, %10, %294 : vector<1x512xi32>
    %296 = arith.andi %291, %293 : vector<1x512xi1>
    %297 = arith.andi %296, %295 : vector<1x512xi1>
    %cst_100 = arith.constant 0.000000e+00 : f32
    %298 = vector.shape_cast %297 : vector<1x512xi1> to vector<1x512xi1>
    %299 = vector.broadcast %298 : vector<1x512xi1> to vector<4x512xi1>
    %300 = vector.broadcast %cst_100 : f32 to vector<4x512xf32>
    %301 = arith.select %299, %289, %300 : vector<4x512xi1>, vector<4x512xf32>
    %302 = arith.truncf %301 : vector<4x512xf32> to vector<4x512xbf16>
    %c96 = arith.constant 96 : index
    %c0_101 = arith.constant 0 : index
    %303 = vector.load %arg6[%c96, %c0_101] : memref<108x512xbf16, #tpu.memory_space<vmem>>, vector<4x512xbf16>
    tpu.vector_store %arg6[%c96, %c0_101], %302 {strides = array<i32>} : memref<108x512xbf16, #tpu.memory_space<vmem>>, vector<4x512xbf16>,
    %c440_i32 = arith.constant 440 : i32
    %304 = tpu.dynamic_rotate %1 by %c440_i32 dim 1 : vector<4x512xf32>, i32 -> vector<4x512xf32>
    %c7_i32_102 = arith.constant 7 : i32
    %305 = vector.broadcast %c7_i32_102 : i32 to vector<1x512xi32>
    %306 = arith.cmpi slt, %4, %305 : vector<1x512xi32>
    %c7_i32_103 = arith.constant 7 : i32
    %307 = vector.broadcast %c7_i32_103 : i32 to vector<1x512xi32>
    %308 = arith.cmpi slt, %8, %307 : vector<1x512xi32>
    %309 = arith.andi %306, %308 : vector<1x512xi1>
    %cst_104 = arith.constant 0.000000e+00 : f32
    %310 = vector.shape_cast %309 : vector<1x512xi1> to vector<1x512xi1>
    %311 = vector.broadcast %310 : vector<1x512xi1> to vector<4x512xi1>
    %312 = vector.broadcast %cst_104 : f32 to vector<4x512xf32>
    %313 = arith.select %311, %304, %312 : vector<4x512xi1>, vector<4x512xf32>
    %314 = arith.truncf %313 : vector<4x512xf32> to vector<4x512xbf16>
    %c100 = arith.constant 100 : index
    %c0_105 = arith.constant 0 : index
    %315 = vector.load %arg6[%c100, %c0_105] : memref<108x512xbf16, #tpu.memory_space<vmem>>, vector<4x512xbf16>
    tpu.vector_store %arg6[%c100, %c0_105], %314 {strides = array<i32>} : memref<108x512xbf16, #tpu.memory_space<vmem>>, vector<4x512xbf16>,
    %c439_i32 = arith.constant 439 : i32
    %316 = tpu.dynamic_rotate %1 by %c439_i32 dim 1 : vector<4x512xf32>, i32 -> vector<4x512xf32>
    %c7_i32_106 = arith.constant 7 : i32
    %317 = vector.broadcast %c7_i32_106 : i32 to vector<1x512xi32>
    %318 = arith.cmpi slt, %4, %317 : vector<1x512xi32>
    %c7_i32_107 = arith.constant 7 : i32
    %319 = vector.broadcast %c7_i32_107 : i32 to vector<1x512xi32>
    %320 = arith.cmpi slt, %8, %319 : vector<1x512xi32>
    %c7_i32_108 = arith.constant 7 : i32
    %321 = vector.broadcast %c7_i32_108 : i32 to vector<1x512xi32>
    %322 = arith.cmpi slt, %10, %321 : vector<1x512xi32>
    %323 = arith.andi %318, %320 : vector<1x512xi1>
    %324 = arith.andi %323, %322 : vector<1x512xi1>
    %cst_109 = arith.constant 0.000000e+00 : f32
    %325 = vector.shape_cast %324 : vector<1x512xi1> to vector<1x512xi1>
    %326 = vector.broadcast %325 : vector<1x512xi1> to vector<4x512xi1>
    %327 = vector.broadcast %cst_109 : f32 to vector<4x512xf32>
    %328 = arith.select %326, %316, %327 : vector<4x512xi1>, vector<4x512xf32>
    %329 = arith.truncf %328 : vector<4x512xf32> to vector<4x512xbf16>
    %c104 = arith.constant 104 : index
    %c0_110 = arith.constant 0 : index
    %330 = vector.load %arg6[%c104, %c0_110] : memref<108x512xbf16, #tpu.memory_space<vmem>>, vector<4x512xbf16>
    tpu.vector_store %arg6[%c104, %c0_110], %329 {strides = array<i32>} : memref<108x512xbf16, #tpu.memory_space<vmem>>, vector<4x512xbf16>,
    %c0_111 = arith.constant 0 : index
    %c0_112 = arith.constant 0 : index
    %331 = vector.load %arg2[%c0_111, %c0_112] : memref<8x108xbf16, #tpu.memory_space<vmem>>, vector<8x108xbf16>
    %c0_113 = arith.constant 0 : index
    %c0_114 = arith.constant 0 : index
    %332 = vector.load %arg6[%c0_113, %c0_114] : memref<108x512xbf16, #tpu.memory_space<vmem>>, vector<108x512xbf16>
    %cst_115 = arith.constant dense<0.000000e+00> : vector<8x512xf32>
    %333 = tpu.matmul %331, %332, %cst_115 {dimension_numbers = #tpu.dot_dimension_numbers<[1], [0], [0], [1], [0, 0, 1, 1], [], []>} : vector<8x108xbf16>, vector<108x512xbf16>, vector<8x512xf32> -> vector<8x512xf32>
    %cst_116 = arith.constant dense<0.000000e+00> : vector<8xf32>
    %334 = vector.multi_reduction <add>, %333, %cst_116 [1] : vector<8x512xf32> to vector<8xf32>
    %335 = vector.shape_cast %334 : vector<8xf32> to vector<8x1xf32>
    %cst_117 = arith.constant 5.120000e+02 : f32
    %336 = vector.broadcast %cst_117 : f32 to vector<8x1xf32>
    %337 = arith.divf %335, %336 : vector<8x1xf32>
    %338 = vector.broadcast %337 : vector<8x1xf32> to vector<8x512xf32>
    %339 = arith.subf %333, %338 : vector<8x512xf32>
    %340 = arith.mulf %339, %339 : vector<8x512xf32>
    %cst_118 = arith.constant dense<0.000000e+00> : vector<8xf32>
    %341 = vector.multi_reduction <add>, %340, %cst_118 [1] : vector<8x512xf32> to vector<8xf32>
    %342 = vector.shape_cast %341 : vector<8xf32> to vector<8x1xf32>
    %cst_119 = arith.constant 5.120000e+02 : f32
    %343 = vector.broadcast %cst_119 : f32 to vector<8x1xf32>
    %344 = arith.divf %342, %343 : vector<8x1xf32>
    %345 = vector.broadcast %337 : vector<8x1xf32> to vector<8x512xf32>
    %346 = arith.subf %333, %345 : vector<8x512xf32>
    %cst_120 = arith.constant 9.99999974E-6 : f32
    %347 = vector.broadcast %cst_120 : f32 to vector<8x1xf32>
    %348 = arith.addf %344, %347 : vector<8x1xf32>
    %349 = math.rsqrt %348 : vector<8x1xf32>
    %350 = vector.broadcast %349 : vector<8x1xf32> to vector<8x512xf32>
    %351 = arith.mulf %346, %350 : vector<8x512xf32>
    %cst_121 = arith.constant 0.000000e+00 : f32
    %352 = vector.broadcast %cst_121 : f32 to vector<8x512xf32>
    %353 = arith.maximumf %351, %352 : vector<8x512xf32>
    %c73_i32_122 = arith.constant 73 : i32
    %354 = tpu.dynamic_rotate %353 by %c73_i32_122 dim 1 : vector<8x512xf32>, i32 -> vector<8x512xf32>
    %c1_i32_123 = arith.constant 1 : i32
    %355 = vector.broadcast %c1_i32_123 : i32 to vector<1x512xi32>
    %356 = arith.cmpi sge, %4, %355 : vector<1x512xi32>
    %c1_i32_124 = arith.constant 1 : i32
    %357 = vector.broadcast %c1_i32_124 : i32 to vector<1x512xi32>
    %358 = arith.cmpi sge, %8, %357 : vector<1x512xi32>
    %c1_i32_125 = arith.constant 1 : i32
    %359 = vector.broadcast %c1_i32_125 : i32 to vector<1x512xi32>
    %360 = arith.cmpi sge, %10, %359 : vector<1x512xi32>
    %361 = arith.andi %356, %358 : vector<1x512xi1>
    %362 = arith.andi %361, %360 : vector<1x512xi1>
    %cst_126 = arith.constant 0.000000e+00 : f32
    %363 = vector.shape_cast %362 : vector<1x512xi1> to vector<1x512xi1>
    %364 = vector.broadcast %363 : vector<1x512xi1> to vector<8x512xi1>
    %365 = vector.broadcast %cst_126 : f32 to vector<8x512xf32>
    %366 = arith.select %364, %354, %365 : vector<8x512xi1>, vector<8x512xf32>
    %367 = arith.truncf %366 : vector<8x512xf32> to vector<8x512xbf16>
    %c0_127 = arith.constant 0 : index
    %c0_128 = arith.constant 0 : index
    %368 = vector.load %arg7[%c0_127, %c0_128] : memref<216x512xbf16, #tpu.memory_space<vmem>>, vector<8x512xbf16>
    tpu.vector_store %arg7[%c0_127, %c0_128], %367 {strides = array<i32>} : memref<216x512xbf16, #tpu.memory_space<vmem>>, vector<8x512xbf16>,
    %c72_i32_129 = arith.constant 72 : i32
    %369 = tpu.dynamic_rotate %353 by %c72_i32_129 dim 1 : vector<8x512xf32>, i32 -> vector<8x512xf32>
    %c1_i32_130 = arith.constant 1 : i32
    %370 = vector.broadcast %c1_i32_130 : i32 to vector<1x512xi32>
    %371 = arith.cmpi sge, %4, %370 : vector<1x512xi32>
    %c1_i32_131 = arith.constant 1 : i32
    %372 = vector.broadcast %c1_i32_131 : i32 to vector<1x512xi32>
    %373 = arith.cmpi sge, %8, %372 : vector<1x512xi32>
    %374 = arith.andi %371, %373 : vector<1x512xi1>
    %cst_132 = arith.constant 0.000000e+00 : f32
    %375 = vector.shape_cast %374 : vector<1x512xi1> to vector<1x512xi1>
    %376 = vector.broadcast %375 : vector<1x512xi1> to vector<8x512xi1>
    %377 = vector.broadcast %cst_132 : f32 to vector<8x512xf32>
    %378 = arith.select %376, %369, %377 : vector<8x512xi1>, vector<8x512xf32>
    %379 = arith.truncf %378 : vector<8x512xf32> to vector<8x512xbf16>
    %c8_133 = arith.constant 8 : index
    %c0_134 = arith.constant 0 : index
    %380 = vector.load %arg7[%c8_133, %c0_134] : memref<216x512xbf16, #tpu.memory_space<vmem>>, vector<8x512xbf16>
    tpu.vector_store %arg7[%c8_133, %c0_134], %379 {strides = array<i32>} : memref<216x512xbf16, #tpu.memory_space<vmem>>, vector<8x512xbf16>,
    %c71_i32_135 = arith.constant 71 : i32
    %381 = tpu.dynamic_rotate %353 by %c71_i32_135 dim 1 : vector<8x512xf32>, i32 -> vector<8x512xf32>
    %c1_i32_136 = arith.constant 1 : i32
    %382 = vector.broadcast %c1_i32_136 : i32 to vector<1x512xi32>
    %383 = arith.cmpi sge, %4, %382 : vector<1x512xi32>
    %c1_i32_137 = arith.constant 1 : i32
    %384 = vector.broadcast %c1_i32_137 : i32 to vector<1x512xi32>
    %385 = arith.cmpi sge, %8, %384 : vector<1x512xi32>
    %c7_i32_138 = arith.constant 7 : i32
    %386 = vector.broadcast %c7_i32_138 : i32 to vector<1x512xi32>
    %387 = arith.cmpi slt, %10, %386 : vector<1x512xi32>
    %388 = arith.andi %383, %385 : vector<1x512xi1>
    %389 = arith.andi %388, %387 : vector<1x512xi1>
    %cst_139 = arith.constant 0.000000e+00 : f32
    %390 = vector.shape_cast %389 : vector<1x512xi1> to vector<1x512xi1>
    %391 = vector.broadcast %390 : vector<1x512xi1> to vector<8x512xi1>
    %392 = vector.broadcast %cst_139 : f32 to vector<8x512xf32>
    %393 = arith.select %391, %381, %392 : vector<8x512xi1>, vector<8x512xf32>
    %394 = arith.truncf %393 : vector<8x512xf32> to vector<8x512xbf16>
    %c16_140 = arith.constant 16 : index
    %c0_141 = arith.constant 0 : index
    %395 = vector.load %arg7[%c16_140, %c0_141] : memref<216x512xbf16, #tpu.memory_space<vmem>>, vector<8x512xbf16>
    tpu.vector_store %arg7[%c16_140, %c0_141], %394 {strides = array<i32>} : memref<216x512xbf16, #tpu.memory_space<vmem>>, vector<8x512xbf16>,
    %c65_i32_142 = arith.constant 65 : i32
    %396 = tpu.dynamic_rotate %353 by %c65_i32_142 dim 1 : vector<8x512xf32>, i32 -> vector<8x512xf32>
    %c1_i32_143 = arith.constant 1 : i32
    %397 = vector.broadcast %c1_i32_143 : i32 to vector<1x512xi32>
    %398 = arith.cmpi sge, %4, %397 : vector<1x512xi32>
    %c1_i32_144 = arith.constant 1 : i32
    %399 = vector.broadcast %c1_i32_144 : i32 to vector<1x512xi32>
    %400 = arith.cmpi sge, %10, %399 : vector<1x512xi32>
    %401 = arith.andi %398, %400 : vector<1x512xi1>
    %cst_145 = arith.constant 0.000000e+00 : f32
    %402 = vector.shape_cast %401 : vector<1x512xi1> to vector<1x512xi1>
    %403 = vector.broadcast %402 : vector<1x512xi1> to vector<8x512xi1>
    %404 = vector.broadcast %cst_145 : f32 to vector<8x512xf32>
    %405 = arith.select %403, %396, %404 : vector<8x512xi1>, vector<8x512xf32>
    %406 = arith.truncf %405 : vector<8x512xf32> to vector<8x512xbf16>
    %c24_146 = arith.constant 24 : index
    %c0_147 = arith.constant 0 : index
    %407 = vector.load %arg7[%c24_146, %c0_147] : memref<216x512xbf16, #tpu.memory_space<vmem>>, vector<8x512xbf16>
    tpu.vector_store %arg7[%c24_146, %c0_147], %406 {strides = array<i32>} : memref<216x512xbf16, #tpu.memory_space<vmem>>, vector<8x512xbf16>,
    %c64_i32_148 = arith.constant 64 : i32
    %408 = tpu.dynamic_rotate %353 by %c64_i32_148 dim 1 : vector<8x512xf32>, i32 -> vector<8x512xf32>
    %c1_i32_149 = arith.constant 1 : i32
    %409 = vector.broadcast %c1_i32_149 : i32 to vector<1x512xi32>
    %410 = arith.cmpi sge, %4, %409 : vector<1x512xi32>
    %cst_150 = arith.constant 0.000000e+00 : f32
    %411 = vector.shape_cast %410 : vector<1x512xi1> to vector<1x512xi1>
    %412 = vector.broadcast %411 : vector<1x512xi1> to vector<8x512xi1>
    %413 = vector.broadcast %cst_150 : f32 to vector<8x512xf32>
    %414 = arith.select %412, %408, %413 : vector<8x512xi1>, vector<8x512xf32>
    %415 = arith.truncf %414 : vector<8x512xf32> to vector<8x512xbf16>
    %c32_151 = arith.constant 32 : index
    %c0_152 = arith.constant 0 : index
    %416 = vector.load %arg7[%c32_151, %c0_152] : memref<216x512xbf16, #tpu.memory_space<vmem>>, vector<8x512xbf16>
    tpu.vector_store %arg7[%c32_151, %c0_152], %415 {strides = array<i32>} : memref<216x512xbf16, #tpu.memory_space<vmem>>, vector<8x512xbf16>,
    %c63_i32_153 = arith.constant 63 : i32
    %417 = tpu.dynamic_rotate %353 by %c63_i32_153 dim 1 : vector<8x512xf32>, i32 -> vector<8x512xf32>
    %c1_i32_154 = arith.constant 1 : i32
    %418 = vector.broadcast %c1_i32_154 : i32 to vector<1x512xi32>
    %419 = arith.cmpi sge, %4, %418 : vector<1x512xi32>
    %c7_i32_155 = arith.constant 7 : i32
    %420 = vector.broadcast %c7_i32_155 : i32 to vector<1x512xi32>
    %421 = arith.cmpi slt, %10, %420 : vector<1x512xi32>
    %422 = arith.andi %419, %421 : vector<1x512xi1>
    %cst_156 = arith.constant 0.000000e+00 : f32
    %423 = vector.shape_cast %422 : vector<1x512xi1> to vector<1x512xi1>
    %424 = vector.broadcast %423 : vector<1x512xi1> to vector<8x512xi1>
    %425 = vector.broadcast %cst_156 : f32 to vector<8x512xf32>
    %426 = arith.select %424, %417, %425 : vector<8x512xi1>, vector<8x512xf32>
    %427 = arith.truncf %426 : vector<8x512xf32> to vector<8x512xbf16>
    %c40_157 = arith.constant 40 : index
    %c0_158 = arith.constant 0 : index
    %428 = vector.load %arg7[%c40_157, %c0_158] : memref<216x512xbf16, #tpu.memory_space<vmem>>, vector<8x512xbf16>
    tpu.vector_store %arg7[%c40_157, %c0_158], %427 {strides = array<i32>} : memref<216x512xbf16, #tpu.memory_space<vmem>>, vector<8x512xbf16>,
    %c57_i32_159 = arith.constant 57 : i32
    %429 = tpu.dynamic_rotate %353 by %c57_i32_159 dim 1 : vector<8x512xf32>, i32 -> vector<8x512xf32>
    %c1_i32_160 = arith.constant 1 : i32
    %430 = vector.broadcast %c1_i32_160 : i32 to vector<1x512xi32>
    %431 = arith.cmpi sge, %4, %430 : vector<1x512xi32>
    %c7_i32_161 = arith.constant 7 : i32
    %432 = vector.broadcast %c7_i32_161 : i32 to vector<1x512xi32>
    %433 = arith.cmpi slt, %8, %432 : vector<1x512xi32>
    %c1_i32_162 = arith.constant 1 : i32
    %434 = vector.broadcast %c1_i32_162 : i32 to vector<1x512xi32>
    %435 = arith.cmpi sge, %10, %434 : vector<1x512xi32>
    %436 = arith.andi %431, %433 : vector<1x512xi1>
    %437 = arith.andi %436, %435 : vector<1x512xi1>
    %cst_163 = arith.constant 0.000000e+00 : f32
    %438 = vector.shape_cast %437 : vector<1x512xi1> to vector<1x512xi1>
    %439 = vector.broadcast %438 : vector<1x512xi1> to vector<8x512xi1>
    %440 = vector.broadcast %cst_163 : f32 to vector<8x512xf32>
    %441 = arith.select %439, %429, %440 : vector<8x512xi1>, vector<8x512xf32>
    %442 = arith.truncf %441 : vector<8x512xf32> to vector<8x512xbf16>
    %c48_164 = arith.constant 48 : index
    %c0_165 = arith.constant 0 : index
    %443 = vector.load %arg7[%c48_164, %c0_165] : memref<216x512xbf16, #tpu.memory_space<vmem>>, vector<8x512xbf16>
    tpu.vector_store %arg7[%c48_164, %c0_165], %442 {strides = array<i32>} : memref<216x512xbf16, #tpu.memory_space<vmem>>, vector<8x512xbf16>,
    %c56_i32_166 = arith.constant 56 : i32
    %444 = tpu.dynamic_rotate %353 by %c56_i32_166 dim 1 : vector<8x512xf32>, i32 -> vector<8x512xf32>
    %c1_i32_167 = arith.constant 1 : i32
    %445 = vector.broadcast %c1_i32_167 : i32 to vector<1x512xi32>
    %446 = arith.cmpi sge, %4, %445 : vector<1x512xi32>
    %c7_i32_168 = arith.constant 7 : i32
    %447 = vector.broadcast %c7_i32_168 : i32 to vector<1x512xi32>
    %448 = arith.cmpi slt, %8, %447 : vector<1x512xi32>
    %449 = arith.andi %446, %448 : vector<1x512xi1>
    %cst_169 = arith.constant 0.000000e+00 : f32
    %450 = vector.shape_cast %449 : vector<1x512xi1> to vector<1x512xi1>
    %451 = vector.broadcast %450 : vector<1x512xi1> to vector<8x512xi1>
    %452 = vector.broadcast %cst_169 : f32 to vector<8x512xf32>
    %453 = arith.select %451, %444, %452 : vector<8x512xi1>, vector<8x512xf32>
    %454 = arith.truncf %453 : vector<8x512xf32> to vector<8x512xbf16>
    %c56_170 = arith.constant 56 : index
    %c0_171 = arith.constant 0 : index
    %455 = vector.load %arg7[%c56_170, %c0_171] : memref<216x512xbf16, #tpu.memory_space<vmem>>, vector<8x512xbf16>
    tpu.vector_store %arg7[%c56_170, %c0_171], %454 {strides = array<i32>} : memref<216x512xbf16, #tpu.memory_space<vmem>>, vector<8x512xbf16>,
    %c55_i32_172 = arith.constant 55 : i32
    %456 = tpu.dynamic_rotate %353 by %c55_i32_172 dim 1 : vector<8x512xf32>, i32 -> vector<8x512xf32>
    %c1_i32_173 = arith.constant 1 : i32
    %457 = vector.broadcast %c1_i32_173 : i32 to vector<1x512xi32>
    %458 = arith.cmpi sge, %4, %457 : vector<1x512xi32>
    %c7_i32_174 = arith.constant 7 : i32
    %459 = vector.broadcast %c7_i32_174 : i32 to vector<1x512xi32>
    %460 = arith.cmpi slt, %8, %459 : vector<1x512xi32>
    %c7_i32_175 = arith.constant 7 : i32
    %461 = vector.broadcast %c7_i32_175 : i32 to vector<1x512xi32>
    %462 = arith.cmpi slt, %10, %461 : vector<1x512xi32>
    %463 = arith.andi %458, %460 : vector<1x512xi1>
    %464 = arith.andi %463, %462 : vector<1x512xi1>
    %cst_176 = arith.constant 0.000000e+00 : f32
    %465 = vector.shape_cast %464 : vector<1x512xi1> to vector<1x512xi1>
    %466 = vector.broadcast %465 : vector<1x512xi1> to vector<8x512xi1>
    %467 = vector.broadcast %cst_176 : f32 to vector<8x512xf32>
    %468 = arith.select %466, %456, %467 : vector<8x512xi1>, vector<8x512xf32>
    %469 = arith.truncf %468 : vector<8x512xf32> to vector<8x512xbf16>
    %c64_177 = arith.constant 64 : index
    %c0_178 = arith.constant 0 : index
    %470 = vector.load %arg7[%c64_177, %c0_178] : memref<216x512xbf16, #tpu.memory_space<vmem>>, vector<8x512xbf16>
    tpu.vector_store %arg7[%c64_177, %c0_178], %469 {strides = array<i32>} : memref<216x512xbf16, #tpu.memory_space<vmem>>, vector<8x512xbf16>,
    %c9_i32_179 = arith.constant 9 : i32
    %471 = tpu.dynamic_rotate %353 by %c9_i32_179 dim 1 : vector<8x512xf32>, i32 -> vector<8x512xf32>
    %c1_i32_180 = arith.constant 1 : i32
    %472 = vector.broadcast %c1_i32_180 : i32 to vector<1x512xi32>
    %473 = arith.cmpi sge, %8, %472 : vector<1x512xi32>
    %c1_i32_181 = arith.constant 1 : i32
    %474 = vector.broadcast %c1_i32_181 : i32 to vector<1x512xi32>
    %475 = arith.cmpi sge, %10, %474 : vector<1x512xi32>
    %476 = arith.andi %473, %475 : vector<1x512xi1>
    %cst_182 = arith.constant 0.000000e+00 : f32
    %477 = vector.shape_cast %476 : vector<1x512xi1> to vector<1x512xi1>
    %478 = vector.broadcast %477 : vector<1x512xi1> to vector<8x512xi1>
    %479 = vector.broadcast %cst_182 : f32 to vector<8x512xf32>
    %480 = arith.select %478, %471, %479 : vector<8x512xi1>, vector<8x512xf32>
    %481 = arith.truncf %480 : vector<8x512xf32> to vector<8x512xbf16>
    %c72_183 = arith.constant 72 : index
    %c0_184 = arith.constant 0 : index
    %482 = vector.load %arg7[%c72_183, %c0_184] : memref<216x512xbf16, #tpu.memory_space<vmem>>, vector<8x512xbf16>
    tpu.vector_store %arg7[%c72_183, %c0_184], %481 {strides = array<i32>} : memref<216x512xbf16, #tpu.memory_space<vmem>>, vector<8x512xbf16>,
    %c8_i32_185 = arith.constant 8 : i32
    %483 = tpu.dynamic_rotate %353 by %c8_i32_185 dim 1 : vector<8x512xf32>, i32 -> vector<8x512xf32>
    %c1_i32_186 = arith.constant 1 : i32
    %484 = vector.broadcast %c1_i32_186 : i32 to vector<1x512xi32>
    %485 = arith.cmpi sge, %8, %484 : vector<1x512xi32>
    %cst_187 = arith.constant 0.000000e+00 : f32
    %486 = vector.shape_cast %485 : vector<1x512xi1> to vector<1x512xi1>
    %487 = vector.broadcast %486 : vector<1x512xi1> to vector<8x512xi1>
    %488 = vector.broadcast %cst_187 : f32 to vector<8x512xf32>
    %489 = arith.select %487, %483, %488 : vector<8x512xi1>, vector<8x512xf32>
    %490 = arith.truncf %489 : vector<8x512xf32> to vector<8x512xbf16>
    %c80_188 = arith.constant 80 : index
    %c0_189 = arith.constant 0 : index
    %491 = vector.load %arg7[%c80_188, %c0_189] : memref<216x512xbf16, #tpu.memory_space<vmem>>, vector<8x512xbf16>
    tpu.vector_store %arg7[%c80_188, %c0_189], %490 {strides = array<i32>} : memref<216x512xbf16, #tpu.memory_space<vmem>>, vector<8x512xbf16>,
    %c7_i32_190 = arith.constant 7 : i32
    %492 = tpu.dynamic_rotate %353 by %c7_i32_190 dim 1 : vector<8x512xf32>, i32 -> vector<8x512xf32>
    %c1_i32_191 = arith.constant 1 : i32
    %493 = vector.broadcast %c1_i32_191 : i32 to vector<1x512xi32>
    %494 = arith.cmpi sge, %8, %493 : vector<1x512xi32>
    %c7_i32_192 = arith.constant 7 : i32
    %495 = vector.broadcast %c7_i32_192 : i32 to vector<1x512xi32>
    %496 = arith.cmpi slt, %10, %495 : vector<1x512xi32>
    %497 = arith.andi %494, %496 : vector<1x512xi1>
    %cst_193 = arith.constant 0.000000e+00 : f32
    %498 = vector.shape_cast %497 : vector<1x512xi1> to vector<1x512xi1>
    %499 = vector.broadcast %498 : vector<1x512xi1> to vector<8x512xi1>
    %500 = vector.broadcast %cst_193 : f32 to vector<8x512xf32>
    %501 = arith.select %499, %492, %500 : vector<8x512xi1>, vector<8x512xf32>
    %502 = arith.truncf %501 : vector<8x512xf32> to vector<8x512xbf16>
    %c88_194 = arith.constant 88 : index
    %c0_195 = arith.constant 0 : index
    %503 = vector.load %arg7[%c88_194, %c0_195] : memref<216x512xbf16, #tpu.memory_space<vmem>>, vector<8x512xbf16>
    tpu.vector_store %arg7[%c88_194, %c0_195], %502 {strides = array<i32>} : memref<216x512xbf16, #tpu.memory_space<vmem>>, vector<8x512xbf16>,
    %c1_i32_196 = arith.constant 1 : i32
    %504 = tpu.dynamic_rotate %353 by %c1_i32_196 dim 1 : vector<8x512xf32>, i32 -> vector<8x512xf32>
    %c1_i32_197 = arith.constant 1 : i32
    %505 = vector.broadcast %c1_i32_197 : i32 to vector<1x512xi32>
    %506 = arith.cmpi sge, %10, %505 : vector<1x512xi32>
    %cst_198 = arith.constant 0.000000e+00 : f32
    %507 = vector.shape_cast %506 : vector<1x512xi1> to vector<1x512xi1>
    %508 = vector.broadcast %507 : vector<1x512xi1> to vector<8x512xi1>
    %509 = vector.broadcast %cst_198 : f32 to vector<8x512xf32>
    %510 = arith.select %508, %504, %509 : vector<8x512xi1>, vector<8x512xf32>
    %511 = arith.truncf %510 : vector<8x512xf32> to vector<8x512xbf16>
    %c96_199 = arith.constant 96 : index
    %c0_200 = arith.constant 0 : index
    %512 = vector.load %arg7[%c96_199, %c0_200] : memref<216x512xbf16, #tpu.memory_space<vmem>>, vector<8x512xbf16>
    tpu.vector_store %arg7[%c96_199, %c0_200], %511 {strides = array<i32>} : memref<216x512xbf16, #tpu.memory_space<vmem>>, vector<8x512xbf16>,
    %513 = arith.truncf %353 : vector<8x512xf32> to vector<8x512xbf16>
    %c104_201 = arith.constant 104 : index
    %c0_202 = arith.constant 0 : index
    %514 = vector.load %arg7[%c104_201, %c0_202] : memref<216x512xbf16, #tpu.memory_space<vmem>>, vector<8x512xbf16>
    tpu.vector_store %arg7[%c104_201, %c0_202], %513 {strides = array<i32>} : memref<216x512xbf16, #tpu.memory_space<vmem>>, vector<8x512xbf16>,
    %c511_i32_203 = arith.constant 511 : i32
    %515 = tpu.dynamic_rotate %353 by %c511_i32_203 dim 1 : vector<8x512xf32>, i32 -> vector<8x512xf32>
    %c7_i32_204 = arith.constant 7 : i32
    %516 = vector.broadcast %c7_i32_204 : i32 to vector<1x512xi32>
    %517 = arith.cmpi slt, %10, %516 : vector<1x512xi32>
    %cst_205 = arith.constant 0.000000e+00 : f32
    %518 = vector.shape_cast %517 : vector<1x512xi1> to vector<1x512xi1>
    %519 = vector.broadcast %518 : vector<1x512xi1> to vector<8x512xi1>
    %520 = vector.broadcast %cst_205 : f32 to vector<8x512xf32>
    %521 = arith.select %519, %515, %520 : vector<8x512xi1>, vector<8x512xf32>
    %522 = arith.truncf %521 : vector<8x512xf32> to vector<8x512xbf16>
    %c112 = arith.constant 112 : index
    %c0_206 = arith.constant 0 : index
    %523 = vector.load %arg7[%c112, %c0_206] : memref<216x512xbf16, #tpu.memory_space<vmem>>, vector<8x512xbf16>
    tpu.vector_store %arg7[%c112, %c0_206], %522 {strides = array<i32>} : memref<216x512xbf16, #tpu.memory_space<vmem>>, vector<8x512xbf16>,
    %c505_i32_207 = arith.constant 505 : i32
    %524 = tpu.dynamic_rotate %353 by %c505_i32_207 dim 1 : vector<8x512xf32>, i32 -> vector<8x512xf32>
    %c7_i32_208 = arith.constant 7 : i32
    %525 = vector.broadcast %c7_i32_208 : i32 to vector<1x512xi32>
    %526 = arith.cmpi slt, %8, %525 : vector<1x512xi32>
    %c1_i32_209 = arith.constant 1 : i32
    %527 = vector.broadcast %c1_i32_209 : i32 to vector<1x512xi32>
    %528 = arith.cmpi sge, %10, %527 : vector<1x512xi32>
    %529 = arith.andi %526, %528 : vector<1x512xi1>
    %cst_210 = arith.constant 0.000000e+00 : f32
    %530 = vector.shape_cast %529 : vector<1x512xi1> to vector<1x512xi1>
    %531 = vector.broadcast %530 : vector<1x512xi1> to vector<8x512xi1>
    %532 = vector.broadcast %cst_210 : f32 to vector<8x512xf32>
    %533 = arith.select %531, %524, %532 : vector<8x512xi1>, vector<8x512xf32>
    %534 = arith.truncf %533 : vector<8x512xf32> to vector<8x512xbf16>
    %c120 = arith.constant 120 : index
    %c0_211 = arith.constant 0 : index
    %535 = vector.load %arg7[%c120, %c0_211] : memref<216x512xbf16, #tpu.memory_space<vmem>>, vector<8x512xbf16>
    tpu.vector_store %arg7[%c120, %c0_211], %534 {strides = array<i32>} : memref<216x512xbf16, #tpu.memory_space<vmem>>, vector<8x512xbf16>,
    %c504_i32_212 = arith.constant 504 : i32
    %536 = tpu.dynamic_rotate %353 by %c504_i32_212 dim 1 : vector<8x512xf32>, i32 -> vector<8x512xf32>
    %c7_i32_213 = arith.constant 7 : i32
    %537 = vector.broadcast %c7_i32_213 : i32 to vector<1x512xi32>
    %538 = arith.cmpi slt, %8, %537 : vector<1x512xi32>
    %cst_214 = arith.constant 0.000000e+00 : f32
    %539 = vector.shape_cast %538 : vector<1x512xi1> to vector<1x512xi1>
    %540 = vector.broadcast %539 : vector<1x512xi1> to vector<8x512xi1>
    %541 = vector.broadcast %cst_214 : f32 to vector<8x512xf32>
    %542 = arith.select %540, %536, %541 : vector<8x512xi1>, vector<8x512xf32>
    %543 = arith.truncf %542 : vector<8x512xf32> to vector<8x512xbf16>
    %c128 = arith.constant 128 : index
    %c0_215 = arith.constant 0 : index
    %544 = vector.load %arg7[%c128, %c0_215] : memref<216x512xbf16, #tpu.memory_space<vmem>>, vector<8x512xbf16>
    tpu.vector_store %arg7[%c128, %c0_215], %543 {strides = array<i32>} : memref<216x512xbf16, #tpu.memory_space<vmem>>, vector<8x512xbf16>,
    %c503_i32_216 = arith.constant 503 : i32
    %545 = tpu.dynamic_rotate %353 by %c503_i32_216 dim 1 : vector<8x512xf32>, i32 -> vector<8x512xf32>
    %c7_i32_217 = arith.constant 7 : i32
    %546 = vector.broadcast %c7_i32_217 : i32 to vector<1x512xi32>
    %547 = arith.cmpi slt, %8, %546 : vector<1x512xi32>
    %c7_i32_218 = arith.constant 7 : i32
    %548 = vector.broadcast %c7_i32_218 : i32 to vector<1x512xi32>
    %549 = arith.cmpi slt, %10, %548 : vector<1x512xi32>
    %550 = arith.andi %547, %549 : vector<1x512xi1>
    %cst_219 = arith.constant 0.000000e+00 : f32
    %551 = vector.shape_cast %550 : vector<1x512xi1> to vector<1x512xi1>
    %552 = vector.broadcast %551 : vector<1x512xi1> to vector<8x512xi1>
    %553 = vector.broadcast %cst_219 : f32 to vector<8x512xf32>
    %554 = arith.select %552, %545, %553 : vector<8x512xi1>, vector<8x512xf32>
    %555 = arith.truncf %554 : vector<8x512xf32> to vector<8x512xbf16>
    %c136 = arith.constant 136 : index
    %c0_220 = arith.constant 0 : index
    %556 = vector.load %arg7[%c136, %c0_220] : memref<216x512xbf16, #tpu.memory_space<vmem>>, vector<8x512xbf16>
    tpu.vector_store %arg7[%c136, %c0_220], %555 {strides = array<i32>} : memref<216x512xbf16, #tpu.memory_space<vmem>>, vector<8x512xbf16>,
    %c457_i32_221 = arith.constant 457 : i32
    %557 = tpu.dynamic_rotate %353 by %c457_i32_221 dim 1 : vector<8x512xf32>, i32 -> vector<8x512xf32>
    %c7_i32_222 = arith.constant 7 : i32
    %558 = vector.broadcast %c7_i32_222 : i32 to vector<1x512xi32>
    %559 = arith.cmpi slt, %4, %558 : vector<1x512xi32>
    %c1_i32_223 = arith.constant 1 : i32
    %560 = vector.broadcast %c1_i32_223 : i32 to vector<1x512xi32>
    %561 = arith.cmpi sge, %8, %560 : vector<1x512xi32>
    %c1_i32_224 = arith.constant 1 : i32
    %562 = vector.broadcast %c1_i32_224 : i32 to vector<1x512xi32>
    %563 = arith.cmpi sge, %10, %562 : vector<1x512xi32>
    %564 = arith.andi %559, %561 : vector<1x512xi1>
    %565 = arith.andi %564, %563 : vector<1x512xi1>
    %cst_225 = arith.constant 0.000000e+00 : f32
    %566 = vector.shape_cast %565 : vector<1x512xi1> to vector<1x512xi1>
    %567 = vector.broadcast %566 : vector<1x512xi1> to vector<8x512xi1>
    %568 = vector.broadcast %cst_225 : f32 to vector<8x512xf32>
    %569 = arith.select %567, %557, %568 : vector<8x512xi1>, vector<8x512xf32>
    %570 = arith.truncf %569 : vector<8x512xf32> to vector<8x512xbf16>
    %c144 = arith.constant 144 : index
    %c0_226 = arith.constant 0 : index
    %571 = vector.load %arg7[%c144, %c0_226] : memref<216x512xbf16, #tpu.memory_space<vmem>>, vector<8x512xbf16>
    tpu.vector_store %arg7[%c144, %c0_226], %570 {strides = array<i32>} : memref<216x512xbf16, #tpu.memory_space<vmem>>, vector<8x512xbf16>,
    %c456_i32_227 = arith.constant 456 : i32
    %572 = tpu.dynamic_rotate %353 by %c456_i32_227 dim 1 : vector<8x512xf32>, i32 -> vector<8x512xf32>
    %c7_i32_228 = arith.constant 7 : i32
    %573 = vector.broadcast %c7_i32_228 : i32 to vector<1x512xi32>
    %574 = arith.cmpi slt, %4, %573 : vector<1x512xi32>
    %c1_i32_229 = arith.constant 1 : i32
    %575 = vector.broadcast %c1_i32_229 : i32 to vector<1x512xi32>
    %576 = arith.cmpi sge, %8, %575 : vector<1x512xi32>
    %577 = arith.andi %574, %576 : vector<1x512xi1>
    %cst_230 = arith.constant 0.000000e+00 : f32
    %578 = vector.shape_cast %577 : vector<1x512xi1> to vector<1x512xi1>
    %579 = vector.broadcast %578 : vector<1x512xi1> to vector<8x512xi1>
    %580 = vector.broadcast %cst_230 : f32 to vector<8x512xf32>
    %581 = arith.select %579, %572, %580 : vector<8x512xi1>, vector<8x512xf32>
    %582 = arith.truncf %581 : vector<8x512xf32> to vector<8x512xbf16>
    %c152 = arith.constant 152 : index
    %c0_231 = arith.constant 0 : index
    %583 = vector.load %arg7[%c152, %c0_231] : memref<216x512xbf16, #tpu.memory_space<vmem>>, vector<8x512xbf16>
    tpu.vector_store %arg7[%c152, %c0_231], %582 {strides = array<i32>} : memref<216x512xbf16, #tpu.memory_space<vmem>>, vector<8x512xbf16>,
    %c455_i32_232 = arith.constant 455 : i32
    %584 = tpu.dynamic_rotate %353 by %c455_i32_232 dim 1 : vector<8x512xf32>, i32 -> vector<8x512xf32>
    %c7_i32_233 = arith.constant 7 : i32
    %585 = vector.broadcast %c7_i32_233 : i32 to vector<1x512xi32>
    %586 = arith.cmpi slt, %4, %585 : vector<1x512xi32>
    %c1_i32_234 = arith.constant 1 : i32
    %587 = vector.broadcast %c1_i32_234 : i32 to vector<1x512xi32>
    %588 = arith.cmpi sge, %8, %587 : vector<1x512xi32>
    %c7_i32_235 = arith.constant 7 : i32
    %589 = vector.broadcast %c7_i32_235 : i32 to vector<1x512xi32>
    %590 = arith.cmpi slt, %10, %589 : vector<1x512xi32>
    %591 = arith.andi %586, %588 : vector<1x512xi1>
    %592 = arith.andi %591, %590 : vector<1x512xi1>
    %cst_236 = arith.constant 0.000000e+00 : f32
    %593 = vector.shape_cast %592 : vector<1x512xi1> to vector<1x512xi1>
    %594 = vector.broadcast %593 : vector<1x512xi1> to vector<8x512xi1>
    %595 = vector.broadcast %cst_236 : f32 to vector<8x512xf32>
    %596 = arith.select %594, %584, %595 : vector<8x512xi1>, vector<8x512xf32>
    %597 = arith.truncf %596 : vector<8x512xf32> to vector<8x512xbf16>
    %c160 = arith.constant 160 : index
    %c0_237 = arith.constant 0 : index
    %598 = vector.load %arg7[%c160, %c0_237] : memref<216x512xbf16, #tpu.memory_space<vmem>>, vector<8x512xbf16>
    tpu.vector_store %arg7[%c160, %c0_237], %597 {strides = array<i32>} : memref<216x512xbf16, #tpu.memory_space<vmem>>, vector<8x512xbf16>,
    %c449_i32_238 = arith.constant 449 : i32
    %599 = tpu.dynamic_rotate %353 by %c449_i32_238 dim 1 : vector<8x512xf32>, i32 -> vector<8x512xf32>
    %c7_i32_239 = arith.constant 7 : i32
    %600 = vector.broadcast %c7_i32_239 : i32 to vector<1x512xi32>
    %601 = arith.cmpi slt, %4, %600 : vector<1x512xi32>
    %c1_i32_240 = arith.constant 1 : i32
    %602 = vector.broadcast %c1_i32_240 : i32 to vector<1x512xi32>
    %603 = arith.cmpi sge, %10, %602 : vector<1x512xi32>
    %604 = arith.andi %601, %603 : vector<1x512xi1>
    %cst_241 = arith.constant 0.000000e+00 : f32
    %605 = vector.shape_cast %604 : vector<1x512xi1> to vector<1x512xi1>
    %606 = vector.broadcast %605 : vector<1x512xi1> to vector<8x512xi1>
    %607 = vector.broadcast %cst_241 : f32 to vector<8x512xf32>
    %608 = arith.select %606, %599, %607 : vector<8x512xi1>, vector<8x512xf32>
    %609 = arith.truncf %608 : vector<8x512xf32> to vector<8x512xbf16>
    %c168 = arith.constant 168 : index
    %c0_242 = arith.constant 0 : index
    %610 = vector.load %arg7[%c168, %c0_242] : memref<216x512xbf16, #tpu.memory_space<vmem>>, vector<8x512xbf16>
    tpu.vector_store %arg7[%c168, %c0_242], %609 {strides = array<i32>} : memref<216x512xbf16, #tpu.memory_space<vmem>>, vector<8x512xbf16>,
    %c448_i32_243 = arith.constant 448 : i32
    %611 = tpu.dynamic_rotate %353 by %c448_i32_243 dim 1 : vector<8x512xf32>, i32 -> vector<8x512xf32>
    %c7_i32_244 = arith.constant 7 : i32
    %612 = vector.broadcast %c7_i32_244 : i32 to vector<1x512xi32>
    %613 = arith.cmpi slt, %4, %612 : vector<1x512xi32>
    %cst_245 = arith.constant 0.000000e+00 : f32
    %614 = vector.shape_cast %613 : vector<1x512xi1> to vector<1x512xi1>
    %615 = vector.broadcast %614 : vector<1x512xi1> to vector<8x512xi1>
    %616 = vector.broadcast %cst_245 : f32 to vector<8x512xf32>
    %617 = arith.select %615, %611, %616 : vector<8x512xi1>, vector<8x512xf32>
    %618 = arith.truncf %617 : vector<8x512xf32> to vector<8x512xbf16>
    %c176 = arith.constant 176 : index
    %c0_246 = arith.constant 0 : index
    %619 = vector.load %arg7[%c176, %c0_246] : memref<216x512xbf16, #tpu.memory_space<vmem>>, vector<8x512xbf16>
    tpu.vector_store %arg7[%c176, %c0_246], %618 {strides = array<i32>} : memref<216x512xbf16, #tpu.memory_space<vmem>>, vector<8x512xbf16>,
    %c447_i32_247 = arith.constant 447 : i32
    %620 = tpu.dynamic_rotate %353 by %c447_i32_247 dim 1 : vector<8x512xf32>, i32 -> vector<8x512xf32>
    %c7_i32_248 = arith.constant 7 : i32
    %621 = vector.broadcast %c7_i32_248 : i32 to vector<1x512xi32>
    %622 = arith.cmpi slt, %4, %621 : vector<1x512xi32>
    %c7_i32_249 = arith.constant 7 : i32
    %623 = vector.broadcast %c7_i32_249 : i32 to vector<1x512xi32>
    %624 = arith.cmpi slt, %10, %623 : vector<1x512xi32>
    %625 = arith.andi %622, %624 : vector<1x512xi1>
    %cst_250 = arith.constant 0.000000e+00 : f32
    %626 = vector.shape_cast %625 : vector<1x512xi1> to vector<1x512xi1>
    %627 = vector.broadcast %626 : vector<1x512xi1> to vector<8x512xi1>
    %628 = vector.broadcast %cst_250 : f32 to vector<8x512xf32>
    %629 = arith.select %627, %620, %628 : vector<8x512xi1>, vector<8x512xf32>
    %630 = arith.truncf %629 : vector<8x512xf32> to vector<8x512xbf16>
    %c184 = arith.constant 184 : index
    %c0_251 = arith.constant 0 : index
    %631 = vector.load %arg7[%c184, %c0_251] : memref<216x512xbf16, #tpu.memory_space<vmem>>, vector<8x512xbf16>
    tpu.vector_store %arg7[%c184, %c0_251], %630 {strides = array<i32>} : memref<216x512xbf16, #tpu.memory_space<vmem>>, vector<8x512xbf16>,
    %c441_i32_252 = arith.constant 441 : i32
    %632 = tpu.dynamic_rotate %353 by %c441_i32_252 dim 1 : vector<8x512xf32>, i32 -> vector<8x512xf32>
    %c7_i32_253 = arith.constant 7 : i32
    %633 = vector.broadcast %c7_i32_253 : i32 to vector<1x512xi32>
    %634 = arith.cmpi slt, %4, %633 : vector<1x512xi32>
    %c7_i32_254 = arith.constant 7 : i32
    %635 = vector.broadcast %c7_i32_254 : i32 to vector<1x512xi32>
    %636 = arith.cmpi slt, %8, %635 : vector<1x512xi32>
    %c1_i32_255 = arith.constant 1 : i32
    %637 = vector.broadcast %c1_i32_255 : i32 to vector<1x512xi32>
    %638 = arith.cmpi sge, %10, %637 : vector<1x512xi32>
    %639 = arith.andi %634, %636 : vector<1x512xi1>
    %640 = arith.andi %639, %638 : vector<1x512xi1>
    %cst_256 = arith.constant 0.000000e+00 : f32
    %641 = vector.shape_cast %640 : vector<1x512xi1> to vector<1x512xi1>
    %642 = vector.broadcast %641 : vector<1x512xi1> to vector<8x512xi1>
    %643 = vector.broadcast %cst_256 : f32 to vector<8x512xf32>
    %644 = arith.select %642, %632, %643 : vector<8x512xi1>, vector<8x512xf32>
    %645 = arith.truncf %644 : vector<8x512xf32> to vector<8x512xbf16>
    %c192 = arith.constant 192 : index
    %c0_257 = arith.constant 0 : index
    %646 = vector.load %arg7[%c192, %c0_257] : memref<216x512xbf16, #tpu.memory_space<vmem>>, vector<8x512xbf16>
    tpu.vector_store %arg7[%c192, %c0_257], %645 {strides = array<i32>} : memref<216x512xbf16, #tpu.memory_space<vmem>>, vector<8x512xbf16>,
    %c440_i32_258 = arith.constant 440 : i32
    %647 = tpu.dynamic_rotate %353 by %c440_i32_258 dim 1 : vector<8x512xf32>, i32 -> vector<8x512xf32>
    %c7_i32_259 = arith.constant 7 : i32
    %648 = vector.broadcast %c7_i32_259 : i32 to vector<1x512xi32>
    %649 = arith.cmpi slt, %4, %648 : vector<1x512xi32>
    %c7_i32_260 = arith.constant 7 : i32
    %650 = vector.broadcast %c7_i32_260 : i32 to vector<1x512xi32>
    %651 = arith.cmpi slt, %8, %650 : vector<1x512xi32>
    %652 = arith.andi %649, %651 : vector<1x512xi1>
    %cst_261 = arith.constant 0.000000e+00 : f32
    %653 = vector.shape_cast %652 : vector<1x512xi1> to vector<1x512xi1>
    %654 = vector.broadcast %653 : vector<1x512xi1> to vector<8x512xi1>
    %655 = vector.broadcast %cst_261 : f32 to vector<8x512xf32>
    %656 = arith.select %654, %647, %655 : vector<8x512xi1>, vector<8x512xf32>
    %657 = arith.truncf %656 : vector<8x512xf32> to vector<8x512xbf16>
    %c200 = arith.constant 200 : index
    %c0_262 = arith.constant 0 : index
    %658 = vector.load %arg7[%c200, %c0_262] : memref<216x512xbf16, #tpu.memory_space<vmem>>, vector<8x512xbf16>
    tpu.vector_store %arg7[%c200, %c0_262], %657 {strides = array<i32>} : memref<216x512xbf16, #tpu.memory_space<vmem>>, vector<8x512xbf16>,
    %c439_i32_263 = arith.constant 439 : i32
    %659 = tpu.dynamic_rotate %353 by %c439_i32_263 dim 1 : vector<8x512xf32>, i32 -> vector<8x512xf32>
    %c7_i32_264 = arith.constant 7 : i32
    %660 = vector.broadcast %c7_i32_264 : i32 to vector<1x512xi32>
    %661 = arith.cmpi slt, %4, %660 : vector<1x512xi32>
    %c7_i32_265 = arith.constant 7 : i32
    %662 = vector.broadcast %c7_i32_265 : i32 to vector<1x512xi32>
    %663 = arith.cmpi slt, %8, %662 : vector<1x512xi32>
    %c7_i32_266 = arith.constant 7 : i32
    %664 = vector.broadcast %c7_i32_266 : i32 to vector<1x512xi32>
    %665 = arith.cmpi slt, %10, %664 : vector<1x512xi32>
    %666 = arith.andi %661, %663 : vector<1x512xi1>
    %667 = arith.andi %666, %665 : vector<1x512xi1>
    %cst_267 = arith.constant 0.000000e+00 : f32
    %668 = vector.shape_cast %667 : vector<1x512xi1> to vector<1x512xi1>
    %669 = vector.broadcast %668 : vector<1x512xi1> to vector<8x512xi1>
    %670 = vector.broadcast %cst_267 : f32 to vector<8x512xf32>
    %671 = arith.select %669, %659, %670 : vector<8x512xi1>, vector<8x512xf32>
    %672 = arith.truncf %671 : vector<8x512xf32> to vector<8x512xbf16>
    %c208 = arith.constant 208 : index
    %c0_268 = arith.constant 0 : index
    %673 = vector.load %arg7[%c208, %c0_268] : memref<216x512xbf16, #tpu.memory_space<vmem>>, vector<8x512xbf16>
    tpu.vector_store %arg7[%c208, %c0_268], %672 {strides = array<i32>} : memref<216x512xbf16, #tpu.memory_space<vmem>>, vector<8x512xbf16>,
    %c0_269 = arith.constant 0 : index
    %c0_270 = arith.constant 0 : index
    %674 = vector.load %arg3[%c0_269, %c0_270] : memref<8x216xbf16, #tpu.memory_space<vmem>>, vector<8x216xbf16>
    %c0_271 = arith.constant 0 : index
    %c0_272 = arith.constant 0 : index
    %675 = vector.load %arg7[%c0_271, %c0_272] : memref<216x512xbf16, #tpu.memory_space<vmem>>, vector<216x512xbf16>
    %cst_273 = arith.constant dense<0.000000e+00> : vector<8x512xf32>
    %676 = tpu.matmul %674, %675, %cst_273 {dimension_numbers = #tpu.dot_dimension_numbers<[1], [0], [0], [1], [0, 0, 1, 1], [], []>} : vector<8x216xbf16>, vector<216x512xbf16>, vector<8x512xf32> -> vector<8x512xf32>
    %cst_274 = arith.constant dense<0.000000e+00> : vector<8xf32>
    %677 = vector.multi_reduction <add>, %676, %cst_274 [1] : vector<8x512xf32> to vector<8xf32>
    %678 = vector.shape_cast %677 : vector<8xf32> to vector<8x1xf32>
    %cst_275 = arith.constant 5.120000e+02 : f32
    %679 = vector.broadcast %cst_275 : f32 to vector<8x1xf32>
    %680 = arith.divf %678, %679 : vector<8x1xf32>
    %681 = vector.broadcast %680 : vector<8x1xf32> to vector<8x512xf32>
    %682 = arith.subf %676, %681 : vector<8x512xf32>
    %683 = arith.mulf %682, %682 : vector<8x512xf32>
    %cst_276 = arith.constant dense<0.000000e+00> : vector<8xf32>
    %684 = vector.multi_reduction <add>, %683, %cst_276 [1] : vector<8x512xf32> to vector<8xf32>
    %685 = vector.shape_cast %684 : vector<8xf32> to vector<8x1xf32>
    %cst_277 = arith.constant 5.120000e+02 : f32
    %686 = vector.broadcast %cst_277 : f32 to vector<8x1xf32>
    %687 = arith.divf %685, %686 : vector<8x1xf32>
    %688 = vector.broadcast %680 : vector<8x1xf32> to vector<8x512xf32>
    %689 = arith.subf %676, %688 : vector<8x512xf32>
    %cst_278 = arith.constant 9.99999974E-6 : f32
    %690 = vector.broadcast %cst_278 : f32 to vector<8x1xf32>
    %691 = arith.addf %687, %690 : vector<8x1xf32>
    %692 = math.rsqrt %691 : vector<8x1xf32>
    %693 = vector.broadcast %692 : vector<8x1xf32> to vector<8x512xf32>
    %694 = arith.mulf %689, %693 : vector<8x512xf32>
    %c0_279 = arith.constant 0 : index
    %c0_280 = arith.constant 0 : index
    %695 = vector.load %arg4[%c0_279, %c0_280] : memref<8x4xbf16, #tpu.memory_space<vmem>>, vector<8x4xbf16>
    %696 = arith.truncf %1 : vector<4x512xf32> to vector<4x512xbf16>
    %cst_281 = arith.constant dense<0.000000e+00> : vector<8x512xf32>
    %697 = tpu.matmul %695, %696, %cst_281 {dimension_numbers = #tpu.dot_dimension_numbers<[1], [0], [0], [1], [0, 0, 1, 1], [], []>} : vector<8x4xbf16>, vector<4x512xbf16>, vector<8x512xf32> -> vector<8x512xf32>
    %cst_282 = arith.constant dense<0.000000e+00> : vector<8xf32>
    %698 = vector.multi_reduction <add>, %697, %cst_282 [1] : vector<8x512xf32> to vector<8xf32>
    %699 = vector.shape_cast %698 : vector<8xf32> to vector<8x1xf32>
    %cst_283 = arith.constant 5.120000e+02 : f32
    %700 = vector.broadcast %cst_283 : f32 to vector<8x1xf32>
    %701 = arith.divf %699, %700 : vector<8x1xf32>
    %702 = vector.broadcast %701 : vector<8x1xf32> to vector<8x512xf32>
    %703 = arith.subf %697, %702 : vector<8x512xf32>
    %704 = arith.mulf %703, %703 : vector<8x512xf32>
    %cst_284 = arith.constant dense<0.000000e+00> : vector<8xf32>
    %705 = vector.multi_reduction <add>, %704, %cst_284 [1] : vector<8x512xf32> to vector<8xf32>
    %706 = vector.shape_cast %705 : vector<8xf32> to vector<8x1xf32>
    %cst_285 = arith.constant 5.120000e+02 : f32
    %707 = vector.broadcast %cst_285 : f32 to vector<8x1xf32>
    %708 = arith.divf %706, %707 : vector<8x1xf32>
    %709 = vector.broadcast %701 : vector<8x1xf32> to vector<8x512xf32>
    %710 = arith.subf %697, %709 : vector<8x512xf32>
    %cst_286 = arith.constant 9.99999974E-6 : f32
    %711 = vector.broadcast %cst_286 : f32 to vector<8x1xf32>
    %712 = arith.addf %708, %711 : vector<8x1xf32>
    %713 = math.rsqrt %712 : vector<8x1xf32>
    %714 = vector.broadcast %713 : vector<8x1xf32> to vector<8x512xf32>
    %715 = arith.mulf %710, %714 : vector<8x512xf32>
    %716 = arith.addf %694, %715 : vector<8x512xf32>
    %cst_287 = arith.constant 0.000000e+00 : f32
    %717 = vector.broadcast %cst_287 : f32 to vector<8x512xf32>
    %718 = arith.maximumf %716, %717 : vector<8x512xf32>
    %c0_288 = arith.constant 0 : index
    %c0_289 = arith.constant 0 : index
    %c0_290 = arith.constant 0 : index
    %719 = vector.load %arg5[%c0_288, %c0_289, %c0_290] : memref<1x8x512xf32, #tpu.memory_space<vmem>>, vector<1x8x512xf32>
    %720 = vector.shape_cast %719 : vector<1x8x512xf32> to vector<8x512xf32>
    %721 = vector.shape_cast %718 : vector<8x512xf32> to vector<1x8x512xf32>
    tpu.vector_store %arg5[%c0_288, %c0_289, %c0_290], %721 {strides = array<i32>} : memref<1x8x512xf32, #tpu.memory_space<vmem>>, vector<1x8x512xf32>,
    return
  }
  func.func @transform_0(%arg0: i32) -> (i32, i32, i32) {
    %c0_i32 = arith.constant 0 : i32
    %c0_i32_0 = arith.constant 0 : i32
    %c0_i32_1 = arith.constant 0 : i32
    return %arg0, %c0_i32, %c0_i32_0 : i32, i32, i32
  }
  func.func @transform_1(%arg0: i32) -> (i32, i32) {
    %c0_i32 = arith.constant 0 : i32
    %c0_i32_0 = arith.constant 0 : i32
    %c0_i32_1 = arith.constant 0 : i32
    return %c0_i32, %c0_i32_0 : i32, i32
  }
  func.func @transform_2(%arg0: i32) -> (i32, i32) {
    %c0_i32 = arith.constant 0 : i32
    %c0_i32_0 = arith.constant 0 : i32
    %c0_i32_1 = arith.constant 0 : i32
    return %c0_i32, %c0_i32_0 : i32, i32
  }
  func.func @transform_3(%arg0: i32) -> (i32, i32) {
    %c0_i32 = arith.constant 0 : i32
    %c0_i32_0 = arith.constant 0 : i32
    %c0_i32_1 = arith.constant 0 : i32
    return %c0_i32, %c0_i32_0 : i32, i32
  }
  func.func @transform_4(%arg0: i32) -> (i32, i32, i32) {
    %c0_i32 = arith.constant 0 : i32
    %c0_i32_0 = arith.constant 0 : i32
    %c0_i32_1 = arith.constant 0 : i32
    return %arg0, %c0_i32, %c0_i32_0 : i32, i32, i32
  }
}

</mosaic_0001>

<llo_original>
// kernel: tpu_custom_call.1
$region0: #{tpu_custom_call.1}
  #allocation0 [shape = 'u32[]', space=smem, size = 0x4, offset = 0x4, fixed_abs, tag = 'smem constant byte address 0x4 - core index']
  #allocation1 [shape = 'u32[144,128]{1,0:T(1,128)}', space=vmem, size = 0x12000, scoped, tag = 'internal scratch']
  #allocation2 [shape = 'bf16[108,512]{1,0:T(8,128)(2,1)}', space=vmem, size = 0x1c000, scoped, tag = 'scratch operand']
  #allocation3 [shape = 'bf16[216,512]{1,0:T(8,128)(2,1)}', space=vmem, size = 0x36000, scoped, tag = 'scratch operand']
  %s0 = inlined_call_operand.hbm [shape: f32[2,4,512], index: 0, kind: input, shape index: {}]
  %s1 = inlined_call_operand.hbm [shape: bf16[8,108], index: 1, kind: input, shape index: {}]
  %s2 = inlined_call_operand.vmem [shape: bf16[8,216], index: 2, kind: input, shape index: {}]
  %s3 = inlined_call_operand.vmem [shape: bf16[8,4], index: 3, kind: input, shape index: {}]
  %s4 = inlined_call_operand.hbm [shape: f32[2,8,512], index: 4, kind: output, shape index: {}]
  %s5 = sld [smem:[#allocation0]]
  $region57: #{tpu_custom_call.1} parent=0
    _
  %s7 = ssub.s32 1, %s5
  %s8 = scalar_select 0, %s7, %s5
  $region1: #{tpu_custom_call.1} parent=0
    #allocation4 [shape = 'u8[16384]{0}', space=vmem, size = 0x4000, scoped, tag = 'input window, operand 0']
    #allocation5 [shape = 's32[2]{0}', space=sflag, size = 0x8, scoped, tag = 'scoped memory for tpu_custom_call.1']
    #allocation6 [shape = 's32[2]{0}', space=sflag, size = 0x8, scoped, tag = 'scoped memory for tpu_custom_call.1']
    #allocation7 [shape = 'u8[2048]{0}', space=vmem, size = 0x800, scoped, tag = 'input window, operand 1, single buffered']
    #allocation8 [shape = 's32[1]{0}', space=sflag, size = 0x4, scoped, tag = 'scoped memory for tpu_custom_call.1']
    #allocation9 [shape = 'u8[32768]{0}', space=vmem, size = 0x8000, scoped, tag = 'output window, operand 0']
    %9 = vsyncpa [#allocation5], 0
    %s10 = scalar_lea.sflag [#allocation5], 1
    %11 = vsyncpa %s10, 0
    %12 = vsyncpa [#allocation8], 0
    %13 = vsyncpa [#allocation6], 0
    %s14 = scalar_lea.sflag [#allocation6], 1
    %15 = vsyncpa %s14, 0
    loop: start=0, step=1, limit=4
    $region2: #{tpu_custom_call.1} parent=1 // loop_pre_header
      _
    $region3: #{tpu_custom_call.1} parent=1 // loop_header
      %s17 = sphi 0, %s21
      %p18 = scmp.ge.s32.totalorder %s17, 4
      %s27 = sphi 0, %s29
      %s30 = sphi 0, %s27
      %s31 = sphi 0, %s30
      %s47 = sphi 0, %s31
      %s51 = sphi 0, %s51
      %s53 = sphi 0, %s51
      %s54 = sphi 0, %s53
      %s68 = sphi 0, %s54
      %s72 = sphi 0, %s72
      %s74 = sphi 0, %s72
      %s75 = sphi 0, %s74
      %s89 = sphi 0, %s75
      %s93 = sphi 0, %s93
      %s95 = sphi 0, %s93
      %s96 = sphi 0, %s95
      %s110 = sphi 0, %s96
      %s116 = sphi 0, %s118
      %s119 = sphi 0, %s116
      %s120 = sphi 0, %s119
      %s136 = sphi 0, %s120
    $region4: #{tpu_custom_call.1} parent=1 // loop_header_branch
      %20 = sbr.rel (%p18) target = $region8
    $region5: #{tpu_custom_call.1} parent=1 // loop_body
      %s22 = ssub.s32 %s17, 1
      %s23 = ssub.s32 %s17, 2
      %s24 = sadd.s32 %s17, 1
      %s25 = ssub.s32 %s17, %s24
      %p26 = scmp.eq.s32.totalorder %s25, 0
      %s28 = sadd.s32 %s27, 1
      %s29 = scalar_select %p26, %s27, %s28
      %p32 = pneg %p26
      %p33 = scmp.eq.s32.totalorder %s17, 1
      %p34 = por %p32, %p33
      %p35 = scmp.ne.s32.totalorder %s27, %s30
      %p36 = scmp.eq.s32.totalorder %s17, 0
      %p37 = por %p35, %p36
      %p38 = scmp.ne.s32.totalorder %s27, %s30
      %p39 = scmp.eq.s32.totalorder %s22, 1
      %p40 = por %p38, %p39
      %p41 = scmp.ne.s32.totalorder %s30, %s31
      %p42 = scmp.eq.s32.totalorder %s22, 0
      %p43 = por %p41, %p42
      %p44 = scmp.ne.s32.totalorder %s30, %s31
      %p45 = scmp.eq.s32.totalorder %s23, 1
      %p46 = por %p44, %p45
      %p48 = scmp.ne.s32.totalorder %s31, %s47
      %p49 = scmp.eq.s32.totalorder %s23, 0
      %p50 = por %p48, %p49
      %s52 = sadd.s32 %s51, 1
      %p55 = scmp.eq.s32.totalorder %s17, 1
      %p56 = scmp.ne.s32.totalorder %s51, %s53
      %p57 = scmp.eq.s32.totalorder %s17, 0
      %p58 = por %p56, %p57
      %p59 = scmp.ne.s32.totalorder %s51, %s53
      %p60 = scmp.eq.s32.totalorder %s22, 1
      %p61 = por %p59, %p60
      %p62 = scmp.ne.s32.totalorder %s53, %s54
      %p63 = scmp.eq.s32.totalorder %s22, 0
      %p64 = por %p62, %p63
      %p65 = scmp.ne.s32.totalorder %s53, %s54
      %p66 = scmp.eq.s32.totalorder %s23, 1
      %p67 = por %p65, %p66
      %p69 = scmp.ne.s32.totalorder %s54, %s68
      %p70 = scmp.eq.s32.totalorder %s23, 0
      %p71 = por %p69, %p70
      %s73 = sadd.s32 %s72, 1
      %p76 = scmp.eq.s32.totalorder %s17, 1
      %p77 = scmp.ne.s32.totalorder %s72, %s74
      %p78 = scmp.eq.s32.totalorder %s17, 0
      %p79 = por %p77, %p78
      %p80 = scmp.ne.s32.totalorder %s72, %s74
      %p81 = scmp.eq.s32.totalorder %s22, 1
      %p82 = por %p80, %p81
      %p83 = scmp.ne.s32.totalorder %s74, %s75
      %p84 = scmp.eq.s32.totalorder %s22, 0
      %p85 = por %p83, %p84
      %p86 = scmp.ne.s32.totalorder %s74, %s75
      %p87 = scmp.eq.s32.totalorder %s23, 1
      %p88 = por %p86, %p87
      %p90 = scmp.ne.s32.totalorder %s75, %s89
      %p91 = scmp.eq.s32.totalorder %s23, 0
      %p92 = por %p90, %p91
      %s94 = sadd.s32 %s93, 1
      %p97 = scmp.eq.s32.totalorder %s17, 1
      %p98 = scmp.ne.s32.totalorder %s93, %s95
      %p99 = scmp.eq.s32.totalorder %s17, 0
      %p100 = por %p98, %p99
      %p101 = scmp.ne.s32.totalorder %s93, %s95
      %p102 = scmp.eq.s32.totalorder %s22, 1
      %p103 = por %p101, %p102
      %p104 = scmp.ne.s32.totalorder %s95, %s96
      %p105 = scmp.eq.s32.totalorder %s22, 0
      %p106 = por %p104, %p105
      %p107 = scmp.ne.s32.totalorder %s95, %s96
      %p108 = scmp.eq.s32.totalorder %s23, 1
      %p109 = por %p107, %p108
      %p111 = scmp.ne.s32.totalorder %s96, %s110
      %p112 = scmp.eq.s32.totalorder %s23, 0
      %p113 = por %p111, %p112
      %s114 = ssub.s32 %s17, %s24
      %p115 = scmp.eq.s32.totalorder %s114, 0
      %s117 = sadd.s32 %s116, 1
      %s118 = scalar_select %p115, %s116, %s117
      %p121 = pneg %p115
      %p122 = scmp.eq.s32.totalorder %s17, 1
      %p123 = por %p121, %p122
      %p124 = scmp.ne.s32.totalorder %s116, %s119
      %p125 = scmp.eq.s32.totalorder %s17, 0
      %p126 = por %p124, %p125
      %p127 = scmp.ne.s32.totalorder %s116, %s119
      %p128 = scmp.eq.s32.totalorder %s22, 1
      %p129 = por %p127, %p128
      %p130 = scmp.ne.s32.totalorder %s119, %s120
      %p131 = scmp.eq.s32.totalorder %s22, 0
      %p132 = por %p130, %p131
      %p133 = scmp.ne.s32.totalorder %s119, %s120
      %p134 = scmp.eq.s32.totalorder %s23, 1
      %p135 = por %p133, %p134
      %p137 = scmp.ne.s32.totalorder %s120, %s136
      %p138 = scmp.eq.s32.totalorder %s23, 0
      %p139 = por %p137, %p138
      %p140 = scmp.le.s32.totalorder 1, %s17
      %p141 = scmp.lt.s32.totalorder %s17, 3
      %p142 = pnand %p140, %p141
      %p143 = pneg %p142
      // Predicated region
      $region9: #{tpu_custom_call.1} parent=5 // pred_check
        _
      $region10: #{tpu_custom_call.1} parent=5 // pred_check_branch
        %145 = sbr.rel (%p142) target = $region12
      $region11: #{tpu_custom_call.1} parent=5 // pred_region
        %s146 = ssub.s32 %s17, 1
        // Predicated region
        $region13: #{tpu_custom_call.1} parent=11 // pred_check
          %p147 = pneg %p64
        $region14: #{tpu_custom_call.1} parent=11 // pred_check_branch
          %149 = sbr.rel (%p147) target = $region16
        $region15: #{tpu_custom_call.1} parent=11 // pred_region
          %s151 = ssub.s32 64, 64
          %152 = vsyncadd [#allocation8], %s151
          %s154 = sshll.u32 [#allocation7], 4
          %s155 = int_to_ptr.vmem [resolvable:$true] %s154
          %157 = dma.hbm_to_vmem [thread:$0]  %s1, 64, %s155, [#allocation8]
        $region16: #{tpu_custom_call.1} parent=11 // pred_fallthru
          _
        // Predicated region
        $region17: #{tpu_custom_call.1} parent=11 // pred_check
          %p158 = pneg %p85
        $region18: #{tpu_custom_call.1} parent=11 // pred_check_branch
          %160 = sbr.rel (%p158) target = $region20
        $region19: #{tpu_custom_call.1} parent=11 // pred_region
          _
        $region20: #{tpu_custom_call.1} parent=11 // pred_fallthru
          _
        // Predicated region
        $region21: #{tpu_custom_call.1} parent=11 // pred_check
          %p161 = pneg %p106
        $region22: #{tpu_custom_call.1} parent=11 // pred_check_branch
          %163 = sbr.rel (%p161) target = $region24
        $region23: #{tpu_custom_call.1} parent=11 // pred_region
          _
        $region24: #{tpu_custom_call.1} parent=11 // pred_fallthru
          _
      $region12: #{tpu_custom_call.1} parent=5 // pred_fallthru
        _
      %p164 = scmp.lt.s32.totalorder %s17, 2
      // Predicated region
      $region25: #{tpu_custom_call.1} parent=5 // pred_check
        %p165 = pneg %p164
      $region26: #{tpu_custom_call.1} parent=5 // pred_check_branch
        %167 = sbr.rel (%p165) target = $region28
      $region27: #{tpu_custom_call.1} parent=5 // pred_region
        // Predicated region
        $region29: #{tpu_custom_call.1} parent=27 // pred_check
          %p168 = pneg %p37
        $region30: #{tpu_custom_call.1} parent=27 // pred_check_branch
          %170 = sbr.rel (%p168) target = $region32
        $region31: #{tpu_custom_call.1} parent=27 // pred_region
          %s171 = sand.u32 %s27, 1
          %s172 = scalar_lea.sflag [#allocation5], %s171
          %s173 = sand.u32 %s27, 1
          %s174 = smul.addr %s173, 16
          %s175 = scalar_lea.vmem [#allocation4], %s174
          %s177 = ssub.s32 256, 256
          %178 = vsyncadd %s172, %s177
          %s179 = smul.addr %s17, 4
          %s180 = smul.addr %s179, 64
          %s181 = scalar_lea.hbm %s0, %s180
          %s183 = sshll.u32 %s175, 4
          %s184 = int_to_ptr.vmem [resolvable:$true] %s183
          %186 = dma.hbm_to_vmem [thread:$0]  %s181, 256, %s184, %s172
        $region32: #{tpu_custom_call.1} parent=27 // pred_fallthru
          _
      $region28: #{tpu_custom_call.1} parent=5 // pred_fallthru
        _
      %p187 = scmp.le.s32.totalorder 1, %s17
      %p188 = scmp.lt.s32.totalorder %s17, 3
      %p189 = pnand %p187, %p188
      %p190 = pneg %p189
      // Predicated region
      $region33: #{tpu_custom_call.1} parent=5 // pred_check
        _
      $region34: #{tpu_custom_call.1} parent=5 // pred_check_branch
        %192 = sbr.rel (%p189) target = $region36
      $region35: #{tpu_custom_call.1} parent=5 // pred_region
        %s193 = ssub.s32 %s17, 1
        %s194 = sand.u32 %s30, 1
        %s195 = scalar_lea.sflag [#allocation5], %s194
        %s196 = sand.u32 %s30, 1
        %s197 = smul.addr %s196, 16
        %s198 = scalar_lea.vmem [#allocation4], %s197
        // Predicated region
        $region37: #{tpu_custom_call.1} parent=35 // pred_check
          %p199 = pneg %p43
        $region38: #{tpu_custom_call.1} parent=35 // pred_check_branch
          %201 = sbr.rel (%p199) target = $region40
        $region39: #{tpu_custom_call.1} parent=35 // pred_region
          %202 = dma.done %s195, 256
        $region40: #{tpu_custom_call.1} parent=35 // pred_fallthru
          _
        // Predicated region
        $region41: #{tpu_custom_call.1} parent=35 // pred_check
          %p203 = pneg %p64
        $region42: #{tpu_custom_call.1} parent=35 // pred_check_branch
          %205 = sbr.rel (%p203) target = $region44
        $region43: #{tpu_custom_call.1} parent=35 // pred_region
          %206 = dma.done [#allocation8], 64
        $region44: #{tpu_custom_call.1} parent=35 // pred_fallthru
          _
        %s207 = sand.u32 %s30, 1
        %s208 = scalar_lea.sflag [#allocation5], %s207
        %s209 = sand.u32 %s30, 1
        %s210 = smul.addr %s209, 16
        %s211 = scalar_lea.vmem [#allocation4], %s210
        %p212 = pneg %p43
        %p213 = pneg %p40
        %p214 = pneg %p64
        %p215 = pneg %p61
        %p216 = pneg %p85
        %p217 = pneg %p82
        %p218 = pneg %p106
        %p219 = pneg %p103
        %p220 = pneg %p132
        %p221 = pneg %p129
        %s222 = sand.u32 %s119, 1
        %s223 = scalar_lea.sflag [#allocation6], %s222
        %s224 = sand.u32 %s119, 1
        %s225 = smul.addr %s224, 32
        %s226 = scalar_lea.vmem [#allocation9], %s225
        %v228 = vld [vmem:[%s198] sm:$0xff]
        %v229 = vld [vmem:[%s198 + $0x8] sm:$0xff]
        %v230 = vlaneseq
        %v231 = vand.u32 %v230, 127
        %v232 = vadd.s32 %v231, 128
        %v233 = vadd.s32 %v231, 256
        %v234 = vadd.s32 %v231, 384
        %v235 = vshra.s32 %v231, 6
        %v236 = vshra.s32 %v232, 6
        %v237 = vshra.s32 %v233, 6
        %v238 = vshra.s32 %v234, 6
        %v239 = vshra.s32 %v231, 3
        %v240 = vshra.s32 %v232, 3
        %v241 = vshra.s32 %v233, 3
        %v242 = vshra.s32 %v234, 3
        %v243 = vand.u32 %v239, 7
        %v244 = vand.u32 %v240, 7
        %v245 = vand.u32 %v241, 7
        %v246 = vand.u32 %v242, 7
        %v247 = vand.u32 %v231, 7
        %v248 = vand.u32 %v232, 7
        %v249 = vand.u32 %v233, 7
        %v250 = vand.u32 %v234, 7
        %v253 = vcombine.high %v228, %v228
        %v254 = vcombine.high %v229, %v229
        %257 = vrot.lane.b32.xlu0 %v228, 73
        %v258 = vpop.permute.xlu0 %257
        %259 = vrot.lane.b32.xlu0 %v253, 73
        %v260 = vpop.permute.xlu0 %259
        %261 = vrot.lane.b32.xlu0 %v229, 73
        %v262 = vpop.permute.xlu0 %261
        %263 = vrot.lane.b32.xlu0 %v254, 73
        %v264 = vpop.permute.xlu0 %263
        %vm265 = vcmp.lt.s32.totalorder %v231, 73
        %v266 = vsel %vm265, %v262, %v264
        %v267 = vsel %vm265, %v260, %v262
        %v268 = vsel %vm265, %v258, %v260
        %v269 = vsel %vm265, %v264, %v258
        %vm270 = vcmp.ge.s32.totalorder %v235, 1
        %vm271 = vcmp.ge.s32.totalorder %v236, 1
        %vm272 = vcmp.ge.s32.totalorder %v237, 1
        %vm273 = vcmp.ge.s32.totalorder %v238, 1
        %vm274 = vcmp.ge.s32.totalorder %v243, 1
        %vm275 = vcmp.ge.s32.totalorder %v244, 1
        %vm276 = vcmp.ge.s32.totalorder %v245, 1
        %vm277 = vcmp.ge.s32.totalorder %v246, 1
        %vm278 = vcmp.ge.s32.totalorder %v247, 1
        %vm279 = vcmp.ge.s32.totalorder %v248, 1
        %vm280 = vcmp.ge.s32.totalorder %v249, 1
        %vm281 = vcmp.ge.s32.totalorder %v250, 1
        %vm282 = vmand %vm270, %vm274
        %vm283 = vmand %vm271, %vm275
        %vm284 = vmand %vm272, %vm276
        %vm285 = vmand %vm273, %vm277
        %vm286 = vmand %vm282, %vm278
        %vm287 = vmand %vm283, %vm279
        %vm288 = vmand %vm284, %vm280
        %vm289 = vmand %vm285, %vm281
        %v290 = vsel %vm286, 1, 0
        %v291 = vsel %vm287, 1, 0
        %v292 = vsel %vm288, 1, 0
        %v293 = vsel %vm289, 1, 0
        %vm294 = vcmp.eq.s32.totalorder %v290, 1
        %vm295 = vcmp.eq.s32.totalorder %v291, 1
        %vm296 = vcmp.eq.s32.totalorder %v292, 1
        %vm297 = vcmp.eq.s32.totalorder %v293, 1
        %v298 = vsel %vm294, %v269, 0.0
        %v299 = vsel %vm295, %v268, 0.0
        %v300 = vsel %vm296, %v267, 0.0
        %v301 = vsel %vm297, %v266, 0.0
        %v302 = vpack.c.bf16 %v298, %v298
        %v303 = vpack.c.bf16 %v299, %v299
        %v304 = vpack.c.bf16 %v300, %v300
        %v305 = vpack.c.bf16 %v301, %v301
        %v310 = vunpack.c.l.b16 %v302
        %v311 = vunpack.c.l.b16 %v303
        %v312 = vunpack.c.l.b16 %v304
        %v313 = vunpack.c.l.b16 %v305
        %v314 = vpack.c.b16 %v311, %v310
        %v315 = vpack.c.b16 %v313, %v312
        %318 = vst [vmem:[#allocation2] sm:$0x33] %v314
        %319 = vst [vmem:[#allocation2 + $0x8] sm:$0x33] %v315
        %320 = vrot.lane.b32.xlu0 %v228, 72
        %v321 = vpop.permute.xlu0 %320
        %322 = vrot.lane.b32.xlu0 %v253, 72
        %v323 = vpop.permute.xlu0 %322
        %324 = vrot.lane.b32.xlu0 %v229, 72
        %v325 = vpop.permute.xlu0 %324
        %326 = vrot.lane.b32.xlu0 %v254, 72
        %v327 = vpop.permute.xlu0 %326
        %vm328 = vcmp.lt.s32.totalorder %v231, 72
        %v329 = vsel %vm328, %v325, %v327
        %v330 = vsel %vm328, %v323, %v325
        %v331 = vsel %vm328, %v321, %v323
        %v332 = vsel %vm328, %v327, %v321
        %v333 = vsel %vm282, 1, 0
        %v334 = vsel %vm283, 1, 0
        %v335 = vsel %vm284, 1, 0
        %v336 = vsel %vm285, 1, 0
        %vm337 = vcmp.eq.s32.totalorder %v333, 1
        %vm338 = vcmp.eq.s32.totalorder %v334, 1
        %vm339 = vcmp.eq.s32.totalorder %v335, 1
        %vm340 = vcmp.eq.s32.totalorder %v336, 1
        %v341 = vsel %vm337, %v332, 0.0
        %v342 = vsel %vm338, %v331, 0.0
        %v343 = vsel %vm339, %v330, 0.0
        %v344 = vsel %vm340, %v329, 0.0
        %v345 = vpack.c.bf16 %v341, %v341
        %v346 = vpack.c.bf16 %v342, %v342
        %v347 = vpack.c.bf16 %v343, %v343
        %v348 = vpack.c.bf16 %v344, %v344
        %v353 = vunpack.c.l.b16 %v345
        %v354 = vunpack.c.l.b16 %v346
        %v355 = vunpack.c.l.b16 %v347
        %v356 = vunpack.c.l.b16 %v348
        %v357 = vpack.c.b16 %v354, %v353
        %v358 = vpack.c.b16 %v356, %v355
        %v359 = vrot.slane %v357, 6
        %v360 = vrot.slane %v358, 6
        %363 = vst [vmem:[#allocation2] sm:$0xcc] %v359
        %364 = vst [vmem:[#allocation2 + $0x8] sm:$0xcc] %v360
        %365 = vrot.lane.b32.xlu0 %v228, 71
        %v366 = vpop.permute.xlu0 %365
        %367 = vrot.lane.b32.xlu0 %v253, 71
        %v368 = vpop.permute.xlu0 %367
        %369 = vrot.lane.b32.xlu0 %v229, 71
        %v370 = vpop.permute.xlu0 %369
        %371 = vrot.lane.b32.xlu0 %v254, 71
        %v372 = vpop.permute.xlu0 %371
        %vm373 = vcmp.lt.s32.totalorder %v231, 71
        %v374 = vsel %vm373, %v370, %v372
        %v375 = vsel %vm373, %v368, %v370
        %v376 = vsel %vm373, %v366, %v368
        %v377 = vsel %vm373, %v372, %v366
        %vm378 = vcmp.lt.s32.totalorder %v247, 7
        %vm379 = vcmp.lt.s32.totalorder %v248, 7
        %vm380 = vcmp.lt.s32.totalorder %v249, 7
        %vm381 = vcmp.lt.s32.totalorder %v250, 7
        %vm382 = vmand %vm282, %vm378
        %vm383 = vmand %vm283, %vm379
        %vm384 = vmand %vm284, %vm380
        %vm385 = vmand %vm285, %vm381
        %v386 = vsel %vm382, 1, 0
        %v387 = vsel %vm383, 1, 0
        %v388 = vsel %vm384, 1, 0
        %v389 = vsel %vm385, 1, 0
        %vm390 = vcmp.eq.s32.totalorder %v386, 1
        %vm391 = vcmp.eq.s32.totalorder %v387, 1
        %vm392 = vcmp.eq.s32.totalorder %v388, 1
        %vm393 = vcmp.eq.s32.totalorder %v389, 1
        %v394 = vsel %vm390, %v377, 0.0
        %v395 = vsel %vm391, %v376, 0.0
        %v396 = vsel %vm392, %v375, 0.0
        %v397 = vsel %vm393, %v374, 0.0
        %v398 = vpack.c.bf16 %v394, %v394
        %v399 = vpack.c.bf16 %v395, %v395
        %v400 = vpack.c.bf16 %v396, %v396
        %v401 = vpack.c.bf16 %v397, %v397
        %v406 = vunpack.c.l.b16 %v398
        %v407 = vunpack.c.l.b16 %v399
        %v408 = vunpack.c.l.b16 %v400
        %v409 = vunpack.c.l.b16 %v401
        %v410 = vpack.c.b16 %v407, %v406
        %v411 = vpack.c.b16 %v409, %v408
        %414 = vst [vmem:[#allocation2 + $0x10] sm:$0x33] %v410
        %415 = vst [vmem:[#allocation2 + $0x18] sm:$0x33] %v411
        %416 = vrot.lane.b32.xlu0 %v228, 65
        %v417 = vpop.permute.xlu0 %416
        %418 = vrot.lane.b32.xlu0 %v253, 65
        %v419 = vpop.permute.xlu0 %418
        %420 = vrot.lane.b32.xlu0 %v229, 65
        %v421 = vpop.permute.xlu0 %420
        %422 = vrot.lane.b32.xlu0 %v254, 65
        %v423 = vpop.permute.xlu0 %422
        %vm424 = vcmp.lt.s32.totalorder %v231, 65
        %v425 = vsel %vm424, %v421, %v423
        %v426 = vsel %vm424, %v419, %v421
        %v427 = vsel %vm424, %v417, %v419
        %v428 = vsel %vm424, %v423, %v417
        %vm429 = vmand %vm270, %vm278
        %vm430 = vmand %vm271, %vm279
        %vm431 = vmand %vm272, %vm280
        %vm432 = vmand %vm273, %vm281
        %v433 = vsel %vm429, 1, 0
        %v434 = vsel %vm430, 1, 0
        %v435 = vsel %vm431, 1, 0
        %v436 = vsel %vm432, 1, 0
        %vm437 = vcmp.eq.s32.totalorder %v433, 1
        %vm438 = vcmp.eq.s32.totalorder %v434, 1
        %vm439 = vcmp.eq.s32.totalorder %v435, 1
        %vm440 = vcmp.eq.s32.totalorder %v436, 1
        %v441 = vsel %vm437, %v428, 0.0
        %v442 = vsel %vm438, %v427, 0.0
        %v443 = vsel %vm439, %v426, 0.0
        %v444 = vsel %vm440, %v425, 0.0
        %v445 = vpack.c.bf16 %v441, %v441
        %v446 = vpack.c.bf16 %v442, %v442
        %v447 = vpack.c.bf16 %v443, %v443
        %v448 = vpack.c.bf16 %v444, %v444
        %v453 = vunpack.c.l.b16 %v445
        %v454 = vunpack.c.l.b16 %v446
        %v455 = vunpack.c.l.b16 %v447
        %v456 = vunpack.c.l.b16 %v448
        %v457 = vpack.c.b16 %v454, %v453
        %v458 = vpack.c.b16 %v456, %v455
        %v459 = vrot.slane %v457, 6
        %v460 = vrot.slane %v458, 6
        %463 = vst [vmem:[#allocation2 + $0x10] sm:$0xcc] %v459
        %464 = vst [vmem:[#allocation2 + $0x18] sm:$0xcc] %v460
        %465 = vrot.lane.b32.xlu0 %v228, 64
        %v466 = vpop.permute.xlu0 %465
        %467 = vrot.lane.b32.xlu0 %v253, 64
        %v468 = vpop.permute.xlu0 %467
        %469 = vrot.lane.b32.xlu0 %v229, 64
        %v470 = vpop.permute.xlu0 %469
        %471 = vrot.lane.b32.xlu0 %v254, 64
        %v472 = vpop.permute.xlu0 %471
        %vm473 = vcmp.lt.s32.totalorder %v231, 64
        %v474 = vsel %vm473, %v470, %v472
        %v475 = vsel %vm473, %v468, %v470
        %v476 = vsel %vm473, %v466, %v468
        %v477 = vsel %vm473, %v472, %v466
        %v478 = vsel %vm270, 1, 0
        %v479 = vsel %vm271, 1, 0
        %v480 = vsel %vm272, 1, 0
        %v481 = vsel %vm273, 1, 0
        %vm482 = vcmp.eq.s32.totalorder %v478, 1
        %vm483 = vcmp.eq.s32.totalorder %v479, 1
        %vm484 = vcmp.eq.s32.totalorder %v480, 1
        %vm485 = vcmp.eq.s32.totalorder %v481, 1
        %v486 = vsel %vm482, %v477, 0.0
        %v487 = vsel %vm483, %v476, 0.0
        %v488 = vsel %vm484, %v475, 0.0
        %v489 = vsel %vm485, %v474, 0.0
        %v490 = vpack.c.bf16 %v486, %v486
        %v491 = vpack.c.bf16 %v487, %v487
        %v492 = vpack.c.bf16 %v488, %v488
        %v493 = vpack.c.bf16 %v489, %v489
        %v498 = vunpack.c.l.b16 %v490
        %v499 = vunpack.c.l.b16 %v491
        %v500 = vunpack.c.l.b16 %v492
        %v501 = vunpack.c.l.b16 %v493
        %v502 = vpack.c.b16 %v499, %v498
        %v503 = vpack.c.b16 %v501, %v500
        %506 = vst [vmem:[#allocation2 + $0x20] sm:$0x33] %v502
        %507 = vst [vmem:[#allocation2 + $0x28] sm:$0x33] %v503
        %508 = vrot.lane.b32.xlu0 %v228, 63
        %v509 = vpop.permute.xlu0 %508
        %510 = vrot.lane.b32.xlu0 %v253, 63
        %v511 = vpop.permute.xlu0 %510
        %512 = vrot.lane.b32.xlu0 %v229, 63
        %v513 = vpop.permute.xlu0 %512
        %514 = vrot.lane.b32.xlu0 %v254, 63
        %v515 = vpop.permute.xlu0 %514
        %vm516 = vcmp.lt.s32.totalorder %v231, 63
        %v517 = vsel %vm516, %v513, %v515
        %v518 = vsel %vm516, %v511, %v513
        %v519 = vsel %vm516, %v509, %v511
        %v520 = vsel %vm516, %v515, %v509
        %vm521 = vmand %vm270, %vm378
        %vm522 = vmand %vm271, %vm379
        %vm523 = vmand %vm272, %vm380
        %vm524 = vmand %vm273, %vm381
        %v525 = vsel %vm521, 1, 0
        %v526 = vsel %vm522, 1, 0
        %v527 = vsel %vm523, 1, 0
        %v528 = vsel %vm524, 1, 0
        %vm529 = vcmp.eq.s32.totalorder %v525, 1
        %vm530 = vcmp.eq.s32.totalorder %v526, 1
        %vm531 = vcmp.eq.s32.totalorder %v527, 1
        %vm532 = vcmp.eq.s32.totalorder %v528, 1
        %v533 = vsel %vm529, %v520, 0.0
        %v534 = vsel %vm530, %v519, 0.0
        %v535 = vsel %vm531, %v518, 0.0
        %v536 = vsel %vm532, %v517, 0.0
        %v537 = vpack.c.bf16 %v533, %v533
        %v538 = vpack.c.bf16 %v534, %v534
        %v539 = vpack.c.bf16 %v535, %v535
        %v540 = vpack.c.bf16 %v536, %v536
        %v545 = vunpack.c.l.b16 %v537
        %v546 = vunpack.c.l.b16 %v538
        %v547 = vunpack.c.l.b16 %v539
        %v548 = vunpack.c.l.b16 %v540
        %v549 = vpack.c.b16 %v546, %v545
        %v550 = vpack.c.b16 %v548, %v547
        %v551 = vrot.slane %v549, 6
        %v552 = vrot.slane %v550, 6
        %555 = vst [vmem:[#allocation2 + $0x20] sm:$0xcc] %v551
        %556 = vst [vmem:[#allocation2 + $0x28] sm:$0xcc] %v552
        %557 = vrot.lane.b32.xlu0 %v228, 57
        %v558 = vpop.permute.xlu0 %557
        %559 = vrot.lane.b32.xlu0 %v253, 57
        %v560 = vpop.permute.xlu0 %559
        %561 = vrot.lane.b32.xlu0 %v229, 57
        %v562 = vpop.permute.xlu0 %561
        %563 = vrot.lane.b32.xlu0 %v254, 57
        %v564 = vpop.permute.xlu0 %563
        %vm565 = vcmp.lt.s32.totalorder %v231, 57
        %v566 = vsel %vm565, %v562, %v564
        %v567 = vsel %vm565, %v560, %v562
        %v568 = vsel %vm565, %v558, %v560
        %v569 = vsel %vm565, %v564, %v558
        %vm570 = vcmp.lt.s32.totalorder %v243, 7
        %vm571 = vcmp.lt.s32.totalorder %v244, 7
        %vm572 = vcmp.lt.s32.totalorder %v245, 7
        %vm573 = vcmp.lt.s32.totalorder %v246, 7
        %vm574 = vmand %vm270, %vm570
        %vm575 = vmand %vm271, %vm571
        %vm576 = vmand %vm272, %vm572
        %vm577 = vmand %vm273, %vm573
        %vm578 = vmand %vm574, %vm278
        %vm579 = vmand %vm575, %vm279
        %vm580 = vmand %vm576, %vm280
        %vm581 = vmand %vm577, %vm281
        %v582 = vsel %vm578, 1, 0
        %v583 = vsel %vm579, 1, 0
        %v584 = vsel %vm580, 1, 0
        %v585 = vsel %vm581, 1, 0
        %vm586 = vcmp.eq.s32.totalorder %v582, 1
        %vm587 = vcmp.eq.s32.totalorder %v583, 1
        %vm588 = vcmp.eq.s32.totalorder %v584, 1
        %vm589 = vcmp.eq.s32.totalorder %v585, 1
        %v590 = vsel %vm586, %v569, 0.0
        %v591 = vsel %vm587, %v568, 0.0
        %v592 = vsel %vm588, %v567, 0.0
        %v593 = vsel %vm589, %v566, 0.0
        %v594 = vpack.c.bf16 %v590, %v590
        %v595 = vpack.c.bf16 %v591, %v591
        %v596 = vpack.c.bf16 %v592, %v592
        %v597 = vpack.c.bf16 %v593, %v593
        %v602 = vunpack.c.l.b16 %v594
        %v603 = vunpack.c.l.b16 %v595
        %v604 = vunpack.c.l.b16 %v596
        %v605 = vunpack.c.l.b16 %v597
        %v606 = vpack.c.b16 %v603, %v602
        %v607 = vpack.c.b16 %v605, %v604
        %610 = vst [vmem:[#allocation2 + $0x30] sm:$0x33] %v606
        %611 = vst [vmem:[#allocation2 + $0x38] sm:$0x33] %v607
        %612 = vrot.lane.b32.xlu0 %v228, 56
        %v613 = vpop.permute.xlu0 %612
        %614 = vrot.lane.b32.xlu0 %v253, 56
        %v615 = vpop.permute.xlu0 %614
        %616 = vrot.lane.b32.xlu0 %v229, 56
        %v617 = vpop.permute.xlu0 %616
        %618 = vrot.lane.b32.xlu0 %v254, 56
        %v619 = vpop.permute.xlu0 %618
        %vm620 = vcmp.lt.s32.totalorder %v231, 56
        %v621 = vsel %vm620, %v617, %v619
        %v622 = vsel %vm620, %v615, %v617
        %v623 = vsel %vm620, %v613, %v615
        %v624 = vsel %vm620, %v619, %v613
        %v625 = vsel %vm574, 1, 0
        %v626 = vsel %vm575, 1, 0
        %v627 = vsel %vm576, 1, 0
        %v628 = vsel %vm577, 1, 0
        %vm629 = vcmp.eq.s32.totalorder %v625, 1
        %vm630 = vcmp.eq.s32.totalorder %v626, 1
        %vm631 = vcmp.eq.s32.totalorder %v627, 1
        %vm632 = vcmp.eq.s32.totalorder %v628, 1
        %v633 = vsel %vm629, %v624, 0.0
        %v634 = vsel %vm630, %v623, 0.0
        %v635 = vsel %vm631, %v622, 0.0
        %v636 = vsel %vm632, %v621, 0.0
        %v637 = vpack.c.bf16 %v633, %v633
        %v638 = vpack.c.bf16 %v634, %v634
        %v639 = vpack.c.bf16 %v635, %v635
        %v640 = vpack.c.bf16 %v636, %v636
        %v645 = vunpack.c.l.b16 %v637
        %v646 = vunpack.c.l.b16 %v638
        %v647 = vunpack.c.l.b16 %v639
        %v648 = vunpack.c.l.b16 %v640
        %v649 = vpack.c.b16 %v646, %v645
        %v650 = vpack.c.b16 %v648, %v647
        %v651 = vrot.slane %v649, 6
        %v652 = vrot.slane %v650, 6
        %655 = vst [vmem:[#allocation2 + $0x30] sm:$0xcc] %v651
        %656 = vst [vmem:[#allocation2 + $0x38] sm:$0xcc] %v652
        %657 = vrot.lane.b32.xlu0 %v228, 55
        %v658 = vpop.permute.xlu0 %657
        %659 = vrot.lane.b32.xlu0 %v253, 55
        %v660 = vpop.permute.xlu0 %659
        %661 = vrot.lane.b32.xlu0 %v229, 55
        %v662 = vpop.permute.xlu0 %661
        %663 = vrot.lane.b32.xlu0 %v254, 55
        %v664 = vpop.permute.xlu0 %663
        %vm665 = vcmp.lt.s32.totalorder %v231, 55
        %v666 = vsel %vm665, %v662, %v664
        %v667 = vsel %vm665, %v660, %v662
        %v668 = vsel %vm665, %v658, %v660
        %v669 = vsel %vm665, %v664, %v658
        %vm670 = vmand %vm574, %vm378
        %vm671 = vmand %vm575, %vm379
        %vm672 = vmand %vm576, %vm380
        %vm673 = vmand %vm577, %vm381
        %v674 = vsel %vm670, 1, 0
        %v675 = vsel %vm671, 1, 0
        %v676 = vsel %vm672, 1, 0
        %v677 = vsel %vm673, 1, 0
        %vm678 = vcmp.eq.s32.totalorder %v674, 1
        %vm679 = vcmp.eq.s32.totalorder %v675, 1
        %vm680 = vcmp.eq.s32.totalorder %v676, 1
        %vm681 = vcmp.eq.s32.totalorder %v677, 1
        %v682 = vsel %vm678, %v669, 0.0
        %v683 = vsel %vm679, %v668, 0.0
        %v684 = vsel %vm680, %v667, 0.0
        %v685 = vsel %vm681, %v666, 0.0
        %v686 = vpack.c.bf16 %v682, %v682
        %v687 = vpack.c.bf16 %v683, %v683
        %v688 = vpack.c.bf16 %v684, %v684
        %v689 = vpack.c.bf16 %v685, %v685
        %v694 = vunpack.c.l.b16 %v686
        %v695 = vunpack.c.l.b16 %v687
        %v696 = vunpack.c.l.b16 %v688
        %v697 = vunpack.c.l.b16 %v689
        %v698 = vpack.c.b16 %v695, %v694
        %v699 = vpack.c.b16 %v697, %v696
        %702 = vst [vmem:[#allocation2 + $0x40] sm:$0x33] %v698
        %703 = vst [vmem:[#allocation2 + $0x48] sm:$0x33] %v699
        %704 = vrot.lane.b32.xlu0 %v228, 9
        %v705 = vpop.permute.xlu0 %704
        %706 = vrot.lane.b32.xlu0 %v253, 9
        %v707 = vpop.permute.xlu0 %706
        %708 = vrot.lane.b32.xlu0 %v229, 9
        %v709 = vpop.permute.xlu0 %708
        %710 = vrot.lane.b32.xlu0 %v254, 9
        %v711 = vpop.permute.xlu0 %710
        %vm712 = vcmp.lt.s32.totalorder %v231, 9
        %v713 = vsel %vm712, %v709, %v711
        %v714 = vsel %vm712, %v707, %v709
        %v715 = vsel %vm712, %v705, %v707
        %v716 = vsel %vm712, %v711, %v705
        %vm717 = vmand %vm274, %vm278
        %vm718 = vmand %vm275, %vm279
        %vm719 = vmand %vm276, %vm280
        %vm720 = vmand %vm277, %vm281
        %v721 = vsel %vm717, 1, 0
        %v722 = vsel %vm718, 1, 0
        %v723 = vsel %vm719, 1, 0
        %v724 = vsel %vm720, 1, 0
        %vm725 = vcmp.eq.s32.totalorder %v721, 1
        %vm726 = vcmp.eq.s32.totalorder %v722, 1
        %vm727 = vcmp.eq.s32.totalorder %v723, 1
        %vm728 = vcmp.eq.s32.totalorder %v724, 1
        %v729 = vsel %vm725, %v716, 0.0
        %v730 = vsel %vm726, %v715, 0.0
        %v731 = vsel %vm727, %v714, 0.0
        %v732 = vsel %vm728, %v713, 0.0
        %v733 = vpack.c.bf16 %v729, %v729
        %v734 = vpack.c.bf16 %v730, %v730
        %v735 = vpack.c.bf16 %v731, %v731
        %v736 = vpack.c.bf16 %v732, %v732
        %v741 = vunpack.c.l.b16 %v733
        %v742 = vunpack.c.l.b16 %v734
        %v743 = vunpack.c.l.b16 %v735
        %v744 = vunpack.c.l.b16 %v736
        %v745 = vpack.c.b16 %v742, %v741
        %v746 = vpack.c.b16 %v744, %v743
        %v747 = vrot.slane %v745, 6
        %v748 = vrot.slane %v746, 6
        %751 = vst [vmem:[#allocation2 + $0x40] sm:$0xcc] %v747
        %752 = vst [vmem:[#allocation2 + $0x48] sm:$0xcc] %v748
        %753 = vrot.lane.b32.xlu0 %v228, 8
        %v754 = vpop.permute.xlu0 %753
        %755 = vrot.lane.b32.xlu0 %v253, 8
        %v756 = vpop.permute.xlu0 %755
        %757 = vrot.lane.b32.xlu0 %v229, 8
        %v758 = vpop.permute.xlu0 %757
        %759 = vrot.lane.b32.xlu0 %v254, 8
        %v760 = vpop.permute.xlu0 %759
        %vm761 = vcmp.lt.s32.totalorder %v231, 8
        %v762 = vsel %vm761, %v758, %v760
        %v763 = vsel %vm761, %v756, %v758
        %v764 = vsel %vm761, %v754, %v756
        %v765 = vsel %vm761, %v760, %v754
        %v766 = vsel %vm274, 1, 0
        %v767 = vsel %vm275, 1, 0
        %v768 = vsel %vm276, 1, 0
        %v769 = vsel %vm277, 1, 0
        %vm770 = vcmp.eq.s32.totalorder %v766, 1
        %vm771 = vcmp.eq.s32.totalorder %v767, 1
        %vm772 = vcmp.eq.s32.totalorder %v768, 1
        %vm773 = vcmp.eq.s32.totalorder %v769, 1
        %v774 = vsel %vm770, %v765, 0.0
        %v775 = vsel %vm771, %v764, 0.0
        %v776 = vsel %vm772, %v763, 0.0
        %v777 = vsel %vm773, %v762, 0.0
        %v778 = vpack.c.bf16 %v774, %v774
        %v779 = vpack.c.bf16 %v775, %v775
        %v780 = vpack.c.bf16 %v776, %v776
        %v781 = vpack.c.bf16 %v777, %v777
        %v786 = vunpack.c.l.b16 %v778
        %v787 = vunpack.c.l.b16 %v779
        %v788 = vunpack.c.l.b16 %v780
        %v789 = vunpack.c.l.b16 %v781
        %v790 = vpack.c.b16 %v787, %v786
        %v791 = vpack.c.b16 %v789, %v788
        %794 = vst [vmem:[#allocation2 + $0x50] sm:$0x33] %v790
        %795 = vst [vmem:[#allocation2 + $0x58] sm:$0x33] %v791
        %796 = vrot.lane.b32.xlu0 %v228, 7
        %v797 = vpop.permute.xlu0 %796
        %798 = vrot.lane.b32.xlu0 %v253, 7
        %v799 = vpop.permute.xlu0 %798
        %800 = vrot.lane.b32.xlu0 %v229, 7
        %v801 = vpop.permute.xlu0 %800
        %802 = vrot.lane.b32.xlu0 %v254, 7
        %v803 = vpop.permute.xlu0 %802
        %vm804 = vcmp.lt.s32.totalorder %v231, 7
        %v805 = vsel %vm804, %v801, %v803
        %v806 = vsel %vm804, %v799, %v801
        %v807 = vsel %vm804, %v797, %v799
        %v808 = vsel %vm804, %v803, %v797
        %vm809 = vmand %vm274, %vm378
        %vm810 = vmand %vm275, %vm379
        %vm811 = vmand %vm276, %vm380
        %vm812 = vmand %vm277, %vm381
        %v813 = vsel %vm809, 1, 0
        %v814 = vsel %vm810, 1, 0
        %v815 = vsel %vm811, 1, 0
        %v816 = vsel %vm812, 1, 0
        %vm817 = vcmp.eq.s32.totalorder %v813, 1
        %vm818 = vcmp.eq.s32.totalorder %v814, 1
        %vm819 = vcmp.eq.s32.totalorder %v815, 1
        %vm820 = vcmp.eq.s32.totalorder %v816, 1
        %v821 = vsel %vm817, %v808, 0.0
        %v822 = vsel %vm818, %v807, 0.0
        %v823 = vsel %vm819, %v806, 0.0
        %v824 = vsel %vm820, %v805, 0.0
        %v825 = vpack.c.bf16 %v821, %v821
        %v826 = vpack.c.bf16 %v822, %v822
        %v827 = vpack.c.bf16 %v823, %v823
        %v828 = vpack.c.bf16 %v824, %v824
        %v833 = vunpack.c.l.b16 %v825
        %v834 = vunpack.c.l.b16 %v826
        %v835 = vunpack.c.l.b16 %v827
        %v836 = vunpack.c.l.b16 %v828
        %v837 = vpack.c.b16 %v834, %v833
        %v838 = vpack.c.b16 %v836, %v835
        %v839 = vrot.slane %v837, 6
        %v840 = vrot.slane %v838, 6
        %843 = vst [vmem:[#allocation2 + $0x50] sm:$0xcc] %v839
        %844 = vst [vmem:[#allocation2 + $0x58] sm:$0xcc] %v840
        %845 = vrot.lane.b32.xlu0 %v228, 1
        %v846 = vpop.permute.xlu0 %845
        %847 = vrot.lane.b32.xlu0 %v253, 1
        %v848 = vpop.permute.xlu0 %847
        %849 = vrot.lane.b32.xlu0 %v229, 1
        %v850 = vpop.permute.xlu0 %849
        %851 = vrot.lane.b32.xlu0 %v254, 1
        %v852 = vpop.permute.xlu0 %851
        %vm853 = vcmp.lt.s32.totalorder %v231, 1
        %v854 = vsel %vm853, %v850, %v852
        %v855 = vsel %vm853, %v848, %v850
        %v856 = vsel %vm853, %v846, %v848
        %v857 = vsel %vm853, %v852, %v846
        %v858 = vsel %vm278, 1, 0
        %v859 = vsel %vm279, 1, 0
        %v860 = vsel %vm280, 1, 0
        %v861 = vsel %vm281, 1, 0
        %vm862 = vcmp.eq.s32.totalorder %v858, 1
        %vm863 = vcmp.eq.s32.totalorder %v859, 1
        %vm864 = vcmp.eq.s32.totalorder %v860, 1
        %vm865 = vcmp.eq.s32.totalorder %v861, 1
        %v866 = vsel %vm862, %v857, 0.0
        %v867 = vsel %vm863, %v856, 0.0
        %v868 = vsel %vm864, %v855, 0.0
        %v869 = vsel %vm865, %v854, 0.0
        %v870 = vpack.c.bf16 %v866, %v866
        %v871 = vpack.c.bf16 %v867, %v867
        %v872 = vpack.c.bf16 %v868, %v868
        %v873 = vpack.c.bf16 %v869, %v869
        %v878 = vunpack.c.l.b16 %v870
        %v879 = vunpack.c.l.b16 %v871
        %v880 = vunpack.c.l.b16 %v872
        %v881 = vunpack.c.l.b16 %v873
        %v882 = vpack.c.b16 %v879, %v878
        %v883 = vpack.c.b16 %v881, %v880
        %886 = vst [vmem:[#allocation2 + $0x60] sm:$0x33] %v882
        %887 = vst [vmem:[#allocation2 + $0x68] sm:$0x33] %v883
        %v888 = vpack.c.bf16 %v228, %v228
        %v889 = vpack.c.bf16 %v253, %v253
        %v890 = vpack.c.bf16 %v229, %v229
        %v891 = vpack.c.bf16 %v254, %v254
        %v896 = vunpack.c.l.b16 %v888
        %v897 = vunpack.c.l.b16 %v889
        %v898 = vunpack.c.l.b16 %v890
        %v899 = vunpack.c.l.b16 %v891
        %v900 = vpack.c.b16 %v897, %v896
        %v901 = vpack.c.b16 %v899, %v898
        %v902 = vrot.slane %v900, 6
        %v903 = vrot.slane %v901, 6
        %906 = vst [vmem:[#allocation2 + $0x60] sm:$0xcc] %v902
        %907 = vst [vmem:[#allocation2 + $0x68] sm:$0xcc] %v903
        %908 = vrot.lane.b32.xlu0 %v228, 127
        %v909 = vpop.permute.xlu0 %908
        %910 = vrot.lane.b32.xlu0 %v253, 127
        %v911 = vpop.permute.xlu0 %910
        %912 = vrot.lane.b32.xlu0 %v229, 127
        %v913 = vpop.permute.xlu0 %912
        %914 = vrot.lane.b32.xlu0 %v254, 127
        %v915 = vpop.permute.xlu0 %914
        %vm916 = vcmp.lt.s32.totalorder %v231, 127
        %v917 = vsel %vm916, %v913, %v915
        %v918 = vsel %vm916, %v911, %v913
        %v919 = vsel %vm916, %v909, %v911
        %v920 = vsel %vm916, %v915, %v909
        %v921 = vsel %vm378, 1, 0
        %v922 = vsel %vm379, 1, 0
        %v923 = vsel %vm380, 1, 0
        %v924 = vsel %vm381, 1, 0
        %vm925 = vcmp.eq.s32.totalorder %v921, 1
        %vm926 = vcmp.eq.s32.totalorder %v922, 1
        %vm927 = vcmp.eq.s32.totalorder %v923, 1
        %vm928 = vcmp.eq.s32.totalorder %v924, 1
        %v929 = vsel %vm925, %v919, 0.0
        %v930 = vsel %vm926, %v918, 0.0
        %v931 = vsel %vm927, %v917, 0.0
        %v932 = vsel %vm928, %v920, 0.0
        %v933 = vpack.c.bf16 %v929, %v929
        %v934 = vpack.c.bf16 %v930, %v930
        %v935 = vpack.c.bf16 %v931, %v931
        %v936 = vpack.c.bf16 %v932, %v932
        %v941 = vunpack.c.l.b16 %v933
        %v942 = vunpack.c.l.b16 %v934
        %v943 = vunpack.c.l.b16 %v935
        %v944 = vunpack.c.l.b16 %v936
        %v945 = vpack.c.b16 %v942, %v941
        %v946 = vpack.c.b16 %v944, %v943
        %949 = vst [vmem:[#allocation2 + $0x70] sm:$0x33] %v945
        %950 = vst [vmem:[#allocation2 + $0x78] sm:$0x33] %v946
        %951 = vrot.lane.b32.xlu0 %v228, 121
        %v952 = vpop.permute.xlu0 %951
        %953 = vrot.lane.b32.xlu0 %v253, 121
        %v954 = vpop.permute.xlu0 %953
        %955 = vrot.lane.b32.xlu0 %v229, 121
        %v956 = vpop.permute.xlu0 %955
        %957 = vrot.lane.b32.xlu0 %v254, 121
        %v958 = vpop.permute.xlu0 %957
        %vm959 = vcmp.lt.s32.totalorder %v231, 121
        %v960 = vsel %vm959, %v956, %v958
        %v961 = vsel %vm959, %v954, %v956
        %v962 = vsel %vm959, %v952, %v954
        %v963 = vsel %vm959, %v958, %v952
        %vm964 = vmand %vm570, %vm278
        %vm965 = vmand %vm571, %vm279
        %vm966 = vmand %vm572, %vm280
        %vm967 = vmand %vm573, %vm281
        %v968 = vsel %vm964, 1, 0
        %v969 = vsel %vm965, 1, 0
        %v970 = vsel %vm966, 1, 0
        %v971 = vsel %vm967, 1, 0
        %vm972 = vcmp.eq.s32.totalorder %v968, 1
        %vm973 = vcmp.eq.s32.totalorder %v969, 1
        %vm974 = vcmp.eq.s32.totalorder %v970, 1
        %vm975 = vcmp.eq.s32.totalorder %v971, 1
        %v976 = vsel %vm972, %v962, 0.0
        %v977 = vsel %vm973, %v961, 0.0
        %v978 = vsel %vm974, %v960, 0.0
        %v979 = vsel %vm975, %v963, 0.0
        %v980 = vpack.c.bf16 %v976, %v976
        %v981 = vpack.c.bf16 %v977, %v977
        %v982 = vpack.c.bf16 %v978, %v978
        %v983 = vpack.c.bf16 %v979, %v979
        %v988 = vunpack.c.l.b16 %v980
        %v989 = vunpack.c.l.b16 %v981
        %v990 = vunpack.c.l.b16 %v982
        %v991 = vunpack.c.l.b16 %v983
        %v992 = vpack.c.b16 %v989, %v988
        %v993 = vpack.c.b16 %v991, %v990
        %v994 = vrot.slane %v992, 6
        %v995 = vrot.slane %v993, 6
        %998 = vst [vmem:[#allocation2 + $0x70] sm:$0xcc] %v994
        %999 = vst [vmem:[#allocation2 + $0x78] sm:$0xcc] %v995
        %1000 = vrot.lane.b32.xlu0 %v228, 120
        %v1001 = vpop.permute.xlu0 %1000
        %1002 = vrot.lane.b32.xlu0 %v253, 120
        %v1003 = vpop.permute.xlu0 %1002
        %1004 = vrot.lane.b32.xlu0 %v229, 120
        %v1005 = vpop.permute.xlu0 %1004
        %1006 = vrot.lane.b32.xlu0 %v254, 120
        %v1007 = vpop.permute.xlu0 %1006
        %vm1008 = vcmp.lt.s32.totalorder %v231, 120
        %v1009 = vsel %vm1008, %v1005, %v1007
        %v1010 = vsel %vm1008, %v1003, %v1005
        %v1011 = vsel %vm1008, %v1001, %v1003
        %v1012 = vsel %vm1008, %v1007, %v1001
        %v1013 = vsel %vm570, 1, 0
        %v1014 = vsel %vm571, 1, 0
        %v1015 = vsel %vm572, 1, 0
        %v1016 = vsel %vm573, 1, 0
        %vm1017 = vcmp.eq.s32.totalorder %v1013, 1
        %vm1018 = vcmp.eq.s32.totalorder %v1014, 1
        %vm1019 = vcmp.eq.s32.totalorder %v1015, 1
        %vm1020 = vcmp.eq.s32.totalorder %v1016, 1
        %v1021 = vsel %vm1017, %v1011, 0.0
        %v1022 = vsel %vm1018, %v1010, 0.0
        %v1023 = vsel %vm1019, %v1009, 0.0
        %v1024 = vsel %vm1020, %v1012, 0.0
        %v1025 = vpack.c.bf16 %v1021, %v1021
        %v1026 = vpack.c.bf16 %v1022, %v1022
        %v1027 = vpack.c.bf16 %v1023, %v1023
        %v1028 = vpack.c.bf16 %v1024, %v1024
        %v1033 = vunpack.c.l.b16 %v1025
        %v1034 = vunpack.c.l.b16 %v1026
        %v1035 = vunpack.c.l.b16 %v1027
        %v1036 = vunpack.c.l.b16 %v1028
        %v1037 = vpack.c.b16 %v1034, %v1033
        %v1038 = vpack.c.b16 %v1036, %v1035
        %1041 = vst [vmem:[#allocation2 + $0x80] sm:$0x33] %v1037
        %1042 = vst [vmem:[#allocation2 + $0x88] sm:$0x33] %v1038
        %1043 = vrot.lane.b32.xlu0 %v228, 119
        %v1044 = vpop.permute.xlu0 %1043
        %1045 = vrot.lane.b32.xlu0 %v253, 119
        %v1046 = vpop.permute.xlu0 %1045
        %1047 = vrot.lane.b32.xlu0 %v229, 119
        %v1048 = vpop.permute.xlu0 %1047
        %1049 = vrot.lane.b32.xlu0 %v254, 119
        %v1050 = vpop.permute.xlu0 %1049
        %vm1051 = vcmp.lt.s32.totalorder %v231, 119
        %v1052 = vsel %vm1051, %v1048, %v1050
        %v1053 = vsel %vm1051, %v1046, %v1048
        %v1054 = vsel %vm1051, %v1044, %v1046
        %v1055 = vsel %vm1051, %v1050, %v1044
        %vm1056 = vmand %vm570, %vm378
        %vm1057 = vmand %vm571, %vm379
        %vm1058 = vmand %vm572, %vm380
        %vm1059 = vmand %vm573, %vm381
        %v1060 = vsel %vm1056, 1, 0
        %v1061 = vsel %vm1057, 1, 0
        %v1062 = vsel %vm1058, 1, 0
        %v1063 = vsel %vm1059, 1, 0
        %vm1064 = vcmp.eq.s32.totalorder %v1060, 1
        %vm1065 = vcmp.eq.s32.totalorder %v1061, 1
        %vm1066 = vcmp.eq.s32.totalorder %v1062, 1
        %vm1067 = vcmp.eq.s32.totalorder %v1063, 1
        %v1068 = vsel %vm1064, %v1054, 0.0
        %v1069 = vsel %vm1065, %v1053, 0.0
        %v1070 = vsel %vm1066, %v1052, 0.0
        %v1071 = vsel %vm1067, %v1055, 0.0
        %v1072 = vpack.c.bf16 %v1068, %v1068
        %v1073 = vpack.c.bf16 %v1069, %v1069
        %v1074 = vpack.c.bf16 %v1070, %v1070
        %v1075 = vpack.c.bf16 %v1071, %v1071
        %v1080 = vunpack.c.l.b16 %v1072
        %v1081 = vunpack.c.l.b16 %v1073
        %v1082 = vunpack.c.l.b16 %v1074
        %v1083 = vunpack.c.l.b16 %v1075
        %v1084 = vpack.c.b16 %v1081, %v1080
        %v1085 = vpack.c.b16 %v1083, %v1082
        %v1086 = vrot.slane %v1084, 6
        %v1087 = vrot.slane %v1085, 6
        %1090 = vst [vmem:[#allocation2 + $0x80] sm:$0xcc] %v1086
        %1091 = vst [vmem:[#allocation2 + $0x88] sm:$0xcc] %v1087
        %vm1092 = vcmp.lt.s32.totalorder %v235, 7
        %vm1093 = vcmp.lt.s32.totalorder %v236, 7
        %vm1094 = vcmp.lt.s32.totalorder %v237, 7
        %vm1095 = vcmp.lt.s32.totalorder %v238, 7
        %vm1096 = vmand %vm1092, %vm274
        %vm1097 = vmand %vm1093, %vm275
        %vm1098 = vmand %vm1094, %vm276
        %vm1099 = vmand %vm1095, %vm277
        %vm1100 = vmand %vm1096, %vm278
        %vm1101 = vmand %vm1097, %vm279
        %vm1102 = vmand %vm1098, %vm280
        %vm1103 = vmand %vm1099, %vm281
        %v1104 = vsel %vm1100, 1, 0
        %v1105 = vsel %vm1101, 1, 0
        %v1106 = vsel %vm1102, 1, 0
        %v1107 = vsel %vm1103, 1, 0
        %vm1108 = vcmp.eq.s32.totalorder %v1104, 1
        %vm1109 = vcmp.eq.s32.totalorder %v1105, 1
        %vm1110 = vcmp.eq.s32.totalorder %v1106, 1
        %vm1111 = vcmp.eq.s32.totalorder %v1107, 1
        %v1112 = vsel %vm1108, %v268, 0.0
        %v1113 = vsel %vm1109, %v267, 0.0
        %v1114 = vsel %vm1110, %v266, 0.0
        %v1115 = vsel %vm1111, %v269, 0.0
        %v1116 = vpack.c.bf16 %v1112, %v1112
        %v1117 = vpack.c.bf16 %v1113, %v1113
        %v1118 = vpack.c.bf16 %v1114, %v1114
        %v1119 = vpack.c.bf16 %v1115, %v1115
        %v1124 = vunpack.c.l.b16 %v1116
        %v1125 = vunpack.c.l.b16 %v1117
        %v1126 = vunpack.c.l.b16 %v1118
        %v1127 = vunpack.c.l.b16 %v1119
        %v1128 = vpack.c.b16 %v1125, %v1124
        %v1129 = vpack.c.b16 %v1127, %v1126
        %1132 = vst [vmem:[#allocation2 + $0x90] sm:$0x33] %v1128
        %1133 = vst [vmem:[#allocation2 + $0x98] sm:$0x33] %v1129
        %v1134 = vsel %vm1096, 1, 0
        %v1135 = vsel %vm1097, 1, 0
        %v1136 = vsel %vm1098, 1, 0
        %v1137 = vsel %vm1099, 1, 0
        %vm1138 = vcmp.eq.s32.totalorder %v1134, 1
        %vm1139 = vcmp.eq.s32.totalorder %v1135, 1
        %vm1140 = vcmp.eq.s32.totalorder %v1136, 1
        %vm1141 = vcmp.eq.s32.totalorder %v1137, 1
        %v1142 = vsel %vm1138, %v331, 0.0
        %v1143 = vsel %vm1139, %v330, 0.0
        %v1144 = vsel %vm1140, %v329, 0.0
        %v1145 = vsel %vm1141, %v332, 0.0
        %v1146 = vpack.c.bf16 %v1142, %v1142
        %v1147 = vpack.c.bf16 %v1143, %v1143
        %v1148 = vpack.c.bf16 %v1144, %v1144
        %v1149 = vpack.c.bf16 %v1145, %v1145
        %v1154 = vunpack.c.l.b16 %v1146
        %v1155 = vunpack.c.l.b16 %v1147
        %v1156 = vunpack.c.l.b16 %v1148
        %v1157 = vunpack.c.l.b16 %v1149
        %v1158 = vpack.c.b16 %v1155, %v1154
        %v1159 = vpack.c.b16 %v1157, %v1156
        %v1160 = vrot.slane %v1158, 6
        %v1161 = vrot.slane %v1159, 6
        %1164 = vst [vmem:[#allocation2 + $0x90] sm:$0xcc] %v1160
        %1165 = vst [vmem:[#allocation2 + $0x98] sm:$0xcc] %v1161
        %vm1166 = vmand %vm1096, %vm378
        %vm1167 = vmand %vm1097, %vm379
        %vm1168 = vmand %vm1098, %vm380
        %vm1169 = vmand %vm1099, %vm381
        %v1170 = vsel %vm1166, 1, 0
        %v1171 = vsel %vm1167, 1, 0
        %v1172 = vsel %vm1168, 1, 0
        %v1173 = vsel %vm1169, 1, 0
        %vm1174 = vcmp.eq.s32.totalorder %v1170, 1
        %vm1175 = vcmp.eq.s32.totalorder %v1171, 1
        %vm1176 = vcmp.eq.s32.totalorder %v1172, 1
        %vm1177 = vcmp.eq.s32.totalorder %v1173, 1
        %v1178 = vsel %vm1174, %v376, 0.0
        %v1179 = vsel %vm1175, %v375, 0.0
        %v1180 = vsel %vm1176, %v374, 0.0
        %v1181 = vsel %vm1177, %v377, 0.0
        %v1182 = vpack.c.bf16 %v1178, %v1178
        %v1183 = vpack.c.bf16 %v1179, %v1179
        %v1184 = vpack.c.bf16 %v1180, %v1180
        %v1185 = vpack.c.bf16 %v1181, %v1181
        %v1190 = vunpack.c.l.b16 %v1182
        %v1191 = vunpack.c.l.b16 %v1183
        %v1192 = vunpack.c.l.b16 %v1184
        %v1193 = vunpack.c.l.b16 %v1185
        %v1194 = vpack.c.b16 %v1191, %v1190
        %v1195 = vpack.c.b16 %v1193, %v1192
        %1198 = vst [vmem:[#allocation2 + $0xa0] sm:$0x33] %v1194
        %1199 = vst [vmem:[#allocation2 + $0xa8] sm:$0x33] %v1195
        %vm1200 = vmand %vm1092, %vm278
        %vm1201 = vmand %vm1093, %vm279
        %vm1202 = vmand %vm1094, %vm280
        %vm1203 = vmand %vm1095, %vm281
        %v1204 = vsel %vm1200, 1, 0
        %v1205 = vsel %vm1201, 1, 0
        %v1206 = vsel %vm1202, 1, 0
        %v1207 = vsel %vm1203, 1, 0
        %vm1208 = vcmp.eq.s32.totalorder %v1204, 1
        %vm1209 = vcmp.eq.s32.totalorder %v1205, 1
        %vm1210 = vcmp.eq.s32.totalorder %v1206, 1
        %vm1211 = vcmp.eq.s32.totalorder %v1207, 1
        %v1212 = vsel %vm1208, %v427, 0.0
        %v1213 = vsel %vm1209, %v426, 0.0
        %v1214 = vsel %vm1210, %v425, 0.0
        %v1215 = vsel %vm1211, %v428, 0.0
        %v1216 = vpack.c.bf16 %v1212, %v1212
        %v1217 = vpack.c.bf16 %v1213, %v1213
        %v1218 = vpack.c.bf16 %v1214, %v1214
        %v1219 = vpack.c.bf16 %v1215, %v1215
        %v1224 = vunpack.c.l.b16 %v1216
        %v1225 = vunpack.c.l.b16 %v1217
        %v1226 = vunpack.c.l.b16 %v1218
        %v1227 = vunpack.c.l.b16 %v1219
        %v1228 = vpack.c.b16 %v1225, %v1224
        %v1229 = vpack.c.b16 %v1227, %v1226
        %v1230 = vrot.slane %v1228, 6
        %v1231 = vrot.slane %v1229, 6
        %1234 = vst [vmem:[#allocation2 + $0xa0] sm:$0xcc] %v1230
        %1235 = vst [vmem:[#allocation2 + $0xa8] sm:$0xcc] %v1231
        %v1236 = vsel %vm1092, 1, 0
        %v1237 = vsel %vm1093, 1, 0
        %v1238 = vsel %vm1094, 1, 0
        %v1239 = vsel %vm1095, 1, 0
        %vm1240 = vcmp.eq.s32.totalorder %v1236, 1
        %vm1241 = vcmp.eq.s32.totalorder %v1237, 1
        %vm1242 = vcmp.eq.s32.totalorder %v1238, 1
        %vm1243 = vcmp.eq.s32.totalorder %v1239, 1
        %v1244 = vsel %vm1240, %v476, 0.0
        %v1245 = vsel %vm1241, %v475, 0.0
        %v1246 = vsel %vm1242, %v474, 0.0
        %v1247 = vsel %vm1243, %v477, 0.0
        %v1248 = vpack.c.bf16 %v1244, %v1244
        %v1249 = vpack.c.bf16 %v1245, %v1245
        %v1250 = vpack.c.bf16 %v1246, %v1246
        %v1251 = vpack.c.bf16 %v1247, %v1247
        %v1256 = vunpack.c.l.b16 %v1248
        %v1257 = vunpack.c.l.b16 %v1249
        %v1258 = vunpack.c.l.b16 %v1250
        %v1259 = vunpack.c.l.b16 %v1251
        %v1260 = vpack.c.b16 %v1257, %v1256
        %v1261 = vpack.c.b16 %v1259, %v1258
        %1264 = vst [vmem:[#allocation2 + $0xb0] sm:$0x33] %v1260
        %1265 = vst [vmem:[#allocation2 + $0xb8] sm:$0x33] %v1261
        %vm1266 = vmand %vm1092, %vm378
        %vm1267 = vmand %vm1093, %vm379
        %vm1268 = vmand %vm1094, %vm380
        %vm1269 = vmand %vm1095, %vm381
        %v1270 = vsel %vm1266, 1, 0
        %v1271 = vsel %vm1267, 1, 0
        %v1272 = vsel %vm1268, 1, 0
        %v1273 = vsel %vm1269, 1, 0
        %vm1274 = vcmp.eq.s32.totalorder %v1270, 1
        %vm1275 = vcmp.eq.s32.totalorder %v1271, 1
        %vm1276 = vcmp.eq.s32.totalorder %v1272, 1
        %vm1277 = vcmp.eq.s32.totalorder %v1273, 1
        %v1278 = vsel %vm1274, %v519, 0.0
        %v1279 = vsel %vm1275, %v518, 0.0
        %v1280 = vsel %vm1276, %v517, 0.0
        %v1281 = vsel %vm1277, %v520, 0.0
        %v1282 = vpack.c.bf16 %v1278, %v1278
        %v1283 = vpack.c.bf16 %v1279, %v1279
        %v1284 = vpack.c.bf16 %v1280, %v1280
        %v1285 = vpack.c.bf16 %v1281, %v1281
        %v1290 = vunpack.c.l.b16 %v1282
        %v1291 = vunpack.c.l.b16 %v1283
        %v1292 = vunpack.c.l.b16 %v1284
        %v1293 = vunpack.c.l.b16 %v1285
        %v1294 = vpack.c.b16 %v1291, %v1290
        %v1295 = vpack.c.b16 %v1293, %v1292
        %v1296 = vrot.slane %v1294, 6
        %v1297 = vrot.slane %v1295, 6
        %1300 = vst [vmem:[#allocation2 + $0xb0] sm:$0xcc] %v1296
        %1301 = vst [vmem:[#allocation2 + $0xb8] sm:$0xcc] %v1297
        %vm1302 = vmand %vm1092, %vm570
        %vm1303 = vmand %vm1093, %vm571
        %vm1304 = vmand %vm1094, %vm572
        %vm1305 = vmand %vm1095, %vm573
        %vm1306 = vmand %vm1302, %vm278
        %vm1307 = vmand %vm1303, %vm279
        %vm1308 = vmand %vm1304, %vm280
        %vm1309 = vmand %vm1305, %vm281
        %v1310 = vsel %vm1306, 1, 0
        %v1311 = vsel %vm1307, 1, 0
        %v1312 = vsel %vm1308, 1, 0
        %v1313 = vsel %vm1309, 1, 0
        %vm1314 = vcmp.eq.s32.totalorder %v1310, 1
        %vm1315 = vcmp.eq.s32.totalorder %v1311, 1
        %vm1316 = vcmp.eq.s32.totalorder %v1312, 1
        %vm1317 = vcmp.eq.s32.totalorder %v1313, 1
        %v1318 = vsel %vm1314, %v568, 0.0
        %v1319 = vsel %vm1315, %v567, 0.0
        %v1320 = vsel %vm1316, %v566, 0.0
        %v1321 = vsel %vm1317, %v569, 0.0
        %v1322 = vpack.c.bf16 %v1318, %v1318
        %v1323 = vpack.c.bf16 %v1319, %v1319
        %v1324 = vpack.c.bf16 %v1320, %v1320
        %v1325 = vpack.c.bf16 %v1321, %v1321
        %v1330 = vunpack.c.l.b16 %v1322
        %v1331 = vunpack.c.l.b16 %v1323
        %v1332 = vunpack.c.l.b16 %v1324
        %v1333 = vunpack.c.l.b16 %v1325
        %v1334 = vpack.c.b16 %v1331, %v1330
        %v1335 = vpack.c.b16 %v1333, %v1332
        %1338 = vst [vmem:[#allocation2 + $0xc0] sm:$0x33] %v1334
        %1339 = vst [vmem:[#allocation2 + $0xc8] sm:$0x33] %v1335
        %v1340 = vsel %vm1302, 1, 0
        %v1341 = vsel %vm1303, 1, 0
        %v1342 = vsel %vm1304, 1, 0
        %v1343 = vsel %vm1305, 1, 0
        %vm1344 = vcmp.eq.s32.totalorder %v1340, 1
        %vm1345 = vcmp.eq.s32.totalorder %v1341, 1
        %vm1346 = vcmp.eq.s32.totalorder %v1342, 1
        %vm1347 = vcmp.eq.s32.totalorder %v1343, 1
        %v1348 = vsel %vm1344, %v623, 0.0
        %v1349 = vsel %vm1345, %v622, 0.0
        %v1350 = vsel %vm1346, %v621, 0.0
        %v1351 = vsel %vm1347, %v624, 0.0
        %v1352 = vpack.c.bf16 %v1348, %v1348
        %v1353 = vpack.c.bf16 %v1349, %v1349
        %v1354 = vpack.c.bf16 %v1350, %v1350
        %v1355 = vpack.c.bf16 %v1351, %v1351
        %v1360 = vunpack.c.l.b16 %v1352
        %v1361 = vunpack.c.l.b16 %v1353
        %v1362 = vunpack.c.l.b16 %v1354
        %v1363 = vunpack.c.l.b16 %v1355
        %v1364 = vpack.c.b16 %v1361, %v1360
        %v1365 = vpack.c.b16 %v1363, %v1362
        %v1366 = vrot.slane %v1364, 6
        %v1367 = vrot.slane %v1365, 6
        %1370 = vst [vmem:[#allocation2 + $0xc0] sm:$0xcc] %v1366
        %1371 = vst [vmem:[#allocation2 + $0xc8] sm:$0xcc] %v1367
        %vm1372 = vmand %vm1302, %vm378
        %vm1373 = vmand %vm1303, %vm379
        %vm1374 = vmand %vm1304, %vm380
        %vm1375 = vmand %vm1305, %vm381
        %v1376 = vsel %vm1372, 1, 0
        %v1377 = vsel %vm1373, 1, 0
        %v1378 = vsel %vm1374, 1, 0
        %v1379 = vsel %vm1375, 1, 0
        %vm1380 = vcmp.eq.s32.totalorder %v1376, 1
        %vm1381 = vcmp.eq.s32.totalorder %v1377, 1
        %vm1382 = vcmp.eq.s32.totalorder %v1378, 1
        %vm1383 = vcmp.eq.s32.totalorder %v1379, 1
        %v1384 = vsel %vm1380, %v668, 0.0
        %v1385 = vsel %vm1381, %v667, 0.0
        %v1386 = vsel %vm1382, %v666, 0.0
        %v1387 = vsel %vm1383, %v669, 0.0
        %v1388 = vpack.c.bf16 %v1384, %v1384
        %v1389 = vpack.c.bf16 %v1385, %v1385
        %v1390 = vpack.c.bf16 %v1386, %v1386
        %v1391 = vpack.c.bf16 %v1387, %v1387
        %v1396 = vunpack.c.l.b16 %v1388
        %v1397 = vunpack.c.l.b16 %v1389
        %v1398 = vunpack.c.l.b16 %v1390
        %v1399 = vunpack.c.l.b16 %v1391
        %v1400 = vpack.c.b16 %v1397, %v1396
        %v1401 = vpack.c.b16 %v1399, %v1398
        %1404 = vst [vmem:[#allocation2 + $0xd0] sm:$0x33] %v1400
        %1405 = vst [vmem:[#allocation2 + $0xd8] sm:$0x33] %v1401
        %v1406 = vld [vmem:[#allocation7] sm:$0xf]
        %v1407 = vld [vmem:[#allocation2] sm:$0xff]
        %v1408 = vld [vmem:[#allocation2 + $0x8] sm:$0xff]
        %v1409 = vld [vmem:[#allocation2 + $0x10] sm:$0xff]
        %v1410 = vld [vmem:[#allocation2 + $0x18] sm:$0xff]
        %v1411 = vld [vmem:[#allocation2 + $0x20] sm:$0xff]
        %v1412 = vld [vmem:[#allocation2 + $0x28] sm:$0xff]
        %v1413 = vld [vmem:[#allocation2 + $0x30] sm:$0xff]
        %v1414 = vld [vmem:[#allocation2 + $0x38] sm:$0xff]
        %v1415 = vld [vmem:[#allocation2 + $0x40] sm:$0xff]
        %v1416 = vld [vmem:[#allocation2 + $0x48] sm:$0xff]
        %v1417 = vld [vmem:[#allocation2 + $0x50] sm:$0xff]
        %v1418 = vld [vmem:[#allocation2 + $0x58] sm:$0xff]
        %v1419 = vld [vmem:[#allocation2 + $0x60] sm:$0xff]
        %v1420 = vld [vmem:[#allocation2 + $0x68] sm:$0xff]
        %v1421 = vld [vmem:[#allocation2 + $0x70] sm:$0xff]
        %v1422 = vld [vmem:[#allocation2 + $0x78] sm:$0xff]
        %v1423 = vld [vmem:[#allocation2 + $0x80] sm:$0xff]
        %v1424 = vld [vmem:[#allocation2 + $0x88] sm:$0xff]
        %v1425 = vld [vmem:[#allocation2 + $0x90] sm:$0xff]
        %v1426 = vld [vmem:[#allocation2 + $0x98] sm:$0xff]
        %v1427 = vld [vmem:[#allocation2 + $0xa0] sm:$0xff]
        %v1428 = vld [vmem:[#allocation2 + $0xa8] sm:$0xff]
        %v1429 = vld [vmem:[#allocation2 + $0xb0] sm:$0xff]
        %v1430 = vld [vmem:[#allocation2 + $0xb8] sm:$0xff]
        %v1431 = vld [vmem:[#allocation2 + $0xc0] sm:$0xff]
        %v1432 = vld [vmem:[#allocation2 + $0xc8] sm:$0xff]
        %v1433 = vld [vmem:[#allocation2 + $0xd0] sm:$0x33]
        %v1434 = vld [vmem:[#allocation2 + $0xd8] sm:$0x33]
        %v1463 = vunpack.c.l.b16 %v1407
        %v1464 = vunpack.c.h.b16 %v1407
        %v1465 = vunpack.c.l.b16 %v1408
        %v1466 = vunpack.c.h.b16 %v1408
        %v1467 = vunpack.c.l.b16 %v1409
        %v1468 = vunpack.c.h.b16 %v1409
        %v1469 = vunpack.c.l.b16 %v1410
        %v1470 = vunpack.c.h.b16 %v1410
        %v1471 = vunpack.c.l.b16 %v1411
        %v1472 = vunpack.c.h.b16 %v1411
        %v1473 = vunpack.c.l.b16 %v1412
        %v1474 = vunpack.c.h.b16 %v1412
        %v1475 = vunpack.c.l.b16 %v1413
        %v1476 = vunpack.c.h.b16 %v1413
        %v1477 = vunpack.c.l.b16 %v1414
        %v1478 = vunpack.c.h.b16 %v1414
        %v1479 = vunpack.c.l.b16 %v1415
        %v1480 = vunpack.c.h.b16 %v1415
        %v1481 = vunpack.c.l.b16 %v1416
        %v1482 = vunpack.c.h.b16 %v1416
        %v1483 = vunpack.c.l.b16 %v1417
        %v1484 = vunpack.c.h.b16 %v1417
        %v1485 = vunpack.c.l.b16 %v1418
        %v1486 = vunpack.c.h.b16 %v1418
        %v1487 = vunpack.c.l.b16 %v1419
        %v1488 = vunpack.c.h.b16 %v1419
        %v1489 = vunpack.c.l.b16 %v1420
        %v1490 = vunpack.c.h.b16 %v1420
        %v1491 = vunpack.c.l.b16 %v1421
        %v1492 = vunpack.c.h.b16 %v1421
        %v1493 = vunpack.c.l.b16 %v1422
        %v1494 = vunpack.c.h.b16 %v1422
        %v1495 = vunpack.c.l.b16 %v1423
        %v1496 = vunpack.c.h.b16 %v1423
        %v1497 = vunpack.c.l.b16 %v1424
        %v1498 = vunpack.c.h.b16 %v1424
        %v1499 = vunpack.c.l.b16 %v1425
        %v1500 = vunpack.c.h.b16 %v1425
        %v1501 = vunpack.c.l.b16 %v1426
        %v1502 = vunpack.c.h.b16 %v1426
        %v1503 = vunpack.c.l.b16 %v1427
        %v1504 = vunpack.c.h.b16 %v1427
        %v1505 = vunpack.c.l.b16 %v1428
        %v1506 = vunpack.c.h.b16 %v1428
        %v1507 = vunpack.c.l.b16 %v1429
        %v1508 = vunpack.c.h.b16 %v1429
        %v1509 = vunpack.c.l.b16 %v1430
        %v1510 = vunpack.c.h.b16 %v1430
        %v1511 = vunpack.c.l.b16 %v1431
        %v1512 = vunpack.c.h.b16 %v1431
        %v1513 = vunpack.c.l.b16 %v1432
        %v1514 = vunpack.c.h.b16 %v1432
        %v1515 = vunpack.c.l.b16 %v1433
        %v1516 = vunpack.c.h.b16 %v1433
        %v1517 = vunpack.c.l.b16 %v1434
        %v1518 = vunpack.c.h.b16 %v1434
        %v1519 = vpack.c.b16 %v1467, %v1463
        %v1520 = vpack.c.b16 %v1468, %v1464
        %v1521 = vpack.c.b16 %v1469, %v1465
        %v1522 = vpack.c.b16 %v1470, %v1466
        %v1523 = vpack.c.b16 %v1475, %v1471
        %v1524 = vpack.c.b16 %v1476, %v1472
        %v1525 = vpack.c.b16 %v1477, %v1473
        %v1526 = vpack.c.b16 %v1478, %v1474
        %v1527 = vpack.c.b16 %v1483, %v1479
        %v1528 = vpack.c.b16 %v1484, %v1480
        %v1529 = vpack.c.b16 %v1485, %v1481
        %v1530 = vpack.c.b16 %v1486, %v1482
        %v1531 = vpack.c.b16 %v1491, %v1487
        %v1532 = vpack.c.b16 %v1492, %v1488
        %v1533 = vpack.c.b16 %v1493, %v1489
        %v1534 = vpack.c.b16 %v1494, %v1490
        %v1535 = vpack.c.b16 %v1499, %v1495
        %v1536 = vpack.c.b16 %v1500, %v1496
        %v1537 = vpack.c.b16 %v1501, %v1497
        %v1538 = vpack.c.b16 %v1502, %v1498
        %v1539 = vpack.c.b16 %v1507, %v1503
        %v1540 = vpack.c.b16 %v1508, %v1504
        %v1541 = vpack.c.b16 %v1509, %v1505
        %v1542 = vpack.c.b16 %v1510, %v1506
        %v1543 = vpack.c.b16 %v1515, %v1511
        %v1544 = vpack.c.b16 %v1516, %v1512
        %v1545 = vpack.c.b16 %v1517, %v1513
        %v1546 = vpack.c.b16 %v1518, %v1514
        %vm1571 = vcmask 883712
        %v1573 = vsel %vm1571, %v1406, 0
        %vm1575 = vcmask 1045504
        %v1577 = vsel %vm1575, %v1543, 0
        %v1580 = vsel %vm1575, %v1544, 0
        %v1583 = vsel %vm1575, %v1545, 0
        %v1586 = vsel %vm1575, %v1546, 0
        %1588 = vmatprep.subr.bf16.mxu0 0
        %1589 = vmatpush1.bf16.msra.mxu0 0
        %1590 = vmatprep.subr.bf16.mxu0 %v1580
        %1591 = vmatpush1.bf16.msra.mxu0 %v1577
        %1592 = vmatprep.subr.bf16.mxu0 %v1540
        %1593 = vmatpush1.bf16.msra.mxu0 %v1539
        %1594 = vmatprep.subr.bf16.mxu0 %v1536
        %1595 = vmatpush1.bf16.msra.mxu0 %v1535
        %1596 = vmatprep.subr.bf16.mxu0 %v1532
        %1597 = vmatpush1.bf16.msra.mxu0 %v1531
        %1598 = vmatprep.subr.bf16.mxu0 %v1528
        %1599 = vmatpush1.bf16.msra.mxu0 %v1527
        %1600 = vmatprep.subr.bf16.mxu0 %v1524
        %1601 = vmatpush1.bf16.msra.mxu0 %v1523
        %1602 = vmatprep.subr.bf16.mxu0 %v1520
        %1603 = vmatpush1.bf16.msra.mxu0 %v1519
        %1604 = vmatprep.subr.bf16.mxu0 0
        %1605 = vmatpush2.bf16.msra.mxu0 0
        %1606 = vmatprep.subr.bf16.mxu0 0
        %1607 = vmatpush2.bf16.msra.mxu0 0
        %1608 = vmatprep.subr.bf16.mxu0 0
        %1609 = vmatpush2.bf16.msra.mxu0 0
        %1610 = vmatprep.subr.bf16.mxu0 0
        %1611 = vmatpush2.bf16.msra.mxu0 0
        %1612 = vmatprep.subr.bf16.mxu0 0
        %1613 = vmatpush2.bf16.msra.mxu0 0
        %1614 = vmatprep.subr.bf16.mxu0 0
        %1615 = vmatpush2.bf16.msra.mxu0 0
        %1616 = vmatprep.subr.bf16.mxu0 0
        %1617 = vmatpush2.bf16.msra.mxu0 0
        %1618 = vmatprep.subr.bf16.mxu0 0
        %1619 = vmatpush2.bf16.msra.mxu0 0
        %1620 = vmatprep.mubr.bf16.mxu0 0
        %1621 = vmatmul.mubr.bf16.gmra.mxu0 %v1573
        %v1622 = vpop.f32.mrf.mxu0
        %v1623 = vadd.f32 0.0, %v1622
        %v1624 = vpop.f32.mrf.mxu0
        %v1625 = vadd.f32 0.0, %v1624
        %v1626 = vpop.f32.mrf.mxu0
        %v1627 = vpop.f32.mrf.mxu0
        %1628 = vdwg.mxu0
        %1629 = vmatprep.subr.bf16.mxu0 0
        %1630 = vmatpush1.bf16.msra.mxu0 0
        %1631 = vmatprep.subr.bf16.mxu0 %v1586
        %1632 = vmatpush1.bf16.msra.mxu0 %v1583
        %1633 = vmatprep.subr.bf16.mxu0 %v1542
        %1634 = vmatpush1.bf16.msra.mxu0 %v1541
        %1635 = vmatprep.subr.bf16.mxu0 %v1538
        %1636 = vmatpush1.bf16.msra.mxu0 %v1537
        %1637 = vmatprep.subr.bf16.mxu0 %v1534
        %1638 = vmatpush1.bf16.msra.mxu0 %v1533
        %1639 = vmatprep.subr.bf16.mxu0 %v1530
        %1640 = vmatpush1.bf16.msra.mxu0 %v1529
        %1641 = vmatprep.subr.bf16.mxu0 %v1526
        %1642 = vmatpush1.bf16.msra.mxu0 %v1525
        %1643 = vmatprep.subr.bf16.mxu0 %v1522
        %1644 = vmatpush1.bf16.msra.mxu0 %v1521
        %1645 = vmatprep.subr.bf16.mxu0 0
        %1646 = vmatpush2.bf16.msra.mxu0 0
        %1647 = vmatprep.subr.bf16.mxu0 0
        %1648 = vmatpush2.bf16.msra.mxu0 0
        %1649 = vmatprep.subr.bf16.mxu0 0
        %1650 = vmatpush2.bf16.msra.mxu0 0
        %1651 = vmatprep.subr.bf16.mxu0 0
        %1652 = vmatpush2.bf16.msra.mxu0 0
        %1653 = vmatprep.subr.bf16.mxu0 0
        %1654 = vmatpush2.bf16.msra.mxu0 0
        %1655 = vmatprep.subr.bf16.mxu0 0
        %1656 = vmatpush2.bf16.msra.mxu0 0
        %1657 = vmatprep.subr.bf16.mxu0 0
        %1658 = vmatpush2.bf16.msra.mxu0 0
        %1659 = vmatprep.subr.bf16.mxu0 0
        %1660 = vmatpush2.bf16.msra.mxu0 0
        %1661 = vmatprep.mubr.bf16.mxu0 0
        %1662 = vmatmul.mubr.bf16.gmra.mxu0 %v1573
        %v1663 = vpop.f32.mrf.mxu0
        %v1664 = vadd.f32 0.0, %v1663
        %v1665 = vpop.f32.mrf.mxu0
        %v1666 = vadd.f32 0.0, %v1665
        %v1667 = vpop.f32.mrf.mxu0
        %v1668 = vpop.f32.mrf.mxu0
        %1669 = vdwg.mxu0
        %v1670 = vadd.f32 %v1623, %v1625
        %v1671 = vadd.f32 %v1670, %v1664
        %v1672 = vadd.f32 %v1671, %v1666
        %1673 = vadd.xlane.f32.xlu0 %v1672
        %v1674 = vpop.xlane.xlu0 %1673
        %v1675 = vrcp.pop 512.0
        %v1676 = vmul.f32 %v1674, %v1675
        %v1677 = vsub.f32 %v1623, %v1676
        %v1678 = vsub.f32 %v1625, %v1676
        %v1679 = vsub.f32 %v1664, %v1676
        %v1680 = vsub.f32 %v1666, %v1676
        %v1681 = vmul.f32 %v1677, %v1677
        %v1682 = vmul.f32 %v1678, %v1678
        %v1683 = vmul.f32 %v1679, %v1679
        %v1684 = vmul.f32 %v1680, %v1680
        %v1685 = vadd.f32 %v1681, %v1682
        %v1686 = vadd.f32 %v1685, %v1683
        %v1687 = vadd.f32 %v1686, %v1684
        %1688 = vadd.xlane.f32.xlu0 %v1687
        %v1689 = vpop.xlane.xlu0 %1688
        %v1690 = vmul.f32 %v1689, %v1675
        %v1691 = vadd.f32 %v1690, 1e-05
        %v1692 = vrsqrt.pop %v1691
        %v1693 = vmul.f32 %v1677, %v1692
        %v1694 = vmul.f32 %v1678, %v1692
        %v1695 = vmul.f32 %v1679, %v1692
        %v1696 = vmul.f32 %v1680, %v1692
        %v1697 = vmax.f32 %v1693, 0.0
        %v1698 = vmax.f32 %v1694, 0.0
        %v1699 = vmax.f32 %v1695, 0.0
        %v1700 = vmax.f32 %v1696, 0.0
        %1701 = vrot.lane.b32.xlu0 %v1697, 73
        %v1702 = vpop.permute.xlu0 %1701
        %1703 = vrot.lane.b32.xlu0 %v1698, 73
        %v1704 = vpop.permute.xlu0 %1703
        %1705 = vrot.lane.b32.xlu0 %v1699, 73
        %v1706 = vpop.permute.xlu0 %1705
        %1707 = vrot.lane.b32.xlu0 %v1700, 73
        %v1708 = vpop.permute.xlu0 %1707
        %v1709 = vsel %vm265, %v1706, %v1708
        %v1710 = vsel %vm265, %v1704, %v1706
        %v1711 = vsel %vm265, %v1702, %v1704
        %v1712 = vsel %vm265, %v1708, %v1702
        %v1713 = vsel %vm294, %v1712, 0.0
        %v1714 = vsel %vm295, %v1711, 0.0
        %v1715 = vsel %vm296, %v1710, 0.0
        %v1716 = vsel %vm297, %v1709, 0.0
        %v1717 = vpack.c.bf16 %v1713, %v1713
        %v1718 = vpack.c.bf16 %v1714, %v1714
        %v1719 = vpack.c.bf16 %v1715, %v1715
        %v1720 = vpack.c.bf16 %v1716, %v1716
        %v1725 = vunpack.c.l.b16 %v1717
        %v1726 = vunpack.c.l.b16 %v1718
        %v1727 = vunpack.c.l.b16 %v1719
        %v1728 = vunpack.c.l.b16 %v1720
        %v1729 = vpack.c.b16 %v1726, %v1725
        %v1730 = vpack.c.b16 %v1728, %v1727
        %1733 = vst [vmem:[#allocation3] sm:$0xff] %v1729
        %1734 = vst [vmem:[#allocation3 + $0x8] sm:$0xff] %v1730
        %1735 = vrot.lane.b32.xlu0 %v1697, 72
        %v1736 = vpop.permute.xlu0 %1735
        %1737 = vrot.lane.b32.xlu0 %v1698, 72
        %v1738 = vpop.permute.xlu0 %1737
        %1739 = vrot.lane.b32.xlu0 %v1699, 72
        %v1740 = vpop.permute.xlu0 %1739
        %1741 = vrot.lane.b32.xlu0 %v1700, 72
        %v1742 = vpop.permute.xlu0 %1741
        %v1743 = vsel %vm328, %v1740, %v1742
        %v1744 = vsel %vm328, %v1738, %v1740
        %v1745 = vsel %vm328, %v1736, %v1738
        %v1746 = vsel %vm328, %v1742, %v1736
        %v1747 = vsel %vm337, %v1746, 0.0
        %v1748 = vsel %vm338, %v1745, 0.0
        %v1749 = vsel %vm339, %v1744, 0.0
        %v1750 = vsel %vm340, %v1743, 0.0
        %v1751 = vpack.c.bf16 %v1747, %v1747
        %v1752 = vpack.c.bf16 %v1748, %v1748
        %v1753 = vpack.c.bf16 %v1749, %v1749
        %v1754 = vpack.c.bf16 %v1750, %v1750
        %v1759 = vunpack.c.l.b16 %v1751
        %v1760 = vunpack.c.l.b16 %v1752
        %v1761 = vunpack.c.l.b16 %v1753
        %v1762 = vunpack.c.l.b16 %v1754
        %v1763 = vpack.c.b16 %v1760, %v1759
        %v1764 = vpack.c.b16 %v1762, %v1761
        %1767 = vst [vmem:[#allocation3 + $0x10] sm:$0xff] %v1763
        %1768 = vst [vmem:[#allocation3 + $0x18] sm:$0xff] %v1764
        %1769 = vrot.lane.b32.xlu0 %v1697, 71
        %v1770 = vpop.permute.xlu0 %1769
        %1771 = vrot.lane.b32.xlu0 %v1698, 71
        %v1772 = vpop.permute.xlu0 %1771
        %1773 = vrot.lane.b32.xlu0 %v1699, 71
        %v1774 = vpop.permute.xlu0 %1773
        %1775 = vrot.lane.b32.xlu0 %v1700, 71
        %v1776 = vpop.permute.xlu0 %1775
        %v1777 = vsel %vm373, %v1774, %v1776
        %v1778 = vsel %vm373, %v1772, %v1774
        %v1779 = vsel %vm373, %v1770, %v1772
        %v1780 = vsel %vm373, %v1776, %v1770
        %v1781 = vsel %vm390, %v1780, 0.0
        %v1782 = vsel %vm391, %v1779, 0.0
        %v1783 = vsel %vm392, %v1778, 0.0
        %v1784 = vsel %vm393, %v1777, 0.0
        %v1785 = vpack.c.bf16 %v1781, %v1781
        %v1786 = vpack.c.bf16 %v1782, %v1782
        %v1787 = vpack.c.bf16 %v1783, %v1783
        %v1788 = vpack.c.bf16 %v1784, %v1784
        %v1793 = vunpack.c.l.b16 %v1785
        %v1794 = vunpack.c.l.b16 %v1786
        %v1795 = vunpack.c.l.b16 %v1787
        %v1796 = vunpack.c.l.b16 %v1788
        %v1797 = vpack.c.b16 %v1794, %v1793
        %v1798 = vpack.c.b16 %v1796, %v1795
        %1801 = vst [vmem:[#allocation3 + $0x20] sm:$0xff] %v1797
        %1802 = vst [vmem:[#allocation3 + $0x28] sm:$0xff] %v1798
        %1803 = vrot.lane.b32.xlu0 %v1697, 65
        %v1804 = vpop.permute.xlu0 %1803
        %1805 = vrot.lane.b32.xlu0 %v1698, 65
        %v1806 = vpop.permute.xlu0 %1805
        %1807 = vrot.lane.b32.xlu0 %v1699, 65
        %v1808 = vpop.permute.xlu0 %1807
        %1809 = vrot.lane.b32.xlu0 %v1700, 65
        %v1810 = vpop.permute.xlu0 %1809
        %v1811 = vsel %vm424, %v1808, %v1810
        %v1812 = vsel %vm424, %v1806, %v1808
        %v1813 = vsel %vm424, %v1804, %v1806
        %v1814 = vsel %vm424, %v1810, %v1804
        %v1815 = vsel %vm437, %v1814, 0.0
        %v1816 = vsel %vm438, %v1813, 0.0
        %v1817 = vsel %vm439, %v1812, 0.0
        %v1818 = vsel %vm440, %v1811, 0.0
        %v1819 = vpack.c.bf16 %v1815, %v1815
        %v1820 = vpack.c.bf16 %v1816, %v1816
        %v1821 = vpack.c.bf16 %v1817, %v1817
        %v1822 = vpack.c.bf16 %v1818, %v1818
        %v1827 = vunpack.c.l.b16 %v1819
        %v1828 = vunpack.c.l.b16 %v1820
        %v1829 = vunpack.c.l.b16 %v1821
        %v1830 = vunpack.c.l.b16 %v1822
        %v1831 = vpack.c.b16 %v1828, %v1827
        %v1832 = vpack.c.b16 %v1830, %v1829
        %1835 = vst [vmem:[#allocation3 + $0x30] sm:$0xff] %v1831
        %1836 = vst [vmem:[#allocation3 + $0x38] sm:$0xff] %v1832
        %1837 = vrot.lane.b32.xlu0 %v1697, 64
        %v1838 = vpop.permute.xlu0 %1837
        %1839 = vrot.lane.b32.xlu0 %v1698, 64
        %v1840 = vpop.permute.xlu0 %1839
        %1841 = vrot.lane.b32.xlu0 %v1699, 64
        %v1842 = vpop.permute.xlu0 %1841
        %1843 = vrot.lane.b32.xlu0 %v1700, 64
        %v1844 = vpop.permute.xlu0 %1843
        %v1845 = vsel %vm473, %v1842, %v1844
        %v1846 = vsel %vm473, %v1840, %v1842
        %v1847 = vsel %vm473, %v1838, %v1840
        %v1848 = vsel %vm473, %v1844, %v1838
        %v1849 = vsel %vm482, %v1848, 0.0
        %v1850 = vsel %vm483, %v1847, 0.0
        %v1851 = vsel %vm484, %v1846, 0.0
        %v1852 = vsel %vm485, %v1845, 0.0
        %v1853 = vpack.c.bf16 %v1849, %v1849
        %v1854 = vpack.c.bf16 %v1850, %v1850
        %v1855 = vpack.c.bf16 %v1851, %v1851
        %v1856 = vpack.c.bf16 %v1852, %v1852
        %v1861 = vunpack.c.l.b16 %v1853
        %v1862 = vunpack.c.l.b16 %v1854
        %v1863 = vunpack.c.l.b16 %v1855
        %v1864 = vunpack.c.l.b16 %v1856
        %v1865 = vpack.c.b16 %v1862, %v1861
        %v1866 = vpack.c.b16 %v1864, %v1863
        %1869 = vst [vmem:[#allocation3 + $0x40] sm:$0xff] %v1865
        %1870 = vst [vmem:[#allocation3 + $0x48] sm:$0xff] %v1866
        %1871 = vrot.lane.b32.xlu0 %v1697, 63
        %v1872 = vpop.permute.xlu0 %1871
        %1873 = vrot.lane.b32.xlu0 %v1698, 63
        %v1874 = vpop.permute.xlu0 %1873
        %1875 = vrot.lane.b32.xlu0 %v1699, 63
        %v1876 = vpop.permute.xlu0 %1875
        %1877 = vrot.lane.b32.xlu0 %v1700, 63
        %v1878 = vpop.permute.xlu0 %1877
        %v1879 = vsel %vm516, %v1876, %v1878
        %v1880 = vsel %vm516, %v1874, %v1876
        %v1881 = vsel %vm516, %v1872, %v1874
        %v1882 = vsel %vm516, %v1878, %v1872
        %v1883 = vsel %vm529, %v1882, 0.0
        %v1884 = vsel %vm530, %v1881, 0.0
        %v1885 = vsel %vm531, %v1880, 0.0
        %v1886 = vsel %vm532, %v1879, 0.0
        %v1887 = vpack.c.bf16 %v1883, %v1883
        %v1888 = vpack.c.bf16 %v1884, %v1884
        %v1889 = vpack.c.bf16 %v1885, %v1885
        %v1890 = vpack.c.bf16 %v1886, %v1886
        %v1895 = vunpack.c.l.b16 %v1887
        %v1896 = vunpack.c.l.b16 %v1888
        %v1897 = vunpack.c.l.b16 %v1889
        %v1898 = vunpack.c.l.b16 %v1890
        %v1899 = vpack.c.b16 %v1896, %v1895
        %v1900 = vpack.c.b16 %v1898, %v1897
        %1903 = vst [vmem:[#allocation3 + $0x50] sm:$0xff] %v1899
        %1904 = vst [vmem:[#allocation3 + $0x58] sm:$0xff] %v1900
        %1905 = vrot.lane.b32.xlu0 %v1697, 57
        %v1906 = vpop.permute.xlu0 %1905
        %1907 = vrot.lane.b32.xlu0 %v1698, 57
        %v1908 = vpop.permute.xlu0 %1907
        %1909 = vrot.lane.b32.xlu0 %v1699, 57
        %v1910 = vpop.permute.xlu0 %1909
        %1911 = vrot.lane.b32.xlu0 %v1700, 57
        %v1912 = vpop.permute.xlu0 %1911
        %v1913 = vsel %vm565, %v1910, %v1912
        %v1914 = vsel %vm565, %v1908, %v1910
        %v1915 = vsel %vm565, %v1906, %v1908
        %v1916 = vsel %vm565, %v1912, %v1906
        %v1917 = vsel %vm586, %v1916, 0.0
        %v1918 = vsel %vm587, %v1915, 0.0
        %v1919 = vsel %vm588, %v1914, 0.0
        %v1920 = vsel %vm589, %v1913, 0.0
        %v1921 = vpack.c.bf16 %v1917, %v1917
        %v1922 = vpack.c.bf16 %v1918, %v1918
        %v1923 = vpack.c.bf16 %v1919, %v1919
        %v1924 = vpack.c.bf16 %v1920, %v1920
        %v1929 = vunpack.c.l.b16 %v1921
        %v1930 = vunpack.c.l.b16 %v1922
        %v1931 = vunpack.c.l.b16 %v1923
        %v1932 = vunpack.c.l.b16 %v1924
        %v1933 = vpack.c.b16 %v1930, %v1929
        %v1934 = vpack.c.b16 %v1932, %v1931
        %1937 = vst [vmem:[#allocation3 + $0x60] sm:$0xff] %v1933
        %1938 = vst [vmem:[#allocation3 + $0x68] sm:$0xff] %v1934
        %1939 = vrot.lane.b32.xlu0 %v1697, 56
        %v1940 = vpop.permute.xlu0 %1939
        %1941 = vrot.lane.b32.xlu0 %v1698, 56
        %v1942 = vpop.permute.xlu0 %1941
        %1943 = vrot.lane.b32.xlu0 %v1699, 56
        %v1944 = vpop.permute.xlu0 %1943
        %1945 = vrot.lane.b32.xlu0 %v1700, 56
        %v1946 = vpop.permute.xlu0 %1945
        %v1947 = vsel %vm620, %v1944, %v1946
        %v1948 = vsel %vm620, %v1942, %v1944
        %v1949 = vsel %vm620, %v1940, %v1942
        %v1950 = vsel %vm620, %v1946, %v1940
        %v1951 = vsel %vm629, %v1950, 0.0
        %v1952 = vsel %vm630, %v1949, 0.0
        %v1953 = vsel %vm631, %v1948, 0.0
        %v1954 = vsel %vm632, %v1947, 0.0
        %v1955 = vpack.c.bf16 %v1951, %v1951
        %v1956 = vpack.c.bf16 %v1952, %v1952
        %v1957 = vpack.c.bf16 %v1953, %v1953
        %v1958 = vpack.c.bf16 %v1954, %v1954
        %v1963 = vunpack.c.l.b16 %v1955
        %v1964 = vunpack.c.l.b16 %v1956
        %v1965 = vunpack.c.l.b16 %v1957
        %v1966 = vunpack.c.l.b16 %v1958
        %v1967 = vpack.c.b16 %v1964, %v1963
        %v1968 = vpack.c.b16 %v1966, %v1965
        %1971 = vst [vmem:[#allocation3 + $0x70] sm:$0xff] %v1967
        %1972 = vst [vmem:[#allocation3 + $0x78] sm:$0xff] %v1968
        %1973 = vrot.lane.b32.xlu0 %v1697, 55
        %v1974 = vpop.permute.xlu0 %1973
        %1975 = vrot.lane.b32.xlu0 %v1698, 55
        %v1976 = vpop.permute.xlu0 %1975
        %1977 = vrot.lane.b32.xlu0 %v1699, 55
        %v1978 = vpop.permute.xlu0 %1977
        %1979 = vrot.lane.b32.xlu0 %v1700, 55
        %v1980 = vpop.permute.xlu0 %1979
        %v1981 = vsel %vm665, %v1978, %v1980
        %v1982 = vsel %vm665, %v1976, %v1978
        %v1983 = vsel %vm665, %v1974, %v1976
        %v1984 = vsel %vm665, %v1980, %v1974
        %v1985 = vsel %vm678, %v1984, 0.0
        %v1986 = vsel %vm679, %v1983, 0.0
        %v1987 = vsel %vm680, %v1982, 0.0
        %v1988 = vsel %vm681, %v1981, 0.0
        %v1989 = vpack.c.bf16 %v1985, %v1985
        %v1990 = vpack.c.bf16 %v1986, %v1986
        %v1991 = vpack.c.bf16 %v1987, %v1987
        %v1992 = vpack.c.bf16 %v1988, %v1988
        %v1997 = vunpack.c.l.b16 %v1989
        %v1998 = vunpack.c.l.b16 %v1990
        %v1999 = vunpack.c.l.b16 %v1991
        %v2000 = vunpack.c.l.b16 %v1992
        %v2001 = vpack.c.b16 %v1998, %v1997
        %v2002 = vpack.c.b16 %v2000, %v1999
        %2005 = vst [vmem:[#allocation3 + $0x80] sm:$0xff] %v2001
        %2006 = vst [vmem:[#allocation3 + $0x88] sm:$0xff] %v2002
        %2007 = vrot.lane.b32.xlu0 %v1697, 9
        %v2008 = vpop.permute.xlu0 %2007
        %2009 = vrot.lane.b32.xlu0 %v1698, 9
        %v2010 = vpop.permute.xlu0 %2009
        %2011 = vrot.lane.b32.xlu0 %v1699, 9
        %v2012 = vpop.permute.xlu0 %2011
        %2013 = vrot.lane.b32.xlu0 %v1700, 9
        %v2014 = vpop.permute.xlu0 %2013
        %v2015 = vsel %vm712, %v2012, %v2014
        %v2016 = vsel %vm712, %v2010, %v2012
        %v2017 = vsel %vm712, %v2008, %v2010
        %v2018 = vsel %vm712, %v2014, %v2008
        %v2019 = vsel %vm725, %v2018, 0.0
        %v2020 = vsel %vm726, %v2017, 0.0
        %v2021 = vsel %vm727, %v2016, 0.0
        %v2022 = vsel %vm728, %v2015, 0.0
        %v2023 = vpack.c.bf16 %v2019, %v2019
        %v2024 = vpack.c.bf16 %v2020, %v2020
        %v2025 = vpack.c.bf16 %v2021, %v2021
        %v2026 = vpack.c.bf16 %v2022, %v2022
        %v2031 = vunpack.c.l.b16 %v2023
        %v2032 = vunpack.c.l.b16 %v2024
        %v2033 = vunpack.c.l.b16 %v2025
        %v2034 = vunpack.c.l.b16 %v2026
        %v2035 = vpack.c.b16 %v2032, %v2031
        %v2036 = vpack.c.b16 %v2034, %v2033
        %2039 = vst [vmem:[#allocation3 + $0x90] sm:$0xff] %v2035
        %2040 = vst [vmem:[#allocation3 + $0x98] sm:$0xff] %v2036
        %2041 = vrot.lane.b32.xlu0 %v1697, 8
        %v2042 = vpop.permute.xlu0 %2041
        %2043 = vrot.lane.b32.xlu0 %v1698, 8
        %v2044 = vpop.permute.xlu0 %2043
        %2045 = vrot.lane.b32.xlu0 %v1699, 8
        %v2046 = vpop.permute.xlu0 %2045
        %2047 = vrot.lane.b32.xlu0 %v1700, 8
        %v2048 = vpop.permute.xlu0 %2047
        %v2049 = vsel %vm761, %v2046, %v2048
        %v2050 = vsel %vm761, %v2044, %v2046
        %v2051 = vsel %vm761, %v2042, %v2044
        %v2052 = vsel %vm761, %v2048, %v2042
        %v2053 = vsel %vm770, %v2052, 0.0
        %v2054 = vsel %vm771, %v2051, 0.0
        %v2055 = vsel %vm772, %v2050, 0.0
        %v2056 = vsel %vm773, %v2049, 0.0
        %v2057 = vpack.c.bf16 %v2053, %v2053
        %v2058 = vpack.c.bf16 %v2054, %v2054
        %v2059 = vpack.c.bf16 %v2055, %v2055
        %v2060 = vpack.c.bf16 %v2056, %v2056
        %v2065 = vunpack.c.l.b16 %v2057
        %v2066 = vunpack.c.l.b16 %v2058
        %v2067 = vunpack.c.l.b16 %v2059
        %v2068 = vunpack.c.l.b16 %v2060
        %v2069 = vpack.c.b16 %v2066, %v2065
        %v2070 = vpack.c.b16 %v2068, %v2067
        %2073 = vst [vmem:[#allocation3 + $0xa0] sm:$0xff] %v2069
        %2074 = vst [vmem:[#allocation3 + $0xa8] sm:$0xff] %v2070
        %2075 = vrot.lane.b32.xlu0 %v1697, 7
        %v2076 = vpop.permute.xlu0 %2075
        %2077 = vrot.lane.b32.xlu0 %v1698, 7
        %v2078 = vpop.permute.xlu0 %2077
        %2079 = vrot.lane.b32.xlu0 %v1699, 7
        %v2080 = vpop.permute.xlu0 %2079
        %2081 = vrot.lane.b32.xlu0 %v1700, 7
        %v2082 = vpop.permute.xlu0 %2081
        %v2083 = vsel %vm804, %v2080, %v2082
        %v2084 = vsel %vm804, %v2078, %v2080
        %v2085 = vsel %vm804, %v2076, %v2078
        %v2086 = vsel %vm804, %v2082, %v2076
        %v2087 = vsel %vm817, %v2086, 0.0
        %v2088 = vsel %vm818, %v2085, 0.0
        %v2089 = vsel %vm819, %v2084, 0.0
        %v2090 = vsel %vm820, %v2083, 0.0
        %v2091 = vpack.c.bf16 %v2087, %v2087
        %v2092 = vpack.c.bf16 %v2088, %v2088
        %v2093 = vpack.c.bf16 %v2089, %v2089
        %v2094 = vpack.c.bf16 %v2090, %v2090
        %v2099 = vunpack.c.l.b16 %v2091
        %v2100 = vunpack.c.l.b16 %v2092
        %v2101 = vunpack.c.l.b16 %v2093
        %v2102 = vunpack.c.l.b16 %v2094
        %v2103 = vpack.c.b16 %v2100, %v2099
        %v2104 = vpack.c.b16 %v2102, %v2101
        %2107 = vst [vmem:[#allocation3 + $0xb0] sm:$0xff] %v2103
        %2108 = vst [vmem:[#allocation3 + $0xb8] sm:$0xff] %v2104
        %2109 = vrot.lane.b32.xlu0 %v1697, 1
        %v2110 = vpop.permute.xlu0 %2109
        %2111 = vrot.lane.b32.xlu0 %v1698, 1
        %v2112 = vpop.permute.xlu0 %2111
        %2113 = vrot.lane.b32.xlu0 %v1699, 1
        %v2114 = vpop.permute.xlu0 %2113
        %2115 = vrot.lane.b32.xlu0 %v1700, 1
        %v2116 = vpop.permute.xlu0 %2115
        %v2117 = vsel %vm853, %v2114, %v2116
        %v2118 = vsel %vm853, %v2112, %v2114
        %v2119 = vsel %vm853, %v2110, %v2112
        %v2120 = vsel %vm853, %v2116, %v2110
        %v2121 = vsel %vm862, %v2120, 0.0
        %v2122 = vsel %vm863, %v2119, 0.0
        %v2123 = vsel %vm864, %v2118, 0.0
        %v2124 = vsel %vm865, %v2117, 0.0
        %v2125 = vpack.c.bf16 %v2121, %v2121
        %v2126 = vpack.c.bf16 %v2122, %v2122
        %v2127 = vpack.c.bf16 %v2123, %v2123
        %v2128 = vpack.c.bf16 %v2124, %v2124
        %v2133 = vunpack.c.l.b16 %v2125
        %v2134 = vunpack.c.l.b16 %v2126
        %v2135 = vunpack.c.l.b16 %v2127
        %v2136 = vunpack.c.l.b16 %v2128
        %v2137 = vpack.c.b16 %v2134, %v2133
        %v2138 = vpack.c.b16 %v2136, %v2135
        %2141 = vst [vmem:[#allocation3 + $0xc0] sm:$0xff] %v2137
        %2142 = vst [vmem:[#allocation3 + $0xc8] sm:$0xff] %v2138
        %v2143 = vpack.c.bf16 %v1697, %v1697
        %v2144 = vpack.c.bf16 %v1698, %v1698
        %v2145 = vpack.c.bf16 %v1699, %v1699
        %v2146 = vpack.c.bf16 %v1700, %v1700
        %v2151 = vunpack.c.l.b16 %v2143
        %v2152 = vunpack.c.l.b16 %v2144
        %v2153 = vunpack.c.l.b16 %v2145
        %v2154 = vunpack.c.l.b16 %v2146
        %v2155 = vpack.c.b16 %v2152, %v2151
        %v2156 = vpack.c.b16 %v2154, %v2153
        %2159 = vst [vmem:[#allocation3 + $0xd0] sm:$0xff] %v2155
        %2160 = vst [vmem:[#allocation3 + $0xd8] sm:$0xff] %v2156
        %2161 = vrot.lane.b32.xlu0 %v1697, 127
        %v2162 = vpop.permute.xlu0 %2161
        %2163 = vrot.lane.b32.xlu0 %v1698, 127
        %v2164 = vpop.permute.xlu0 %2163
        %2165 = vrot.lane.b32.xlu0 %v1699, 127
        %v2166 = vpop.permute.xlu0 %2165
        %2167 = vrot.lane.b32.xlu0 %v1700, 127
        %v2168 = vpop.permute.xlu0 %2167
        %v2169 = vsel %vm916, %v2166, %v2168
        %v2170 = vsel %vm916, %v2164, %v2166
        %v2171 = vsel %vm916, %v2162, %v2164
        %v2172 = vsel %vm916, %v2168, %v2162
        %v2173 = vsel %vm925, %v2171, 0.0
        %v2174 = vsel %vm926, %v2170, 0.0
        %v2175 = vsel %vm927, %v2169, 0.0
        %v2176 = vsel %vm928, %v2172, 0.0
        %v2177 = vpack.c.bf16 %v2173, %v2173
        %v2178 = vpack.c.bf16 %v2174, %v2174
        %v2179 = vpack.c.bf16 %v2175, %v2175
        %v2180 = vpack.c.bf16 %v2176, %v2176
        %v2185 = vunpack.c.l.b16 %v2177
        %v2186 = vunpack.c.l.b16 %v2178
        %v2187 = vunpack.c.l.b16 %v2179
        %v2188 = vunpack.c.l.b16 %v2180
        %v2189 = vpack.c.b16 %v2186, %v2185
        %v2190 = vpack.c.b16 %v2188, %v2187
        %2193 = vst [vmem:[#allocation3 + $0xe0] sm:$0xff] %v2189
        %2194 = vst [vmem:[#allocation3 + $0xe8] sm:$0xff] %v2190
        %2195 = vrot.lane.b32.xlu0 %v1697, 121
        %v2196 = vpop.permute.xlu0 %2195
        %2197 = vrot.lane.b32.xlu0 %v1698, 121
        %v2198 = vpop.permute.xlu0 %2197
        %2199 = vrot.lane.b32.xlu0 %v1699, 121
        %v2200 = vpop.permute.xlu0 %2199
        %2201 = vrot.lane.b32.xlu0 %v1700, 121
        %v2202 = vpop.permute.xlu0 %2201
        %v2203 = vsel %vm959, %v2200, %v2202
        %v2204 = vsel %vm959, %v2198, %v2200
        %v2205 = vsel %vm959, %v2196, %v2198
        %v2206 = vsel %vm959, %v2202, %v2196
        %v2207 = vsel %vm972, %v2205, 0.0
        %v2208 = vsel %vm973, %v2204, 0.0
        %v2209 = vsel %vm974, %v2203, 0.0
        %v2210 = vsel %vm975, %v2206, 0.0
        %v2211 = vpack.c.bf16 %v2207, %v2207
        %v2212 = vpack.c.bf16 %v2208, %v2208
        %v2213 = vpack.c.bf16 %v2209, %v2209
        %v2214 = vpack.c.bf16 %v2210, %v2210
        %v2219 = vunpack.c.l.b16 %v2211
        %v2220 = vunpack.c.l.b16 %v2212
        %v2221 = vunpack.c.l.b16 %v2213
        %v2222 = vunpack.c.l.b16 %v2214
        %v2223 = vpack.c.b16 %v2220, %v2219
        %v2224 = vpack.c.b16 %v2222, %v2221
        %2227 = vst [vmem:[#allocation3 + $0xf0] sm:$0xff] %v2223
        %2228 = vst [vmem:[#allocation3 + $0xf8] sm:$0xff] %v2224
        %2229 = vrot.lane.b32.xlu0 %v1697, 120
        %v2230 = vpop.permute.xlu0 %2229
        %2231 = vrot.lane.b32.xlu0 %v1698, 120
        %v2232 = vpop.permute.xlu0 %2231
        %2233 = vrot.lane.b32.xlu0 %v1699, 120
        %v2234 = vpop.permute.xlu0 %2233
        %2235 = vrot.lane.b32.xlu0 %v1700, 120
        %v2236 = vpop.permute.xlu0 %2235
        %v2237 = vsel %vm1008, %v2234, %v2236
        %v2238 = vsel %vm1008, %v2232, %v2234
        %v2239 = vsel %vm1008, %v2230, %v2232
        %v2240 = vsel %vm1008, %v2236, %v2230
        %v2241 = vsel %vm1017, %v2239, 0.0
        %v2242 = vsel %vm1018, %v2238, 0.0
        %v2243 = vsel %vm1019, %v2237, 0.0
        %v2244 = vsel %vm1020, %v2240, 0.0
        %v2245 = vpack.c.bf16 %v2241, %v2241
        %v2246 = vpack.c.bf16 %v2242, %v2242
        %v2247 = vpack.c.bf16 %v2243, %v2243
        %v2248 = vpack.c.bf16 %v2244, %v2244
        %v2253 = vunpack.c.l.b16 %v2245
        %v2254 = vunpack.c.l.b16 %v2246
        %v2255 = vunpack.c.l.b16 %v2247
        %v2256 = vunpack.c.l.b16 %v2248
        %v2257 = vpack.c.b16 %v2254, %v2253
        %v2258 = vpack.c.b16 %v2256, %v2255
        %2261 = vst [vmem:[#allocation3 + $0x100] sm:$0xff] %v2257
        %2262 = vst [vmem:[#allocation3 + $0x108] sm:$0xff] %v2258
        %2263 = vrot.lane.b32.xlu0 %v1697, 119
        %v2264 = vpop.permute.xlu0 %2263
        %2265 = vrot.lane.b32.xlu0 %v1698, 119
        %v2266 = vpop.permute.xlu0 %2265
        %2267 = vrot.lane.b32.xlu0 %v1699, 119
        %v2268 = vpop.permute.xlu0 %2267
        %2269 = vrot.lane.b32.xlu0 %v1700, 119
        %v2270 = vpop.permute.xlu0 %2269
        %v2271 = vsel %vm1051, %v2268, %v2270
        %v2272 = vsel %vm1051, %v2266, %v2268
        %v2273 = vsel %vm1051, %v2264, %v2266
        %v2274 = vsel %vm1051, %v2270, %v2264
        %v2275 = vsel %vm1064, %v2273, 0.0
        %v2276 = vsel %vm1065, %v2272, 0.0
        %v2277 = vsel %vm1066, %v2271, 0.0
        %v2278 = vsel %vm1067, %v2274, 0.0
        %v2279 = vpack.c.bf16 %v2275, %v2275
        %v2280 = vpack.c.bf16 %v2276, %v2276
        %v2281 = vpack.c.bf16 %v2277, %v2277
        %v2282 = vpack.c.bf16 %v2278, %v2278
        %v2287 = vunpack.c.l.b16 %v2279
        %v2288 = vunpack.c.l.b16 %v2280
        %v2289 = vunpack.c.l.b16 %v2281
        %v2290 = vunpack.c.l.b16 %v2282
        %v2291 = vpack.c.b16 %v2288, %v2287
        %v2292 = vpack.c.b16 %v2290, %v2289
        %2295 = vst [vmem:[#allocation3 + $0x110] sm:$0xff] %v2291
        %2296 = vst [vmem:[#allocation3 + $0x118] sm:$0xff] %v2292
        %v2297 = vsel %vm1108, %v1711, 0.0
        %v2298 = vsel %vm1109, %v1710, 0.0
        %v2299 = vsel %vm1110, %v1709, 0.0
        %v2300 = vsel %vm1111, %v1712, 0.0
        %v2301 = vpack.c.bf16 %v2297, %v2297
        %v2302 = vpack.c.bf16 %v2298, %v2298
        %v2303 = vpack.c.bf16 %v2299, %v2299
        %v2304 = vpack.c.bf16 %v2300, %v2300
        %v2309 = vunpack.c.l.b16 %v2301
        %v2310 = vunpack.c.l.b16 %v2302
        %v2311 = vunpack.c.l.b16 %v2303
        %v2312 = vunpack.c.l.b16 %v2304
        %v2313 = vpack.c.b16 %v2310, %v2309
        %v2314 = vpack.c.b16 %v2312, %v2311
        %2317 = vst [vmem:[#allocation3 + $0x120] sm:$0xff] %v2313
        %2318 = vst [vmem:[#allocation3 + $0x128] sm:$0xff] %v2314
        %v2319 = vsel %vm1138, %v1745, 0.0
        %v2320 = vsel %vm1139, %v1744, 0.0
        %v2321 = vsel %vm1140, %v1743, 0.0
        %v2322 = vsel %vm1141, %v1746, 0.0
        %v2323 = vpack.c.bf16 %v2319, %v2319
        %v2324 = vpack.c.bf16 %v2320, %v2320
        %v2325 = vpack.c.bf16 %v2321, %v2321
        %v2326 = vpack.c.bf16 %v2322, %v2322
        %v2331 = vunpack.c.l.b16 %v2323
        %v2332 = vunpack.c.l.b16 %v2324
        %v2333 = vunpack.c.l.b16 %v2325
        %v2334 = vunpack.c.l.b16 %v2326
        %v2335 = vpack.c.b16 %v2332, %v2331
        %v2336 = vpack.c.b16 %v2334, %v2333
        %2339 = vst [vmem:[#allocation3 + $0x130] sm:$0xff] %v2335
        %2340 = vst [vmem:[#allocation3 + $0x138] sm:$0xff] %v2336
        %v2341 = vsel %vm1174, %v1779, 0.0
        %v2342 = vsel %vm1175, %v1778, 0.0
        %v2343 = vsel %vm1176, %v1777, 0.0
        %v2344 = vsel %vm1177, %v1780, 0.0
        %v2345 = vpack.c.bf16 %v2341, %v2341
        %v2346 = vpack.c.bf16 %v2342, %v2342
        %v2347 = vpack.c.bf16 %v2343, %v2343
        %v2348 = vpack.c.bf16 %v2344, %v2344
        %v2353 = vunpack.c.l.b16 %v2345
        %v2354 = vunpack.c.l.b16 %v2346
        %v2355 = vunpack.c.l.b16 %v2347
        %v2356 = vunpack.c.l.b16 %v2348
        %v2357 = vpack.c.b16 %v2354, %v2353
        %v2358 = vpack.c.b16 %v2356, %v2355
        %2361 = vst [vmem:[#allocation3 + $0x140] sm:$0xff] %v2357
        %2362 = vst [vmem:[#allocation3 + $0x148] sm:$0xff] %v2358
        %v2363 = vsel %vm1208, %v1813, 0.0
        %v2364 = vsel %vm1209, %v1812, 0.0
        %v2365 = vsel %vm1210, %v1811, 0.0
        %v2366 = vsel %vm1211, %v1814, 0.0
        %v2367 = vpack.c.bf16 %v2363, %v2363
        %v2368 = vpack.c.bf16 %v2364, %v2364
        %v2369 = vpack.c.bf16 %v2365, %v2365
        %v2370 = vpack.c.bf16 %v2366, %v2366
        %v2375 = vunpack.c.l.b16 %v2367
        %v2376 = vunpack.c.l.b16 %v2368
        %v2377 = vunpack.c.l.b16 %v2369
        %v2378 = vunpack.c.l.b16 %v2370
        %v2379 = vpack.c.b16 %v2376, %v2375
        %v2380 = vpack.c.b16 %v2378, %v2377
        %2383 = vst [vmem:[#allocation3 + $0x150] sm:$0xff] %v2379
        %2384 = vst [vmem:[#allocation3 + $0x158] sm:$0xff] %v2380
        %v2385 = vsel %vm1240, %v1847, 0.0
        %v2386 = vsel %vm1241, %v1846, 0.0
        %v2387 = vsel %vm1242, %v1845, 0.0
        %v2388 = vsel %vm1243, %v1848, 0.0
        %v2389 = vpack.c.bf16 %v2385, %v2385
        %v2390 = vpack.c.bf16 %v2386, %v2386
        %v2391 = vpack.c.bf16 %v2387, %v2387
        %v2392 = vpack.c.bf16 %v2388, %v2388
        %v2397 = vunpack.c.l.b16 %v2389
        %v2398 = vunpack.c.l.b16 %v2390
        %v2399 = vunpack.c.l.b16 %v2391
        %v2400 = vunpack.c.l.b16 %v2392
        %v2401 = vpack.c.b16 %v2398, %v2397
        %v2402 = vpack.c.b16 %v2400, %v2399
        %2405 = vst [vmem:[#allocation3 + $0x160] sm:$0xff] %v2401
        %2406 = vst [vmem:[#allocation3 + $0x168] sm:$0xff] %v2402
        %v2407 = vsel %vm1274, %v1881, 0.0
        %v2408 = vsel %vm1275, %v1880, 0.0
        %v2409 = vsel %vm1276, %v1879, 0.0
        %v2410 = vsel %vm1277, %v1882, 0.0
        %v2411 = vpack.c.bf16 %v2407, %v2407
        %v2412 = vpack.c.bf16 %v2408, %v2408
        %v2413 = vpack.c.bf16 %v2409, %v2409
        %v2414 = vpack.c.bf16 %v2410, %v2410
        %v2419 = vunpack.c.l.b16 %v2411
        %v2420 = vunpack.c.l.b16 %v2412
        %v2421 = vunpack.c.l.b16 %v2413
        %v2422 = vunpack.c.l.b16 %v2414
        %v2423 = vpack.c.b16 %v2420, %v2419
        %v2424 = vpack.c.b16 %v2422, %v2421
        %2427 = vst [vmem:[#allocation3 + $0x170] sm:$0xff] %v2423
        %2428 = vst [vmem:[#allocation3 + $0x178] sm:$0xff] %v2424
        %v2429 = vsel %vm1314, %v1915, 0.0
        %v2430 = vsel %vm1315, %v1914, 0.0
        %v2431 = vsel %vm1316, %v1913, 0.0
        %v2432 = vsel %vm1317, %v1916, 0.0
        %v2433 = vpack.c.bf16 %v2429, %v2429
        %v2434 = vpack.c.bf16 %v2430, %v2430
        %v2435 = vpack.c.bf16 %v2431, %v2431
        %v2436 = vpack.c.bf16 %v2432, %v2432
        %v2441 = vunpack.c.l.b16 %v2433
        %v2442 = vunpack.c.l.b16 %v2434
        %v2443 = vunpack.c.l.b16 %v2435
        %v2444 = vunpack.c.l.b16 %v2436
        %v2445 = vpack.c.b16 %v2442, %v2441
        %v2446 = vpack.c.b16 %v2444, %v2443
        %2449 = vst [vmem:[#allocation3 + $0x180] sm:$0xff] %v2445
        %2450 = vst [vmem:[#allocation3 + $0x188] sm:$0xff] %v2446
        %v2451 = vsel %vm1344, %v1949, 0.0
        %v2452 = vsel %vm1345, %v1948, 0.0
        %v2453 = vsel %vm1346, %v1947, 0.0
        %v2454 = vsel %vm1347, %v1950, 0.0
        %v2455 = vpack.c.bf16 %v2451, %v2451
        %v2456 = vpack.c.bf16 %v2452, %v2452
        %v2457 = vpack.c.bf16 %v2453, %v2453
        %v2458 = vpack.c.bf16 %v2454, %v2454
        %v2463 = vunpack.c.l.b16 %v2455
        %v2464 = vunpack.c.l.b16 %v2456
        %v2465 = vunpack.c.l.b16 %v2457
        %v2466 = vunpack.c.l.b16 %v2458
        %v2467 = vpack.c.b16 %v2464, %v2463
        %v2468 = vpack.c.b16 %v2466, %v2465
        %2471 = vst [vmem:[#allocation3 + $0x190] sm:$0xff] %v2467
        %2472 = vst [vmem:[#allocation3 + $0x198] sm:$0xff] %v2468
        %v2473 = vsel %vm1380, %v1983, 0.0
        %v2474 = vsel %vm1381, %v1982, 0.0
        %v2475 = vsel %vm1382, %v1981, 0.0
        %v2476 = vsel %vm1383, %v1984, 0.0
        %v2477 = vpack.c.bf16 %v2473, %v2473
        %v2478 = vpack.c.bf16 %v2474, %v2474
        %v2479 = vpack.c.bf16 %v2475, %v2475
        %v2480 = vpack.c.bf16 %v2476, %v2476
        %v2485 = vunpack.c.l.b16 %v2477
        %v2486 = vunpack.c.l.b16 %v2478
        %v2487 = vunpack.c.l.b16 %v2479
        %v2488 = vunpack.c.l.b16 %v2480
        %v2489 = vpack.c.b16 %v2486, %v2485
        %v2490 = vpack.c.b16 %v2488, %v2487
        %2493 = vst [vmem:[#allocation3 + $0x1a0] sm:$0xff] %v2489
        %2494 = vst [vmem:[#allocation3 + $0x1a8] sm:$0xff] %v2490
        %v2495 = vld [vmem:[%s2] sm:$0xff]
        %v2496 = vld [vmem:[#allocation3] sm:$0xff]
        %v2497 = vld [vmem:[#allocation3 + $0x8] sm:$0xff]
        %v2498 = vld [vmem:[#allocation3 + $0x10] sm:$0xff]
        %v2499 = vld [vmem:[#allocation3 + $0x18] sm:$0xff]
        %v2500 = vld [vmem:[#allocation3 + $0x20] sm:$0xff]
        %v2501 = vld [vmem:[#allocation3 + $0x28] sm:$0xff]
        %v2502 = vld [vmem:[#allocation3 + $0x30] sm:$0xff]
        %v2503 = vld [vmem:[#allocation3 + $0x38] sm:$0xff]
        %v2504 = vld [vmem:[#allocation3 + $0x40] sm:$0xff]
        %v2505 = vld [vmem:[#allocation3 + $0x48] sm:$0xff]
        %v2506 = vld [vmem:[#allocation3 + $0x50] sm:$0xff]
        %v2507 = vld [vmem:[#allocation3 + $0x58] sm:$0xff]
        %v2508 = vld [vmem:[#allocation3 + $0x60] sm:$0xff]
        %v2509 = vld [vmem:[#allocation3 + $0x68] sm:$0xff]
        %v2510 = vld [vmem:[#allocation3 + $0x70] sm:$0xff]
        %v2511 = vld [vmem:[#allocation3 + $0x78] sm:$0xff]
        %v2512 = vld [vmem:[#allocation3 + $0x80] sm:$0xff]
        %v2513 = vld [vmem:[#allocation3 + $0x88] sm:$0xff]
        %v2514 = vld [vmem:[#allocation3 + $0x90] sm:$0xff]
        %v2515 = vld [vmem:[#allocation3 + $0x98] sm:$0xff]
        %v2516 = vld [vmem:[#allocation3 + $0xa0] sm:$0xff]
        %v2517 = vld [vmem:[#allocation3 + $0xa8] sm:$0xff]
        %v2518 = vld [vmem:[#allocation3 + $0xb0] sm:$0xff]
        %v2519 = vld [vmem:[#allocation3 + $0xb8] sm:$0xff]
        %v2520 = vld [vmem:[#allocation3 + $0xc0] sm:$0xff]
        %v2521 = vld [vmem:[#allocation3 + $0xc8] sm:$0xff]
        %v2522 = vld [vmem:[#allocation3 + $0xd0] sm:$0xff]
        %v2523 = vld [vmem:[#allocation3 + $0xd8] sm:$0xff]
        %v2524 = vld [vmem:[#allocation3 + $0xe0] sm:$0xff]
        %v2525 = vld [vmem:[#allocation3 + $0xe8] sm:$0xff]
        %v2526 = vld [vmem:[#allocation3 + $0xf0] sm:$0xff]
        %v2527 = vld [vmem:[#allocation3 + $0xf8] sm:$0xff]
        %v2528 = vld [vmem:[#allocation3 + $0x100] sm:$0xff]
        %v2529 = vld [vmem:[#allocation3 + $0x108] sm:$0xff]
        %v2530 = vld [vmem:[#allocation3 + $0x110] sm:$0xff]
        %v2531 = vld [vmem:[#allocation3 + $0x118] sm:$0xff]
        %v2532 = vld [vmem:[#allocation3 + $0x120] sm:$0xff]
        %v2533 = vld [vmem:[#allocation3 + $0x128] sm:$0xff]
        %v2534 = vld [vmem:[#allocation3 + $0x130] sm:$0xff]
        %v2535 = vld [vmem:[#allocation3 + $0x138] sm:$0xff]
        %v2536 = vld [vmem:[#allocation3 + $0x140] sm:$0xff]
        %v2537 = vld [vmem:[#allocation3 + $0x148] sm:$0xff]
        %v2538 = vld [vmem:[#allocation3 + $0x150] sm:$0xff]
        %v2539 = vld [vmem:[#allocation3 + $0x158] sm:$0xff]
        %v2540 = vld [vmem:[#allocation3 + $0x160] sm:$0xff]
        %v2541 = vld [vmem:[#allocation3 + $0x168] sm:$0xff]
        %v2542 = vld [vmem:[#allocation3 + $0x170] sm:$0xff]
        %v2543 = vld [vmem:[#allocation3 + $0x178] sm:$0xff]
        %v2544 = vld [vmem:[#allocation3 + $0x180] sm:$0xff]
        %v2545 = vld [vmem:[#allocation3 + $0x188] sm:$0xff]
        %v2546 = vld [vmem:[#allocation3 + $0x190] sm:$0xff]
        %v2547 = vld [vmem:[#allocation3 + $0x198] sm:$0xff]
        %v2548 = vld [vmem:[#allocation3 + $0x1a0] sm:$0xff]
        %v2549 = vld [vmem:[#allocation3 + $0x1a8] sm:$0xff]
        %v2551 = vunpack.c.l.b16 %v2495
        %v2552 = vunpack.c.h.b16 %v2495
        %v2553 = vpack.c.b16 %v2551, %v2551
        %v2554 = vpack.c.b16 %v2552, %v2552
        %v2610 = vunpack.c.l.b16 %v2496
        %v2611 = vunpack.c.h.b16 %v2496
        %v2612 = vunpack.c.l.b16 %v2497
        %v2613 = vunpack.c.h.b16 %v2497
        %v2614 = vunpack.c.l.b16 %v2498
        %v2615 = vunpack.c.h.b16 %v2498
        %v2616 = vunpack.c.l.b16 %v2499
        %v2617 = vunpack.c.h.b16 %v2499
        %v2618 = vunpack.c.l.b16 %v2500
        %v2619 = vunpack.c.h.b16 %v2500
        %v2620 = vunpack.c.l.b16 %v2501
        %v2621 = vunpack.c.h.b16 %v2501
        %v2622 = vunpack.c.l.b16 %v2502
        %v2623 = vunpack.c.h.b16 %v2502
        %v2624 = vunpack.c.l.b16 %v2503
        %v2625 = vunpack.c.h.b16 %v2503
        %v2626 = vunpack.c.l.b16 %v2504
        %v2627 = vunpack.c.h.b16 %v2504
        %v2628 = vunpack.c.l.b16 %v2505
        %v2629 = vunpack.c.h.b16 %v2505
        %v2630 = vunpack.c.l.b16 %v2506
        %v2631 = vunpack.c.h.b16 %v2506
        %v2632 = vunpack.c.l.b16 %v2507
        %v2633 = vunpack.c.h.b16 %v2507
        %v2634 = vunpack.c.l.b16 %v2508
        %v2635 = vunpack.c.h.b16 %v2508
        %v2636 = vunpack.c.l.b16 %v2509
        %v2637 = vunpack.c.h.b16 %v2509
        %v2638 = vunpack.c.l.b16 %v2510
        %v2639 = vunpack.c.h.b16 %v2510
        %v2640 = vunpack.c.l.b16 %v2511
        %v2641 = vunpack.c.h.b16 %v2511
        %v2642 = vunpack.c.l.b16 %v2512
        %v2643 = vunpack.c.h.b16 %v2512
        %v2644 = vunpack.c.l.b16 %v2513
        %v2645 = vunpack.c.h.b16 %v2513
        %v2646 = vunpack.c.l.b16 %v2514
        %v2647 = vunpack.c.h.b16 %v2514
        %v2648 = vunpack.c.l.b16 %v2515
        %v2649 = vunpack.c.h.b16 %v2515
        %v2650 = vunpack.c.l.b16 %v2516
        %v2651 = vunpack.c.h.b16 %v2516
        %v2652 = vunpack.c.l.b16 %v2517
        %v2653 = vunpack.c.h.b16 %v2517
        %v2654 = vunpack.c.l.b16 %v2518
        %v2655 = vunpack.c.h.b16 %v2518
        %v2656 = vunpack.c.l.b16 %v2519
        %v2657 = vunpack.c.h.b16 %v2519
        %v2658 = vunpack.c.l.b16 %v2520
        %v2659 = vunpack.c.h.b16 %v2520
        %v2660 = vunpack.c.l.b16 %v2521
        %v2661 = vunpack.c.h.b16 %v2521
        %v2662 = vunpack.c.l.b16 %v2522
        %v2663 = vunpack.c.h.b16 %v2522
        %v2664 = vunpack.c.l.b16 %v2523
        %v2665 = vunpack.c.h.b16 %v2523
        %v2666 = vunpack.c.l.b16 %v2524
        %v2667 = vunpack.c.h.b16 %v2524
        %v2668 = vunpack.c.l.b16 %v2525
        %v2669 = vunpack.c.h.b16 %v2525
        %v2670 = vunpack.c.l.b16 %v2526
        %v2671 = vunpack.c.h.b16 %v2526
        %v2672 = vunpack.c.l.b16 %v2527
        %v2673 = vunpack.c.h.b16 %v2527
        %v2674 = vunpack.c.l.b16 %v2528
        %v2675 = vunpack.c.h.b16 %v2528
        %v2676 = vunpack.c.l.b16 %v2529
        %v2677 = vunpack.c.h.b16 %v2529
        %v2678 = vunpack.c.l.b16 %v2530
        %v2679 = vunpack.c.h.b16 %v2530
        %v2680 = vunpack.c.l.b16 %v2531
        %v2681 = vunpack.c.h.b16 %v2531
        %v2682 = vunpack.c.l.b16 %v2532
        %v2683 = vunpack.c.h.b16 %v2532
        %v2684 = vunpack.c.l.b16 %v2533
        %v2685 = vunpack.c.h.b16 %v2533
        %v2686 = vunpack.c.l.b16 %v2534
        %v2687 = vunpack.c.h.b16 %v2534
        %v2688 = vunpack.c.l.b16 %v2535
        %v2689 = vunpack.c.h.b16 %v2535
        %v2690 = vunpack.c.l.b16 %v2536
        %v2691 = vunpack.c.h.b16 %v2536
        %v2692 = vunpack.c.l.b16 %v2537
        %v2693 = vunpack.c.h.b16 %v2537
        %v2694 = vunpack.c.l.b16 %v2538
        %v2695 = vunpack.c.h.b16 %v2538
        %v2696 = vunpack.c.l.b16 %v2539
        %v2697 = vunpack.c.h.b16 %v2539
        %v2698 = vunpack.c.l.b16 %v2540
        %v2699 = vunpack.c.h.b16 %v2540
        %v2700 = vunpack.c.l.b16 %v2541
        %v2701 = vunpack.c.h.b16 %v2541
        %v2702 = vunpack.c.l.b16 %v2542
        %v2703 = vunpack.c.h.b16 %v2542
        %v2704 = vunpack.c.l.b16 %v2543
        %v2705 = vunpack.c.h.b16 %v2543
        %v2706 = vunpack.c.l.b16 %v2544
        %v2707 = vunpack.c.h.b16 %v2544
        %v2708 = vunpack.c.l.b16 %v2545
        %v2709 = vunpack.c.h.b16 %v2545
        %v2710 = vunpack.c.l.b16 %v2546
        %v2711 = vunpack.c.h.b16 %v2546
        %v2712 = vunpack.c.l.b16 %v2547
        %v2713 = vunpack.c.h.b16 %v2547
        %v2714 = vunpack.c.l.b16 %v2548
        %v2715 = vunpack.c.h.b16 %v2548
        %v2716 = vunpack.c.l.b16 %v2549
        %v2717 = vunpack.c.h.b16 %v2549
        %v2718 = vpack.c.b16 %v2614, %v2610
        %v2719 = vpack.c.b16 %v2615, %v2611
        %v2720 = vpack.c.b16 %v2616, %v2612
        %v2721 = vpack.c.b16 %v2617, %v2613
        %v2722 = vpack.c.b16 %v2622, %v2618
        %v2723 = vpack.c.b16 %v2623, %v2619
        %v2724 = vpack.c.b16 %v2624, %v2620
        %v2725 = vpack.c.b16 %v2625, %v2621
        %v2726 = vpack.c.b16 %v2630, %v2626
        %v2727 = vpack.c.b16 %v2631, %v2627
        %v2728 = vpack.c.b16 %v2632, %v2628
        %v2729 = vpack.c.b16 %v2633, %v2629
        %v2730 = vpack.c.b16 %v2638, %v2634
        %v2731 = vpack.c.b16 %v2639, %v2635
        %v2732 = vpack.c.b16 %v2640, %v2636
        %v2733 = vpack.c.b16 %v2641, %v2637
        %v2734 = vpack.c.b16 %v2646, %v2642
        %v2735 = vpack.c.b16 %v2647, %v2643
        %v2736 = vpack.c.b16 %v2648, %v2644
        %v2737 = vpack.c.b16 %v2649, %v2645
        %v2738 = vpack.c.b16 %v2654, %v2650
        %v2739 = vpack.c.b16 %v2655, %v2651
        %v2740 = vpack.c.b16 %v2656, %v2652
        %v2741 = vpack.c.b16 %v2657, %v2653
        %v2742 = vpack.c.b16 %v2662, %v2658
        %v2743 = vpack.c.b16 %v2663, %v2659
        %v2744 = vpack.c.b16 %v2664, %v2660
        %v2745 = vpack.c.b16 %v2665, %v2661
        %v2746 = vpack.c.b16 %v2670, %v2666
        %v2747 = vpack.c.b16 %v2671, %v2667
        %v2748 = vpack.c.b16 %v2672, %v2668
        %v2749 = vpack.c.b16 %v2673, %v2669
        %v2750 = vpack.c.b16 %v2678, %v2674
        %v2751 = vpack.c.b16 %v2679, %v2675
        %v2752 = vpack.c.b16 %v2680, %v2676
        %v2753 = vpack.c.b16 %v2681, %v2677
        %v2754 = vpack.c.b16 %v2686, %v2682
        %v2755 = vpack.c.b16 %v2687, %v2683
        %v2756 = vpack.c.b16 %v2688, %v2684
        %v2757 = vpack.c.b16 %v2689, %v2685
        %v2758 = vpack.c.b16 %v2694, %v2690
        %v2759 = vpack.c.b16 %v2695, %v2691
        %v2760 = vpack.c.b16 %v2696, %v2692
        %v2761 = vpack.c.b16 %v2697, %v2693
        %v2762 = vpack.c.b16 %v2702, %v2698
        %v2763 = vpack.c.b16 %v2703, %v2699
        %v2764 = vpack.c.b16 %v2704, %v2700
        %v2765 = vpack.c.b16 %v2705, %v2701
        %v2766 = vpack.c.b16 %v2710, %v2706
        %v2767 = vpack.c.b16 %v2711, %v2707
        %v2768 = vpack.c.b16 %v2712, %v2708
        %v2769 = vpack.c.b16 %v2713, %v2709
        %v2770 = vpack.c.b16 %v2714, %v2714
        %v2771 = vpack.c.b16 %v2715, %v2715
        %v2772 = vpack.c.b16 %v2716, %v2716
        %v2773 = vpack.c.b16 %v2717, %v2717
        %vm2826 = vcmask 719872
        %v2828 = vsel %vm2826, %v2554, 0
        %vm2830 = vcmask 1043456
        %v2832 = vsel %vm2830, %v2770, 0
        %v2835 = vsel %vm2830, %v2771, 0
        %v2838 = vsel %vm2830, %v2772, 0
        %v2841 = vsel %vm2830, %v2773, 0
        %2843 = vmatprep.subr.bf16.mxu0 %v2747
        %2844 = vmatpush1.bf16.msra.mxu0 %v2746
        %2845 = vmatprep.subr.bf16.mxu0 %v2743
        %2846 = vmatpush1.bf16.msra.mxu0 %v2742
        %2847 = vmatprep.subr.bf16.mxu0 %v2739
        %2848 = vmatpush1.bf16.msra.mxu0 %v2738
        %2849 = vmatprep.subr.bf16.mxu0 %v2735
        %2850 = vmatpush1.bf16.msra.mxu0 %v2734
        %2851 = vmatprep.subr.bf16.mxu0 %v2731
        %2852 = vmatpush1.bf16.msra.mxu0 %v2730
        %2853 = vmatprep.subr.bf16.mxu0 %v2727
        %2854 = vmatpush1.bf16.msra.mxu0 %v2726
        %2855 = vmatprep.subr.bf16.mxu0 %v2723
        %2856 = vmatpush1.bf16.msra.mxu0 %v2722
        %2857 = vmatprep.subr.bf16.mxu0 %v2719
        %2858 = vmatpush1.bf16.msra.mxu0 %v2718
        %2859 = vmatprep.subr.bf16.mxu0 0
        %2860 = vmatpush2.bf16.msra.mxu0 0
        %2861 = vmatprep.subr.bf16.mxu0 0
        %2862 = vmatpush2.bf16.msra.mxu0 0
        %2863 = vmatprep.subr.bf16.mxu0 %v2835
        %2864 = vmatpush2.bf16.msra.mxu0 %v2832
        %2865 = vmatprep.subr.bf16.mxu0 %v2767
        %2866 = vmatpush2.bf16.msra.mxu0 %v2766
        %2867 = vmatprep.subr.bf16.mxu0 %v2763
        %2868 = vmatpush2.bf16.msra.mxu0 %v2762
        %2869 = vmatprep.subr.bf16.mxu0 %v2759
        %2870 = vmatpush2.bf16.msra.mxu0 %v2758
        %2871 = vmatprep.subr.bf16.mxu0 %v2755
        %2872 = vmatpush2.bf16.msra.mxu0 %v2754
        %2873 = vmatprep.subr.bf16.mxu0 %v2751
        %2874 = vmatpush2.bf16.msra.mxu0 %v2750
        %2875 = vmatprep.mubr.bf16.mxu0 %v2828
        %2876 = vmatmul.mubr.bf16.gmra.mxu0 %v2553
        %v2877 = vpop.f32.mrf.mxu0
        %v2878 = vadd.f32 0.0, %v2877
        %v2879 = vpop.f32.mrf.mxu0
        %v2880 = vadd.f32 0.0, %v2879
        %v2881 = vpop.f32.mrf.mxu0
        %v2882 = vpop.f32.mrf.mxu0
        %2883 = vdwg.mxu0
        %2884 = vmatprep.subr.bf16.mxu0 %v2749
        %2885 = vmatpush1.bf16.msra.mxu0 %v2748
        %2886 = vmatprep.subr.bf16.mxu0 %v2745
        %2887 = vmatpush1.bf16.msra.mxu0 %v2744
        %2888 = vmatprep.subr.bf16.mxu0 %v2741
        %2889 = vmatpush1.bf16.msra.mxu0 %v2740
        %2890 = vmatprep.subr.bf16.mxu0 %v2737
        %2891 = vmatpush1.bf16.msra.mxu0 %v2736
        %2892 = vmatprep.subr.bf16.mxu0 %v2733
        %2893 = vmatpush1.bf16.msra.mxu0 %v2732
        %2894 = vmatprep.subr.bf16.mxu0 %v2729
        %2895 = vmatpush1.bf16.msra.mxu0 %v2728
        %2896 = vmatprep.subr.bf16.mxu0 %v2725
        %2897 = vmatpush1.bf16.msra.mxu0 %v2724
        %2898 = vmatprep.subr.bf16.mxu0 %v2721
        %2899 = vmatpush1.bf16.msra.mxu0 %v2720
        %2900 = vmatprep.subr.bf16.mxu0 0
        %2901 = vmatpush2.bf16.msra.mxu0 0
        %2902 = vmatprep.subr.bf16.mxu0 0
        %2903 = vmatpush2.bf16.msra.mxu0 0
        %2904 = vmatprep.subr.bf16.mxu0 %v2841
        %2905 = vmatpush2.bf16.msra.mxu0 %v2838
        %2906 = vmatprep.subr.bf16.mxu0 %v2769
        %2907 = vmatpush2.bf16.msra.mxu0 %v2768
        %2908 = vmatprep.subr.bf16.mxu0 %v2765
        %2909 = vmatpush2.bf16.msra.mxu0 %v2764
        %2910 = vmatprep.subr.bf16.mxu0 %v2761
        %2911 = vmatpush2.bf16.msra.mxu0 %v2760
        %2912 = vmatprep.subr.bf16.mxu0 %v2757
        %2913 = vmatpush2.bf16.msra.mxu0 %v2756
        %2914 = vmatprep.subr.bf16.mxu0 %v2753
        %2915 = vmatpush2.bf16.msra.mxu0 %v2752
        %2916 = vmatprep.mubr.bf16.mxu0 %v2828
        %2917 = vmatmul.mubr.bf16.gmra.mxu0 %v2553
        %v2918 = vpop.f32.mrf.mxu0
        %v2919 = vadd.f32 0.0, %v2918
        %v2920 = vpop.f32.mrf.mxu0
        %v2921 = vadd.f32 0.0, %v2920
        %v2922 = vpop.f32.mrf.mxu0
        %v2923 = vpop.f32.mrf.mxu0
        %2924 = vdwg.mxu0
        %v2925 = vadd.f32 %v2878, %v2880
        %v2926 = vadd.f32 %v2925, %v2919
        %v2927 = vadd.f32 %v2926, %v2921
        %2928 = vadd.xlane.f32.xlu0 %v2927
        %v2929 = vpop.xlane.xlu0 %2928
        %v2930 = vmul.f32 %v2929, %v1675
        %v2931 = vsub.f32 %v2878, %v2930
        %v2932 = vsub.f32 %v2880, %v2930
        %v2933 = vsub.f32 %v2919, %v2930
        %v2934 = vsub.f32 %v2921, %v2930
        %v2935 = vmul.f32 %v2931, %v2931
        %v2936 = vmul.f32 %v2932, %v2932
        %v2937 = vmul.f32 %v2933, %v2933
        %v2938 = vmul.f32 %v2934, %v2934
        %v2939 = vadd.f32 %v2935, %v2936
        %v2940 = vadd.f32 %v2939, %v2937
        %v2941 = vadd.f32 %v2940, %v2938
        %2942 = vadd.xlane.f32.xlu0 %v2941
        %v2943 = vpop.xlane.xlu0 %2942
        %v2944 = vmul.f32 %v2943, %v1675
        %v2945 = vadd.f32 %v2944, 1e-05
        %v2946 = vrsqrt.pop %v2945
        %v2947 = vmul.f32 %v2931, %v2946
        %v2948 = vmul.f32 %v2932, %v2946
        %v2949 = vmul.f32 %v2933, %v2946
        %v2950 = vmul.f32 %v2934, %v2946
        %v2951 = vld [vmem:[%s3] sm:$0xf]
        %vm2952 = vcmask 31744
        %v2954 = vsel %vm2952, %v2951, 0
        %vm2956 = vcmask 1041408
        %v2958 = vsel %vm2956, %v888, 0
        %v2961 = vsel %vm2956, %v889, 0
        %v2964 = vsel %vm2956, %v890, 0
        %v2967 = vsel %vm2956, %v891, 0
        %2969 = vmatprep.subr.bf16.mxu0 0
        %2970 = vmatpush1.bf16.msra.mxu0 0
        %2971 = vmatprep.subr.bf16.mxu0 0
        %2972 = vmatpush1.bf16.msra.mxu0 0
        %2973 = vmatprep.subr.bf16.mxu0 0
        %2974 = vmatpush1.bf16.msra.mxu0 0
        %2975 = vmatprep.subr.bf16.mxu0 0
        %2976 = vmatpush1.bf16.msra.mxu0 0
        %2977 = vmatprep.subr.bf16.mxu0 0
        %2978 = vmatpush1.bf16.msra.mxu0 0
        %2979 = vmatprep.subr.bf16.mxu0 0
        %2980 = vmatpush1.bf16.msra.mxu0 0
        %2981 = vmatprep.subr.bf16.mxu0 0
        %2982 = vmatpush1.bf16.msra.mxu0 0
        %2983 = vmatprep.subr.bf16.mxu0 %v2961
        %2984 = vmatpush1.bf16.msra.mxu0 %v2958
        %2985 = vmatprep.subr.bf16.mxu0 0
        %2986 = vmatpush2.bf16.msra.mxu0 0
        %2987 = vmatprep.subr.bf16.mxu0 0
        %2988 = vmatpush2.bf16.msra.mxu0 0
        %2989 = vmatprep.subr.bf16.mxu0 0
        %2990 = vmatpush2.bf16.msra.mxu0 0
        %2991 = vmatprep.subr.bf16.mxu0 0
        %2992 = vmatpush2.bf16.msra.mxu0 0
        %2993 = vmatprep.subr.bf16.mxu0 0
        %2994 = vmatpush2.bf16.msra.mxu0 0
        %2995 = vmatprep.subr.bf16.mxu0 0
        %2996 = vmatpush2.bf16.msra.mxu0 0
        %2997 = vmatprep.subr.bf16.mxu0 0
        %2998 = vmatpush2.bf16.msra.mxu0 0
        %2999 = vmatprep.subr.bf16.mxu0 0
        %3000 = vmatpush2.bf16.msra.mxu0 0
        %3001 = vmatprep.mubr.bf16.mxu0 0
        %3002 = vmatmul.mubr.bf16.gmra.mxu0 %v2954
        %v3003 = vpop.f32.mrf.mxu0
        %v3004 = vadd.f32 0.0, %v3003
        %v3005 = vpop.f32.mrf.mxu0
        %v3006 = vadd.f32 0.0, %v3005
        %v3007 = vpop.f32.mrf.mxu0
        %v3008 = vpop.f32.mrf.mxu0
        %3009 = vdwg.mxu0
        %3010 = vmatprep.subr.bf16.mxu0 0
        %3011 = vmatpush1.bf16.msra.mxu0 0
        %3012 = vmatprep.subr.bf16.mxu0 0
        %3013 = vmatpush1.bf16.msra.mxu0 0
        %3014 = vmatprep.subr.bf16.mxu0 0
        %3015 = vmatpush1.bf16.msra.mxu0 0
        %3016 = vmatprep.subr.bf16.mxu0 0
        %3017 = vmatpush1.bf16.msra.mxu0 0
        %3018 = vmatprep.subr.bf16.mxu0 0
        %3019 = vmatpush1.bf16.msra.mxu0 0
        %3020 = vmatprep.subr.bf16.mxu0 0
        %3021 = vmatpush1.bf16.msra.mxu0 0
        %3022 = vmatprep.subr.bf16.mxu0 0
        %3023 = vmatpush1.bf16.msra.mxu0 0
        %3024 = vmatprep.subr.bf16.mxu0 %v2967
        %3025 = vmatpush1.bf16.msra.mxu0 %v2964
        %3026 = vmatprep.subr.bf16.mxu0 0
        %3027 = vmatpush2.bf16.msra.mxu0 0
        %3028 = vmatprep.subr.bf16.mxu0 0
        %3029 = vmatpush2.bf16.msra.mxu0 0
        %3030 = vmatprep.subr.bf16.mxu0 0
        %3031 = vmatpush2.bf16.msra.mxu0 0
        %3032 = vmatprep.subr.bf16.mxu0 0
        %3033 = vmatpush2.bf16.msra.mxu0 0
        %3034 = vmatprep.subr.bf16.mxu0 0
        %3035 = vmatpush2.bf16.msra.mxu0 0
        %3036 = vmatprep.subr.bf16.mxu0 0
        %3037 = vmatpush2.bf16.msra.mxu0 0
        %3038 = vmatprep.subr.bf16.mxu0 0
        %3039 = vmatpush2.bf16.msra.mxu0 0
        %3040 = vmatprep.subr.bf16.mxu0 0
        %3041 = vmatpush2.bf16.msra.mxu0 0
        %3042 = vmatprep.mubr.bf16.mxu0 0
        %3043 = vmatmul.mubr.bf16.gmra.mxu0 %v2954
        %v3044 = vpop.f32.mrf.mxu0
        %v3045 = vadd.f32 0.0, %v3044
        %v3046 = vpop.f32.mrf.mxu0
        %v3047 = vadd.f32 0.0, %v3046
        %v3048 = vpop.f32.mrf.mxu0
        %v3049 = vpop.f32.mrf.mxu0
        %3050 = vdwg.mxu0
        %v3051 = vadd.f32 %v3004, %v3006
        %v3052 = vadd.f32 %v3051, %v3045
        %v3053 = vadd.f32 %v3052, %v3047
        %3054 = vadd.xlane.f32.xlu0 %v3053
        %v3055 = vpop.xlane.xlu0 %3054
        %v3056 = vmul.f32 %v3055, %v1675
        %v3057 = vsub.f32 %v3004, %v3056
        %v3058 = vsub.f32 %v3006, %v3056
        %v3059 = vsub.f32 %v3045, %v3056
        %v3060 = vsub.f32 %v3047, %v3056
        %v3061 = vmul.f32 %v3057, %v3057
        %v3062 = vmul.f32 %v3058, %v3058
        %v3063 = vmul.f32 %v3059, %v3059
        %v3064 = vmul.f32 %v3060, %v3060
        %v3065 = vadd.f32 %v3061, %v3062
        %v3066 = vadd.f32 %v3065, %v3063
        %v3067 = vadd.f32 %v3066, %v3064
        %3068 = vadd.xlane.f32.xlu0 %v3067
        %v3069 = vpop.xlane.xlu0 %3068
        %v3070 = vmul.f32 %v3069, %v1675
        %v3071 = vadd.f32 %v3070, 1e-05
        %v3072 = vrsqrt.pop %v3071
        %v3073 = vmul.f32 %v3057, %v3072
        %v3074 = vmul.f32 %v3058, %v3072
        %v3075 = vmul.f32 %v3059, %v3072
        %v3076 = vmul.f32 %v3060, %v3072
        %v3077 = vadd.f32 %v2947, %v3073
        %v3078 = vadd.f32 %v2948, %v3074
        %v3079 = vadd.f32 %v2949, %v3075
        %v3080 = vadd.f32 %v2950, %v3076
        %v3081 = vmax.f32 %v3077, 0.0
        %v3082 = vmax.f32 %v3078, 0.0
        %v3083 = vmax.f32 %v3079, 0.0
        %v3084 = vmax.f32 %v3080, 0.0
        %3085 = vst [vmem:[%s226] sm:$0xff] %v3081
        %3086 = vst [vmem:[%s226 + $0x8] sm:$0xff] %v3082
        %3087 = vst [vmem:[%s226 + $0x10] sm:$0xff] %v3083
        %3088 = vst [vmem:[%s226 + $0x18] sm:$0xff] %v3084
        %s3089 = sand.u32 %s119, 1
        %s3090 = scalar_lea.sflag [#allocation6], %s3089
        %s3091 = sand.u32 %s119, 1
        %s3092 = smul.addr %s3091, 32
        %s3093 = scalar_lea.vmem [#allocation9], %s3092
        // Predicated region
        $region45: #{tpu_custom_call.1} parent=35 // pred_check
          %p3094 = pneg %p129
        $region46: #{tpu_custom_call.1} parent=35 // pred_check_branch
          %3096 = sbr.rel (%p3094) target = $region48
        $region47: #{tpu_custom_call.1} parent=35 // pred_region
          %s3098 = ssub.s32 512, 512
          %3099 = vsyncadd %s3090, %s3098
          %s3100 = smul.addr %s22, 4
          %s3101 = smul.addr %s3100, 128
          %s3102 = scalar_lea.hbm %s4, %s3101
          %s3104 = sshll.u32 %s3093, 4
          %s3105 = int_to_ptr.vmem [resolvable:$true] %s3104
          %3107 = dma.vmem_to_hbm [thread:$0]  %s3105, 512, %s3102, %s3090
        $region48: #{tpu_custom_call.1} parent=35 // pred_fallthru
          _
      $region36: #{tpu_custom_call.1} parent=5 // pred_fallthru
        _
      %p3108 = scmp.le.s32.totalorder 2, %s17
      // Predicated region
      $region49: #{tpu_custom_call.1} parent=5 // pred_check
        %p3109 = pneg %p3108
      $region50: #{tpu_custom_call.1} parent=5 // pred_check_branch
        %3111 = sbr.rel (%p3109) target = $region52
      $region51: #{tpu_custom_call.1} parent=5 // pred_region
        %s3112 = ssub.s32 %s17, 2
        // Predicated region
        $region53: #{tpu_custom_call.1} parent=51 // pred_check
          %p3113 = pneg %p135
        $region54: #{tpu_custom_call.1} parent=51 // pred_check_branch
          %3115 = sbr.rel (%p3113) target = $region56
        $region55: #{tpu_custom_call.1} parent=51 // pred_region
          %s3116 = sand.u32 %s120, 1
          %s3117 = scalar_lea.sflag [#allocation6], %s3116
          %s3118 = sand.u32 %s120, 1
          %s3119 = smul.addr %s3118, 32
          %s3120 = scalar_lea.vmem [#allocation9], %s3119
          %3121 = dma.done %s3117, 512
        $region56: #{tpu_custom_call.1} parent=51 // pred_fallthru
          _
      $region52: #{tpu_custom_call.1} parent=5 // pred_fallthru
        _
    $region6: #{tpu_custom_call.1} parent=1 // loop_footer
      %s21 = sadd.s32 1, %s17
    $region7: #{tpu_custom_call.1} parent=1 // loop_footer_branch
      %16 = sbr.rel target = $region3
    $region8: #{tpu_custom_call.1} parent=1 // loop_exit
      _
    %3122 = vsyncpa [#allocation5], 1
    %s3123 = scalar_lea.sflag [#allocation5], 1
    %3124 = vsyncpa %s3123, 1
    %3125 = vsyncpa [#allocation8], 1
    %3126 = vsyncpa [#allocation6], 1
    %s3127 = scalar_lea.sflag [#allocation6], 1
    %3128 = vsyncpa %s3127, 1

</llo_original>
